<compile_context>
chip_gen: v6e
topology: v6e:2x2x1
jax: 0.10.0
libtpu: 0.0.40
codegen_flags: <defaults>
</compile_context>

<pallas_src>
import math
from functools import partial

import numpy as np
import jax
import jax.numpy as jnp
from jax.experimental import pallas as pl
from jax.experimental.pallas import tpu as pltpu


# ----------------------------------------------------------------------------
# Tiling helpers
# ----------------------------------------------------------------------------

def _round_up(x, m):
    return ((x + m - 1) // m) * m


def _tile_rows(M, cap=512):
    """Row (sublane) tile: multiple of 8, capped."""
    if M <= cap:
        t = _round_up(M, 8)
        return t, t
    return cap, _round_up(M, cap)


def _tile_lanes(D, cap):
    """Lane tile: multiple of 128, capped; cap must be a multiple of 128."""
    Dp = _round_up(D, 128)
    if Dp <= cap:
        return Dp, Dp
    for t in range(cap, 0, -128):
        if Dp % t == 0:
            return t, Dp
    return 128, Dp


# ----------------------------------------------------------------------------
# Pallas kernel: tiled matmul + bias + activation + fused epilogue
# ----------------------------------------------------------------------------

def _mm_kernel(*refs, act, epilogue):
    a_ref, b_ref, bias_ref = refs[0], refs[1], refs[2]
    o_ref, acc_ref = refs[-2], refs[-1]
    extras = refs[3:-2]
    k = pl.program_id(2)

    @pl.when(k == 0)
    def _init():
        acc_ref[...] = jnp.zeros_like(acc_ref)

    acc_ref[...] += jnp.dot(a_ref[...], b_ref[...],
                            preferred_element_type=jnp.float32)

    @pl.when(k == pl.num_programs(2) - 1)
    def _epilogue():
        y = acc_ref[...] + bias_ref[...]
        if act == "leaky_relu":
            y = jnp.where(y > 0, y, 0.01 * y)
        elif act == "relu":
            y = jnp.maximum(y, 0.0)
        if epilogue == "residual":                 # y = act(conv) + res
            y = y + extras[0][...]
        elif epilogue == "residual_relu":          # y = relu(conv + res)
            y = jnp.maximum(y + extras[0][...], 0.0)
        elif epilogue == "attn_gate":              # y = a * sigmoid(conv) + x
            y = extras[0][...] * jax.nn.sigmoid(y) + extras[1][...]
        o_ref[...] = y.astype(o_ref.dtype)


def matmul_fused(a, b, bias, *, act="linear", epilogue="none", extras=(),
                 out_dtype=jnp.float32):
    """(M,K) @ (K,N) + bias with fused activation/epilogue.  bf16 in, f32 accumulate."""
    M, K = a.shape
    K2, N = b.shape
    assert K == K2

    TM, M_pad = _tile_rows(M, cap=512)
    TK, K_pad = _tile_lanes(K, cap=512)
    TN, N_pad = _tile_lanes(N, cap=128)   # 128-wide N: MXU-native on v5e, lane-dense stores

    a_p = jnp.pad(a.astype(jnp.bfloat16), ((0, M_pad - M), (0, K_pad - K)))
    b_p = jnp.pad(b.astype(jnp.bfloat16), ((0, K_pad - K), (0, N_pad - N)))
    bias_p = jnp.pad(bias.reshape(1, -1).astype(jnp.float32),
                     ((0, 0), (0, N_pad - N)))
    extras_p = tuple(
        jnp.pad(e.astype(jnp.float32), ((0, M_pad - M), (0, N_pad - N)))
        for e in extras)

    grid = (M_pad // TM, N_pad // TN, K_pad // TK)
    in_specs = [
        pl.BlockSpec((TM, TK), lambda i, j, k: (i, k)),
        pl.BlockSpec((TK, TN), lambda i, j, k: (k, j)),
        pl.BlockSpec((1, TN), lambda i, j, k: (0, j)),
    ] + [pl.BlockSpec((TM, TN), lambda i, j, k: (i, j)) for _ in extras_p]

    out = pl.pallas_call(
        partial(_mm_kernel, act=act, epilogue=epilogue),
        out_shape=jax.ShapeDtypeStruct((M_pad, N_pad), out_dtype),
        grid=grid,
        in_specs=in_specs,
        out_specs=pl.BlockSpec((TM, TN), lambda i, j, k: (i, j)),
        scratch_shapes=[pltpu.VMEM((TM, TN), jnp.float32)],
        compiler_params=pltpu.CompilerParams(
            dimension_semantics=("parallel", "parallel", "arbitrary")),
    )(a_p, b_p, bias_p, *extras_p)
    return out[:M, :N]


# ----------------------------------------------------------------------------
# Pallas kernel: GDN / IGDN, row-tiled, with fused residual add
# ----------------------------------------------------------------------------

def _gdn_kernel(*refs, inverse, has_res):
    x_ref, g_ref, b_ref = refs[0], refs[1], refs[2]
    if has_res:
        res_ref, o_ref = refs[3], refs[4]
    else:
        o_ref = refs[3]
    x = x_ref[...]
    norm = jnp.dot(x * x, g_ref[...], preferred_element_type=jnp.float32) + b_ref[...]
    y = x * jnp.sqrt(norm) if inverse else x * jax.lax.rsqrt(norm)
    if has_res:
        y = y + res_ref[...]
    o_ref[...] = y


def gdn_apply(x2d, gamma, beta, *, inverse=False, residual=None):
    M, C = x2d.shape
    C_pad = _round_up(C, 128)
    TM, M_pad = _tile_rows(M, cap=512)

    x_p = jnp.pad(x2d.astype(jnp.float32), ((0, M_pad - M), (0, C_pad - C)))
    g_p = jnp.pad(gamma.astype(jnp.float32), ((0, C_pad - C), (0, C_pad - C)))
    # pad beta with 1.0 so padded channels have norm=1 (no inf/NaN)
    b_p = jnp.pad(beta.reshape(1, C).astype(jnp.float32),
                  ((0, 0), (0, C_pad - C)), constant_values=1.0)

    inputs = [x_p, g_p, b_p]
    in_specs = [
        pl.BlockSpec((TM, C_pad), lambda i: (i, 0)),
        pl.BlockSpec((C_pad, C_pad), lambda i: (0, 0)),
        pl.BlockSpec((1, C_pad), lambda i: (0, 0)),
    ]
    if residual is not None:
        r_p = jnp.pad(residual.astype(jnp.float32),
                      ((0, M_pad - M), (0, C_pad - C)))
        inputs.append(r_p)
        in_specs.append(pl.BlockSpec((TM, C_pad), lambda i: (i, 0)))

    out = pl.pallas_call(
        partial(_gdn_kernel, inverse=inverse, has_res=residual is not None),
        out_shape=jax.ShapeDtypeStruct((M_pad, C_pad), jnp.float32),
        grid=(M_pad // TM,),
        in_specs=in_specs,
        out_specs=pl.BlockSpec((TM, C_pad), lambda i: (i, 0)),
        compiler_params=pltpu.CompilerParams(dimension_semantics=("parallel",)),
    )(*inputs)
    return out[:M, :C]


# ----------------------------------------------------------------------------
# Conv2d = im2col (JAX glue) + tiled Pallas matmul
# ----------------------------------------------------------------------------

def conv2d_mm(x, wm, bias, KH, KW, *, stride=1, padding=0, act="linear",
              epilogue="none", extras2d=()):
    # x: (N,H,W,Cin)  wm: (KH*KW*Cin, Cout) bf16  bias: (Cout,)
    N, H, W, Cin = x.shape
    if padding:
        x = jnp.pad(x, ((0, 0), (padding, padding), (padding, padding), (0, 0)))
    Hp, Wp = H + 2 * padding, W + 2 * padding
    Hout = (Hp - KH) // stride + 1
    Wout = (Wp - KW) // stride + 1
    cols = []
    for kh in range(KH):
        for kw in range(KW):
            cols.append(x[:, kh::stride, kw::stride, :][:, :Hout, :Wout, :])
    patches = jnp.concatenate(cols, axis=-1)                 # (N,Hout,Wout,KH*KW*Cin)
    a = patches.reshape(N * Hout * Wout, KH * KW * Cin)
    out = matmul_fused(a, wm, bias, act=act, epilogue=epilogue, extras=extras2d)
    Cout = wm.shape[1]
    return out.reshape(N, Hout, Wout, Cout)


# ----------------------------------------------------------------------------
# Parameters / channel-divide helpers
# ----------------------------------------------------------------------------

class KeyGen:
    def __init__(self, seed):
        self.key = jax.random.PRNGKey(seed)

    def __call__(self):
        self.key, k = jax.random.split(self.key)
        return k


def conv_params(kg, cin, cout, k):
    scale = 1.0 / math.sqrt(max(cin * k * k, 1))
    w = jax.random.normal(kg(), (k, k, cin, cout), jnp.float32) * scale
    b = jax.random.normal(kg(), (cout,), jnp.float32) * 0.01
    return {"w": w, "b": b}


def gdn_params(c):
    # CompressAI GDN default init: gamma = 0.1 * I, beta = 1
    # TODO(synk): apply CompressAI's non-negative reparameterization if trained weights are loaded.
    return {"gamma": 0.1 * jnp.eye(c, dtype=jnp.float32),
            "beta": jnp.ones((c,), jnp.float32)}


def channel_mult(inp, coeff):
    return [math.floor(v * coeff) for v in inp]


def ch_sel(shared_start, shared_end, spec_starts, spec_ends, idx):
    return np.concatenate([
        np.arange(shared_start, shared_end),
        np.arange(spec_starts[idx], spec_ends[idx]),
    ]).astype(np.int32)


def prep_conv(p, in_sel, out_sel):
    """Channel-slice + reshape + cast weights once (cached by callers)."""
    w = p["w"][:, :, in_sel][:, :, :, out_sel]
    KH, KW, Cin, Cout = w.shape
    return {"wm": w.reshape(KH * KW * Cin, Cout).astype(jnp.bfloat16),
            "b": p["b"][out_sel].astype(jnp.float32),
            "KH": KH, "KW": KW}


def prep_gdn(p, sel):
    return {"gamma": p["gamma"][sel][:, sel].astype(jnp.float32),
            "beta": p["beta"][sel].astype(jnp.float32)}


def prep_subpel(p, in_sel, out_sel, r):
    out_sel = np.asarray(out_sel)
    out_sel_exp = (out_sel[:, None] * (r * r) + np.arange(r * r)[None, :]).reshape(-1)
    return prep_conv(p, in_sel, out_sel_exp), len(out_sel)


def apply_conv(prep, x, *, stride=1, padding=0, act="linear",
               epilogue="none", extras2d=()):
    return conv2d_mm(x, prep["wm"], prep["b"], prep["KH"], prep["KW"],
                     stride=stride, padding=padding, act=act,
                     epilogue=epilogue, extras2d=extras2d)


def apply_subpel(prep, x, C_out, r, *, padding=1, act="linear"):
    y = apply_conv(prep, x, stride=1, padding=padding, act=act)   # (N,H,W,C_out*r*r)
    N, H, W, _ = y.shape
    y = y.reshape(N, H, W, C_out, r, r).transpose(0, 1, 4, 2, 5, 3)
    return y.reshape(N, H * r, W * r, C_out)


# ----------------------------------------------------------------------------
# Blocks (CompressAI structure + channel divide)
# ----------------------------------------------------------------------------

class ResidualBlockWithStrideDivide:
    def __init__(self, kg, in_tot, out_tot,
                 i_shs, i_she, i_sps, i_spe,
                 o_shs, o_she, o_sps, o_spe, stride=2):
        self.in_args, self.out_args = (i_shs, i_she, i_sps, i_spe), (o_shs, o_she, o_sps, o_spe)
        self.stride = stride
        self.conv1 = conv_params(kg, in_tot, out_tot, 3)
        self.conv2 = conv_params(kg, out_tot, out_tot, 3)
        self.gdn = gdn_params(out_tot)
        self.skip = conv_params(kg, in_tot, out_tot, 1)
        self._cache = {}

    def _prep(self, idx):
        i_sel = ch_sel(*self.in_args, idx)
        o_sel = ch_sel(*self.out_args, idx)
        return {"conv1": prep_conv(self.conv1, i_sel, o_sel),
                "conv2": prep_conv(self.conv2, o_sel, o_sel),
                "skip": prep_conv(self.skip, i_sel, o_sel),
                "gdn": prep_gdn(self.gdn, o_sel)}

    def __call__(self, x, index_channel=0):
        pp = self._cache.setdefault(index_channel, self._prep(index_channel))
        out = apply_conv(pp["conv1"], x, stride=self.stride, padding=1, act="leaky_relu")
        out = apply_conv(pp["conv2"], out, stride=1, padding=1, act="linear")
        identity = apply_conv(pp["skip"], x, stride=self.stride, padding=0, act="linear")
        N, H, W, C = out.shape
        y = gdn_apply(out.reshape(-1, C), pp["gdn"]["gamma"], pp["gdn"]["beta"],
                      inverse=False, residual=identity.reshape(-1, C))
        return y.reshape(N, H, W, C)


class ResidualBlockDivide:
    def __init__(self, kg, in_tot, out_tot,
                 i_shs, i_she, i_sps, i_spe,
                 o_shs, o_she, o_sps, o_spe):
        self.in_args, self.out_args = (i_shs, i_she, i_sps, i_spe), (o_shs, o_she, o_sps, o_spe)
        self.conv1 = conv_params(kg, in_tot, out_tot, 3)
        self.conv2 = conv_params(kg, out_tot, out_tot, 3)
        self._cache = {}

    def _prep(self, idx):
        i_sel = ch_sel(*self.in_args, idx)
        o_sel = ch_sel(*self.out_args, idx)
        return {"conv1": prep_conv(self.conv1, i_sel, o_sel),
                "conv2": prep_conv(self.conv2, o_sel, o_sel)}

    def __call__(self, x, index_channel=0):
        pp = self._cache.setdefault(index_channel, self._prep(index_channel))
        N, H, W, C = x.shape
        out = apply_conv(pp["conv1"], x, stride=1, padding=1, act="leaky_relu")
        # residual add fused into conv2 epilogue (post-activation add)
        out = apply_conv(pp["conv2"], out, stride=1, padding=1, act="leaky_relu",
                         epilogue="residual", extras2d=(x.reshape(-1, C),))
        return out


class ResidualBlockUpsampleDivide:
    def __init__(self, kg, in_tot, out_tot,
                 i_shs, i_she, i_sps, i_spe,
                 o_shs, o_she, o_sps, o_spe, upsample=2):
        self.in_args, self.out_args = (i_shs, i_she, i_sps, i_spe), (o_shs, o_she, o_sps, o_spe)
        self.r = upsample
        self.subpel = conv_params(kg, in_tot, out_tot * upsample * upsample, 3)
        self.conv = conv_params(kg, out_tot, out_tot, 3)
        self.igdn = gdn_params(out_tot)
        self.upsample = conv_params(kg, in_tot, out_tot * upsample * upsample, 3)
        self._cache = {}

    def _prep(self, idx):
        i_sel = ch_sel(*self.in_args, idx)
        o_sel = ch_sel(*self.out_args, idx)
        sp, c = prep_subpel(self.subpel, i_sel, o_sel, self.r)
        up, _ = prep_subpel(self.upsample, i_sel, o_sel, self.r)
        return {"subpel": sp, "upsample": up, "C": c,
                "conv": prep_conv(self.conv, o_sel, o_sel),
                "igdn": prep_gdn(self.igdn, o_sel)}

    def __call__(self, x, index_channel=0):
        pp = self._cache.setdefault(index_channel, self._prep(index_channel))
        out = apply_subpel(pp["subpel"], x, pp["C"], self.r, padding=1, act="leaky_relu")
        out = apply_conv(pp["conv"], out, stride=1, padding=1, act="linear")
        identity = apply_subpel(pp["upsample"], x, pp["C"], self.r, padding=1, act="linear")
        N, H, W, C = out.shape
        y = gdn_apply(out.reshape(-1, C), pp["igdn"]["gamma"], pp["igdn"]["beta"],
                      inverse=True, residual=identity.reshape(-1, C))
        return y.reshape(N, H, W, C)


class AttentionBlockDivide:
    def __init__(self, kg, n_tot, nhalf_tot,
                 n_shs, n_she, n_sps, n_spe,
                 h_shs, h_she, h_sps, h_spe):
        self.n_args, self.h_args = (n_shs, n_she, n_sps, n_spe), (h_shs, h_she, h_sps, h_spe)

        def ru():
            return {"c1": conv_params(kg, n_tot, nhalf_tot, 1),
                    "c2": conv_params(kg, nhalf_tot, nhalf_tot, 3),
                    "c3": conv_params(kg, nhalf_tot, n_tot, 1)}

        self.conv_a = [ru() for _ in range(3)]
        self.conv_b = [ru() for _ in range(3)]
        self.conv_b_out = conv_params(kg, n_tot, n_tot, 1)
        self._cache = {}

    def _prep(self, idx):
        n_sel = ch_sel(*self.n_args, idx)
        h_sel = ch_sel(*self.h_args, idx)

        def ru_prep(p):
            return {"c1": prep_conv(p["c1"], n_sel, h_sel),
                    "c2": prep_conv(p["c2"], h_sel, h_sel),
                    "c3": prep_conv(p["c3"], h_sel, n_sel)}

        return {"a": [ru_prep(p) for p in self.conv_a],
                "b": [ru_prep(p) for p in self.conv_b],
                "b_out": prep_conv(self.conv_b_out, n_sel, n_sel)}

    def _ru(self, pp, x):
        N, H, W, C = x.shape
        out = apply_conv(pp["c1"], x, stride=1, padding=0, act="relu")
        out = apply_conv(pp["c2"], out, stride=1, padding=1, act="relu")
        # relu(conv3 + x) fused into conv3's epilogue
        out = apply_conv(pp["c3"], out, stride=1, padding=0, act="linear",
                         epilogue="residual_relu", extras2d=(x.reshape(-1, C),))
        return out

    def __call__(self, x, index_channel=0):
        pp = self._cache.setdefault(index_channel, self._prep(index_channel))
        a = x
        for rp in pp["a"]:
            a = self._ru(rp, a)
        b = x
        for rp in pp["b"]:
            b = self._ru(rp, b)
        N, H, W, C = x.shape
        # a * sigmoid(conv_b_out(b)) + x fused into the final conv's epilogue
        out = apply_conv(pp["b_out"], b, stride=1, padding=0, act="linear",
                         epilogue="attn_gate",
                         extras2d=(a.reshape(-1, C), x.reshape(-1, C)))
        return out


class SubpelConvDivide:
    def __init__(self, kg, in_tot, out_tot,
                 i_shs, i_she, i_sps, i_spe,
                 o_shs, o_she, o_sps, o_spe, upscale_factor=2, kernel_size=3, padding=1):
        self.in_args, self.out_args = (i_shs, i_she, i_sps, i_spe), (o_shs, o_she, o_sps, o_spe)
        self.r = upscale_factor
        self.padding = padding
        self.conv = conv_params(kg, in_tot, out_tot * upscale_factor * upscale_factor, kernel_size)
        self._cache = {}

    def _prep(self, idx):
        i_sel = ch_sel(*self.in_args, idx)
        o_sel = ch_sel(*self.out_args, idx)
        sp, c = prep_subpel(self.conv, i_sel, o_sel, self.r)
        return {"conv": sp, "C": c}

    def __call__(self, x, index_channel=0):
        pp = self._cache.setdefault(index_channel, self._prep(index_channel))
        return apply_subpel(pp["conv"], x, pp["C"], self.r,
                            padding=self.padding, act="linear")


# ----------------------------------------------------------------------------
# Divide_g_s
# ----------------------------------------------------------------------------

class DivideGS:
    def __init__(self, kg, divide_ch, shared_ch_start, shared_ch_end,
                 specific_ch_starts, specific_ch_ends):
        num_divide = len(specific_ch_starts)
        io_ch = 3
        io_shs, io_she = 0, 3
        io_sps = [3] * num_divide
        io_spe = [3] * num_divide
        dch_h = math.floor(divide_ch * 0.5)
        shs_h = math.floor(shared_ch_start * 0.5)
        she_h = math.floor(shared_ch_end * 0.5)
        sps_h = channel_mult(specific_ch_starts, 0.5)
        spe_h = channel_mult(specific_ch_ends, 0.5)

        S = (shared_ch_start, shared_ch_end, specific_ch_starts, specific_ch_ends)
        Sh = (shs_h, she_h, sps_h, spe_h)
        IO = (io_shs, io_she, io_sps, io_spe)

        self.res1 = ResidualBlockWithStrideDivide(kg, io_ch, divide_ch, *IO, *S, stride=2)
        self.res2 = ResidualBlockDivide(kg, divide_ch, divide_ch, *S, *S)
        self.res3 = ResidualBlockWithStrideDivide(kg, divide_ch, divide_ch, *S, *S, stride=2)
        self.att4 = AttentionBlockDivide(kg, divide_ch, dch_h, *S, *Sh)
        self.res5 = ResidualBlockDivide(kg, divide_ch, divide_ch, *S, *S)
        self.att6 = AttentionBlockDivide(kg, divide_ch, dch_h, *S, *Sh)
        self.res7 = ResidualBlockDivide(kg, divide_ch, divide_ch, *S, *S)
        self.res8 = ResidualBlockUpsampleDivide(kg, divide_ch, divide_ch, *S, *S, upsample=2)
        self.res9 = ResidualBlockDivide(kg, divide_ch, divide_ch, *S, *S)
        self.conv10 = SubpelConvDivide(kg, divide_ch, io_ch, *S, *IO,
                                       upscale_factor=2, kernel_size=3, padding=1)
        self._jit_cache = {}

    def _forward(self, x_nchw, index_channel=0):
        x = jnp.transpose(x_nchw, (0, 2, 3, 1)).astype(jnp.float32)   # NCHW -> NHWC
        out = x
        out = self.res1(out, index_channel)
        out = self.res2(out, index_channel)
        out = self.res3(out, index_channel)
        out = self.att4(out, index_channel)
        out = self.res5(out, index_channel)
        out = self.att6(out, index_channel)
        out = self.res7(out, index_channel)
        out = self.res8(out, index_channel)
        out = self.res9(out, index_channel)
        out = self.conv10(out, index_channel)
        out = x + out
        return jnp.transpose(out, (0, 3, 1, 2))                        # NHWC -> NCHW

    def __call__(self, x_nchw, index_channel=0):
        fn = self._jit_cache.setdefault(
            index_channel, jax.jit(partial(self._forward, index_channel=index_channel)))
        return fn(x_nchw)


# ----------------------------------------------------------------------------
# Demo
# ----------------------------------------------------------------------------

if __name__ == "__main__":
    # small, deterministic configuration
    divide_ch = 8
    shared_ch_start, shared_ch_end = 0, 6
    specific_ch_starts = [6, 7]
    specific_ch_ends = [7, 8]

    kg = KeyGen(42)
    model = DivideGS(kg, divide_ch, shared_ch_start, shared_ch_end,
                     specific_ch_starts, specific_ch_ends)

    x = jax.random.normal(jax.random.PRNGKey(0), (2, 3, 16, 16), jnp.float32)  # NCHW
    y = model(x, index_channel=0)
    y = jax.block_until_ready(y)
    assert y.shape == x.shape
    assert bool(jnp.all(jnp.isfinite(y)))
    print("KERNEL_OK")
</pallas_src>

<mosaic_0001>
module attributes {stable_mosaic.version = 11 : i64} {
  func.func @_mm_kernel(%arg0: i32, %arg1: i32, %arg2: i32, %arg3: memref<128x128xbf16, #tpu.memory_space<vmem>>, %arg4: memref<128x128xbf16, #tpu.memory_space<vmem>>, %arg5: memref<1x128xf32, #tpu.memory_space<vmem>>, %arg6: memref<128x128xf32, #tpu.memory_space<vmem>>, %arg7: memref<128x128xf32, #tpu.memory_space<vmem>>) attributes {dimension_semantics = [#tpu.dimension_semantics<parallel>, #tpu.dimension_semantics<parallel>, #tpu.dimension_semantics<arbitrary>], iteration_bounds = array<i64: 1, 1, 1>, scalar_prefetch = 0 : i64, scratch_operands = 1 : i64, tpu.core_type = #tpu.core_type<tc>, window_params = [{transform_indices = @transform_0, window_bounds = array<i64: 128, 128>}, {transform_indices = @transform_1, window_bounds = array<i64: 128, 128>}, {transform_indices = @transform_2, window_bounds = array<i64: 1, 128>}, {transform_indices = @transform_3, window_bounds = array<i64: 128, 128>}]} {
    %c0_i32 = arith.constant 0 : i32
    %0 = arith.cmpi eq, %arg2, %c0_i32 : i32
    %1 = arith.extui %0 : i1 to i32
    %c0_i32_0 = arith.constant 0 : i32
    %2 = arith.cmpi ne, %1, %c0_i32_0 : i32
    scf.if %2 {
      %cst_10 = arith.constant 0.000000e+00 : f32
      %12 = vector.broadcast %cst_10 : f32 to vector<128x128xf32>
      %c0_11 = arith.constant 0 : index
      %c0_12 = arith.constant 0 : index
      %13 = vector.load %arg7[%c0_11, %c0_12] : memref<128x128xf32, #tpu.memory_space<vmem>>, vector<128x128xf32>
      tpu.vector_store %arg7[%c0_11, %c0_12], %12 {strides = array<i32>} : memref<128x128xf32, #tpu.memory_space<vmem>>, vector<128x128xf32>,
    } else {
    }
    %c0 = arith.constant 0 : index
    %c0_1 = arith.constant 0 : index
    %3 = vector.load %arg7[%c0, %c0_1] : memref<128x128xf32, #tpu.memory_space<vmem>>, vector<128x128xf32>
    %c0_2 = arith.constant 0 : index
    %c0_3 = arith.constant 0 : index
    %4 = vector.load %arg3[%c0_2, %c0_3] : memref<128x128xbf16, #tpu.memory_space<vmem>>, vector<128x128xbf16>
    %c0_4 = arith.constant 0 : index
    %c0_5 = arith.constant 0 : index
    %5 = vector.load %arg4[%c0_4, %c0_5] : memref<128x128xbf16, #tpu.memory_space<vmem>>, vector<128x128xbf16>
    %cst = arith.constant dense<0.000000e+00> : vector<128x128xf32>
    %6 = tpu.matmul %4, %5, %cst {dimension_numbers = #tpu.dot_dimension_numbers<[1], [0], [0], [1], [0, 0, 1, 1], [], []>} : vector<128x128xbf16>, vector<128x128xbf16>, vector<128x128xf32> -> vector<128x128xf32>
    %7 = arith.addf %3, %6 : vector<128x128xf32>
    %c0_6 = arith.constant 0 : index
    %c0_7 = arith.constant 0 : index
    %8 = vector.load %arg7[%c0_6, %c0_7] : memref<128x128xf32, #tpu.memory_space<vmem>>, vector<128x128xf32>
    tpu.vector_store %arg7[%c0_6, %c0_7], %7 {strides = array<i32>} : memref<128x128xf32, #tpu.memory_space<vmem>>, vector<128x128xf32>,
    %c0_i32_8 = arith.constant 0 : i32
    %9 = arith.cmpi eq, %arg2, %c0_i32_8 : i32
    %10 = arith.extui %9 : i1 to i32
    %c0_i32_9 = arith.constant 0 : i32
    %11 = arith.cmpi ne, %10, %c0_i32_9 : i32
    scf.if %11 {
      %c0_10 = arith.constant 0 : index
      %c0_11 = arith.constant 0 : index
      %12 = vector.load %arg7[%c0_10, %c0_11] : memref<128x128xf32, #tpu.memory_space<vmem>>, vector<128x128xf32>
      %c0_12 = arith.constant 0 : index
      %c0_13 = arith.constant 0 : index
      %13 = vector.load %arg5[%c0_12, %c0_13] : memref<1x128xf32, #tpu.memory_space<vmem>>, vector<1x128xf32>
      %14 = vector.broadcast %13 : vector<1x128xf32> to vector<128x128xf32>
      %15 = arith.addf %12, %14 : vector<128x128xf32>
      %c0_14 = arith.constant 0 : index
      %c0_15 = arith.constant 0 : index
      %16 = vector.load %arg6[%c0_14, %c0_15] : memref<128x128xf32, #tpu.memory_space<vmem>>, vector<128x128xf32>
      tpu.vector_store %arg6[%c0_14, %c0_15], %15 {strides = array<i32>} : memref<128x128xf32, #tpu.memory_space<vmem>>, vector<128x128xf32>,
    } else {
    }
    return
  }
  func.func @transform_0(%arg0: i32, %arg1: i32, %arg2: i32) -> (i32, i32) {
    %c0_i32 = arith.constant 0 : i32
    return %arg0, %arg2 : i32, i32
  }
  func.func @transform_1(%arg0: i32, %arg1: i32, %arg2: i32) -> (i32, i32) {
    %c0_i32 = arith.constant 0 : i32
    return %arg2, %arg1 : i32, i32
  }
  func.func @transform_2(%arg0: i32, %arg1: i32, %arg2: i32) -> (i32, i32) {
    %c0_i32 = arith.constant 0 : i32
    %c0_i32_0 = arith.constant 0 : i32
    return %c0_i32, %arg1 : i32, i32
  }
  func.func @transform_3(%arg0: i32, %arg1: i32, %arg2: i32) -> (i32, i32) {
    %c0_i32 = arith.constant 0 : i32
    return %arg0, %arg1 : i32, i32
  }
}

module attributes {stable_mosaic.version = 11 : i64} {
  func.func @_mm_kernel(%arg0: i32, %arg1: i32, %arg2: i32, %arg3: memref<128x128xbf16, #tpu.memory_space<vmem>>, %arg4: memref<128x128xbf16, #tpu.memory_space<vmem>>, %arg5: memref<1x128xf32, #tpu.memory_space<vmem>>, %arg6: memref<128x128xf32, #tpu.memory_space<vmem>>, %arg7: memref<128x128xf32, #tpu.memory_space<vmem>>) attributes {dimension_semantics = [#tpu.dimension_semantics<parallel>, #tpu.dimension_semantics<parallel>, #tpu.dimension_semantics<arbitrary>], iteration_bounds = array<i64: 1, 1, 1>, scalar_prefetch = 0 : i64, scratch_operands = 1 : i64, tpu.core_type = #tpu.core_type<tc>, window_params = [{transform_indices = @transform_0, window_bounds = array<i64: 128, 128>}, {transform_indices = @transform_1, window_bounds = array<i64: 128, 128>}, {transform_indices = @transform_2, window_bounds = array<i64: 1, 128>}, {transform_indices = @transform_3, window_bounds = array<i64: 128, 128>}]} {
    %c0_i32 = arith.constant 0 : i32
    %0 = arith.cmpi eq, %arg2, %c0_i32 : i32
    %1 = arith.extui %0 : i1 to i32
    %c0_i32_0 = arith.constant 0 : i32
    %2 = arith.cmpi ne, %1, %c0_i32_0 : i32
    scf.if %2 {
      %cst_10 = arith.constant 0.000000e+00 : f32
      %12 = vector.broadcast %cst_10 : f32 to vector<128x128xf32>
      %c0_11 = arith.constant 0 : index
      %c0_12 = arith.constant 0 : index
      %13 = vector.load %arg7[%c0_11, %c0_12] : memref<128x128xf32, #tpu.memory_space<vmem>>, vector<128x128xf32>
      tpu.vector_store %arg7[%c0_11, %c0_12], %12 {strides = array<i32>} : memref<128x128xf32, #tpu.memory_space<vmem>>, vector<128x128xf32>,
    } else {
    }
    %c0 = arith.constant 0 : index
    %c0_1 = arith.constant 0 : index
    %3 = vector.load %arg7[%c0, %c0_1] : memref<128x128xf32, #tpu.memory_space<vmem>>, vector<128x128xf32>
    %c0_2 = arith.constant 0 : index
    %c0_3 = arith.constant 0 : index
    %4 = vector.load %arg3[%c0_2, %c0_3] : memref<128x128xbf16, #tpu.memory_space<vmem>>, vector<128x128xbf16>
    %c0_4 = arith.constant 0 : index
    %c0_5 = arith.constant 0 : index
    %5 = vector.load %arg4[%c0_4, %c0_5] : memref<128x128xbf16, #tpu.memory_space<vmem>>, vector<128x128xbf16>
    %cst = arith.constant dense<0.000000e+00> : vector<128x128xf32>
    %6 = tpu.matmul %4, %5, %cst {dimension_numbers = #tpu.dot_dimension_numbers<[1], [0], [0], [1], [0, 0, 1, 1], [], []>} : vector<128x128xbf16>, vector<128x128xbf16>, vector<128x128xf32> -> vector<128x128xf32>
    %7 = arith.addf %3, %6 : vector<128x128xf32>
    %c0_6 = arith.constant 0 : index
    %c0_7 = arith.constant 0 : index
    %8 = vector.load %arg7[%c0_6, %c0_7] : memref<128x128xf32, #tpu.memory_space<vmem>>, vector<128x128xf32>
    tpu.vector_store %arg7[%c0_6, %c0_7], %7 {strides = array<i32>} : memref<128x128xf32, #tpu.memory_space<vmem>>, vector<128x128xf32>,
    %c0_i32_8 = arith.constant 0 : i32
    %9 = arith.cmpi eq, %arg2, %c0_i32_8 : i32
    %10 = arith.extui %9 : i1 to i32
    %c0_i32_9 = arith.constant 0 : i32
    %11 = arith.cmpi ne, %10, %c0_i32_9 : i32
    scf.if %11 {
      %c0_10 = arith.constant 0 : index
      %c0_11 = arith.constant 0 : index
      %12 = vector.load %arg7[%c0_10, %c0_11] : memref<128x128xf32, #tpu.memory_space<vmem>>, vector<128x128xf32>
      %c0_12 = arith.constant 0 : index
      %c0_13 = arith.constant 0 : index
      %13 = vector.load %arg5[%c0_12, %c0_13] : memref<1x128xf32, #tpu.memory_space<vmem>>, vector<1x128xf32>
      %14 = vector.broadcast %13 : vector<1x128xf32> to vector<128x128xf32>
      %15 = arith.addf %12, %14 : vector<128x128xf32>
      %cst_14 = arith.constant 0.000000e+00 : f32
      %16 = vector.broadcast %cst_14 : f32 to vector<128x128xf32>
      %17 = arith.cmpf ogt, %15, %16 : vector<128x128xf32>
      %cst_15 = arith.constant 0.00999999977 : f32
      %18 = vector.broadcast %cst_15 : f32 to vector<128x128xf32>
      %19 = arith.mulf %18, %15 : vector<128x128xf32>
      %20 = arith.select %17, %15, %19 : vector<128x128xi1>, vector<128x128xf32>
      %c0_16 = arith.constant 0 : index
      %c0_17 = arith.constant 0 : index
      %21 = vector.load %arg6[%c0_16, %c0_17] : memref<128x128xf32, #tpu.memory_space<vmem>>, vector<128x128xf32>
      tpu.vector_store %arg6[%c0_16, %c0_17], %20 {strides = array<i32>} : memref<128x128xf32, #tpu.memory_space<vmem>>, vector<128x128xf32>,
    } else {
    }
    return
  }
  func.func @transform_0(%arg0: i32, %arg1: i32, %arg2: i32) -> (i32, i32) {
    %c0_i32 = arith.constant 0 : i32
    return %arg0, %arg2 : i32, i32
  }
  func.func @transform_1(%arg0: i32, %arg1: i32, %arg2: i32) -> (i32, i32) {
    %c0_i32 = arith.constant 0 : i32
    return %arg2, %arg1 : i32, i32
  }
  func.func @transform_2(%arg0: i32, %arg1: i32, %arg2: i32) -> (i32, i32) {
    %c0_i32 = arith.constant 0 : i32
    %c0_i32_0 = arith.constant 0 : i32
    return %c0_i32, %arg1 : i32, i32
  }
  func.func @transform_3(%arg0: i32, %arg1: i32, %arg2: i32) -> (i32, i32) {
    %c0_i32 = arith.constant 0 : i32
    return %arg0, %arg1 : i32, i32
  }
}

module attributes {stable_mosaic.version = 11 : i64} {
  func.func @_gdn_kernel(%arg0: i32, %arg1: memref<128x128xf32, #tpu.memory_space<vmem>>, %arg2: memref<128x128xf32, #tpu.memory_space<vmem>>, %arg3: memref<1x128xf32, #tpu.memory_space<vmem>>, %arg4: memref<128x128xf32, #tpu.memory_space<vmem>>, %arg5: memref<128x128xf32, #tpu.memory_space<vmem>>) attributes {dimension_semantics = [#tpu.dimension_semantics<parallel>], iteration_bounds = array<i64: 1>, scalar_prefetch = 0 : i64, scratch_operands = 0 : i64, tpu.core_type = #tpu.core_type<tc>, window_params = [{transform_indices = @transform_0, window_bounds = array<i64: 128, 128>}, {pipeline_mode = #tpu.pipeline_mode<synchronous>, transform_indices = @transform_1, window_bounds = array<i64: 128, 128>}, {pipeline_mode = #tpu.pipeline_mode<synchronous>, transform_indices = @transform_2, window_bounds = array<i64: 1, 128>}, {transform_indices = @transform_3, window_bounds = array<i64: 128, 128>}, {transform_indices = @transform_4, window_bounds = array<i64: 128, 128>}]} {
    %c0 = arith.constant 0 : index
    %c0_0 = arith.constant 0 : index
    %0 = vector.load %arg1[%c0, %c0_0] : memref<128x128xf32, #tpu.memory_space<vmem>>, vector<128x128xf32>
    %1 = arith.mulf %0, %0 : vector<128x128xf32>
    %c0_1 = arith.constant 0 : index
    %c0_2 = arith.constant 0 : index
    %2 = vector.load %arg2[%c0_1, %c0_2] : memref<128x128xf32, #tpu.memory_space<vmem>>, vector<128x128xf32>
    %cst = arith.constant dense<0.000000e+00> : vector<128x128xf32>
    %3 = tpu.matmul %1, %2, %cst {dimension_numbers = #tpu.dot_dimension_numbers<[1], [0], [0], [1], [0, 0, 1, 1], [], []>} : vector<128x128xf32>, vector<128x128xf32>, vector<128x128xf32> -> vector<128x128xf32>
    %c0_3 = arith.constant 0 : index
    %c0_4 = arith.constant 0 : index
    %4 = vector.load %arg3[%c0_3, %c0_4] : memref<1x128xf32, #tpu.memory_space<vmem>>, vector<1x128xf32>
    %5 = vector.broadcast %4 : vector<1x128xf32> to vector<128x128xf32>
    %6 = arith.addf %3, %5 : vector<128x128xf32>
    %7 = math.rsqrt %6 : vector<128x128xf32>
    %8 = arith.mulf %0, %7 : vector<128x128xf32>
    %c0_5 = arith.constant 0 : index
    %c0_6 = arith.constant 0 : index
    %9 = vector.load %arg4[%c0_5, %c0_6] : memref<128x128xf32, #tpu.memory_space<vmem>>, vector<128x128xf32>
    %10 = arith.addf %8, %9 : vector<128x128xf32>
    %c0_7 = arith.constant 0 : index
    %c0_8 = arith.constant 0 : index
    %11 = vector.load %arg5[%c0_7, %c0_8] : memref<128x128xf32, #tpu.memory_space<vmem>>, vector<128x128xf32>
    tpu.vector_store %arg5[%c0_7, %c0_8], %10 {strides = array<i32>} : memref<128x128xf32, #tpu.memory_space<vmem>>, vector<128x128xf32>,
    return
  }
  func.func @transform_0(%arg0: i32) -> (i32, i32) {
    %c0_i32 = arith.constant 0 : i32
    %c0_i32_0 = arith.constant 0 : i32
    return %arg0, %c0_i32 : i32, i32
  }
  func.func @transform_1(%arg0: i32) -> (i32, i32) {
    %c0_i32 = arith.constant 0 : i32
    %c0_i32_0 = arith.constant 0 : i32
    %c0_i32_1 = arith.constant 0 : i32
    return %c0_i32, %c0_i32_0 : i32, i32
  }
  func.func @transform_2(%arg0: i32) -> (i32, i32) {
    %c0_i32 = arith.constant 0 : i32
    %c0_i32_0 = arith.constant 0 : i32
    %c0_i32_1 = arith.constant 0 : i32
    return %c0_i32, %c0_i32_0 : i32, i32
  }
  func.func @transform_3(%arg0: i32) -> (i32, i32) {
    %c0_i32 = arith.constant 0 : i32
    %c0_i32_0 = arith.constant 0 : i32
    return %arg0, %c0_i32 : i32, i32
  }
  func.func @transform_4(%arg0: i32) -> (i32, i32) {
    %c0_i32 = arith.constant 0 : i32
    %c0_i32_0 = arith.constant 0 : i32
    return %arg0, %c0_i32 : i32, i32
  }
}

module attributes {stable_mosaic.version = 11 : i64} {
  func.func @_mm_kernel(%arg0: i32, %arg1: i32, %arg2: i32, %arg3: memref<128x128xbf16, #tpu.memory_space<vmem>>, %arg4: memref<128x128xbf16, #tpu.memory_space<vmem>>, %arg5: memref<1x128xf32, #tpu.memory_space<vmem>>, %arg6: memref<128x128xf32, #tpu.memory_space<vmem>>, %arg7: memref<128x128xf32, #tpu.memory_space<vmem>>, %arg8: memref<128x128xf32, #tpu.memory_space<vmem>>) attributes {dimension_semantics = [#tpu.dimension_semantics<parallel>, #tpu.dimension_semantics<parallel>, #tpu.dimension_semantics<arbitrary>], iteration_bounds = array<i64: 1, 1, 1>, scalar_prefetch = 0 : i64, scratch_operands = 1 : i64, tpu.core_type = #tpu.core_type<tc>, window_params = [{transform_indices = @transform_0, window_bounds = array<i64: 128, 128>}, {transform_indices = @transform_1, window_bounds = array<i64: 128, 128>}, {transform_indices = @transform_2, window_bounds = array<i64: 1, 128>}, {transform_indices = @transform_3, window_bounds = array<i64: 128, 128>}, {transform_indices = @transform_4, window_bounds = array<i64: 128, 128>}]} {
    %c0_i32 = arith.constant 0 : i32
    %0 = arith.cmpi eq, %arg2, %c0_i32 : i32
    %1 = arith.extui %0 : i1 to i32
    %c0_i32_0 = arith.constant 0 : i32
    %2 = arith.cmpi ne, %1, %c0_i32_0 : i32
    scf.if %2 {
      %cst_10 = arith.constant 0.000000e+00 : f32
      %12 = vector.broadcast %cst_10 : f32 to vector<128x128xf32>
      %c0_11 = arith.constant 0 : index
      %c0_12 = arith.constant 0 : index
      %13 = vector.load %arg8[%c0_11, %c0_12] : memref<128x128xf32, #tpu.memory_space<vmem>>, vector<128x128xf32>
      tpu.vector_store %arg8[%c0_11, %c0_12], %12 {strides = array<i32>} : memref<128x128xf32, #tpu.memory_space<vmem>>, vector<128x128xf32>,
    } else {
    }
    %c0 = arith.constant 0 : index
    %c0_1 = arith.constant 0 : index
    %3 = vector.load %arg8[%c0, %c0_1] : memref<128x128xf32, #tpu.memory_space<vmem>>, vector<128x128xf32>
    %c0_2 = arith.constant 0 : index
    %c0_3 = arith.constant 0 : index
    %4 = vector.load %arg3[%c0_2, %c0_3] : memref<128x128xbf16, #tpu.memory_space<vmem>>, vector<128x128xbf16>
    %c0_4 = arith.constant 0 : index
    %c0_5 = arith.constant 0 : index
    %5 = vector.load %arg4[%c0_4, %c0_5] : memref<128x128xbf16, #tpu.memory_space<vmem>>, vector<128x128xbf16>
    %cst = arith.constant dense<0.000000e+00> : vector<128x128xf32>
    %6 = tpu.matmul %4, %5, %cst {dimension_numbers = #tpu.dot_dimension_numbers<[1], [0], [0], [1], [0, 0, 1, 1], [], []>} : vector<128x128xbf16>, vector<128x128xbf16>, vector<128x128xf32> -> vector<128x128xf32>
    %7 = arith.addf %3, %6 : vector<128x128xf32>
    %c0_6 = arith.constant 0 : index
    %c0_7 = arith.constant 0 : index
    %8 = vector.load %arg8[%c0_6, %c0_7] : memref<128x128xf32, #tpu.memory_space<vmem>>, vector<128x128xf32>
    tpu.vector_store %arg8[%c0_6, %c0_7], %7 {strides = array<i32>} : memref<128x128xf32, #tpu.memory_space<vmem>>, vector<128x128xf32>,
    %c0_i32_8 = arith.constant 0 : i32
    %9 = arith.cmpi eq, %arg2, %c0_i32_8 : i32
    %10 = arith.extui %9 : i1 to i32
    %c0_i32_9 = arith.constant 0 : i32
    %11 = arith.cmpi ne, %10, %c0_i32_9 : i32
    scf.if %11 {
      %c0_10 = arith.constant 0 : index
      %c0_11 = arith.constant 0 : index
      %12 = vector.load %arg8[%c0_10, %c0_11] : memref<128x128xf32, #tpu.memory_space<vmem>>, vector<128x128xf32>
      %c0_12 = arith.constant 0 : index
      %c0_13 = arith.constant 0 : index
      %13 = vector.load %arg5[%c0_12, %c0_13] : memref<1x128xf32, #tpu.memory_space<vmem>>, vector<1x128xf32>
      %14 = vector.broadcast %13 : vector<1x128xf32> to vector<128x128xf32>
      %15 = arith.addf %12, %14 : vector<128x128xf32>
      %cst_14 = arith.constant 0.000000e+00 : f32
      %16 = vector.broadcast %cst_14 : f32 to vector<128x128xf32>
      %17 = arith.cmpf ogt, %15, %16 : vector<128x128xf32>
      %cst_15 = arith.constant 0.00999999977 : f32
      %18 = vector.broadcast %cst_15 : f32 to vector<128x128xf32>
      %19 = arith.mulf %18, %15 : vector<128x128xf32>
      %20 = arith.select %17, %15, %19 : vector<128x128xi1>, vector<128x128xf32>
      %c0_16 = arith.constant 0 : index
      %c0_17 = arith.constant 0 : index
      %21 = vector.load %arg6[%c0_16, %c0_17] : memref<128x128xf32, #tpu.memory_space<vmem>>, vector<128x128xf32>
      %22 = arith.addf %20, %21 : vector<128x128xf32>
      %c0_18 = arith.constant 0 : index
      %c0_19 = arith.constant 0 : index
      %23 = vector.load %arg7[%c0_18, %c0_19] : memref<128x128xf32, #tpu.memory_space<vmem>>, vector<128x128xf32>
      tpu.vector_store %arg7[%c0_18, %c0_19], %22 {strides = array<i32>} : memref<128x128xf32, #tpu.memory_space<vmem>>, vector<128x128xf32>,
    } else {
    }
    return
  }
  func.func @transform_0(%arg0: i32, %arg1: i32, %arg2: i32) -> (i32, i32) {
    %c0_i32 = arith.constant 0 : i32
    return %arg0, %arg2 : i32, i32
  }
  func.func @transform_1(%arg0: i32, %arg1: i32, %arg2: i32) -> (i32, i32) {
    %c0_i32 = arith.constant 0 : i32
    return %arg2, %arg1 : i32, i32
  }
  func.func @transform_2(%arg0: i32, %arg1: i32, %arg2: i32) -> (i32, i32) {
    %c0_i32 = arith.constant 0 : i32
    %c0_i32_0 = arith.constant 0 : i32
    return %c0_i32, %arg1 : i32, i32
  }
  func.func @transform_3(%arg0: i32, %arg1: i32, %arg2: i32) -> (i32, i32) {
    %c0_i32 = arith.constant 0 : i32
    return %arg0, %arg1 : i32, i32
  }
  func.func @transform_4(%arg0: i32, %arg1: i32, %arg2: i32) -> (i32, i32) {
    %c0_i32 = arith.constant 0 : i32
    return %arg0, %arg1 : i32, i32
  }
}

module attributes {stable_mosaic.version = 11 : i64} {
  func.func @_mm_kernel(%arg0: i32, %arg1: i32, %arg2: i32, %arg3: memref<32x128xbf16, #tpu.memory_space<vmem>>, %arg4: memref<128x128xbf16, #tpu.memory_space<vmem>>, %arg5: memref<1x128xf32, #tpu.memory_space<vmem>>, %arg6: memref<32x128xf32, #tpu.memory_space<vmem>>, %arg7: memref<32x128xf32, #tpu.memory_space<vmem>>) attributes {dimension_semantics = [#tpu.dimension_semantics<parallel>, #tpu.dimension_semantics<parallel>, #tpu.dimension_semantics<arbitrary>], iteration_bounds = array<i64: 1, 1, 1>, scalar_prefetch = 0 : i64, scratch_operands = 1 : i64, tpu.core_type = #tpu.core_type<tc>, window_params = [{transform_indices = @transform_0, window_bounds = array<i64: 32, 128>}, {transform_indices = @transform_1, window_bounds = array<i64: 128, 128>}, {transform_indices = @transform_2, window_bounds = array<i64: 1, 128>}, {transform_indices = @transform_3, window_bounds = array<i64: 32, 128>}]} {
    %c0_i32 = arith.constant 0 : i32
    %0 = arith.cmpi eq, %arg2, %c0_i32 : i32
    %1 = arith.extui %0 : i1 to i32
    %c0_i32_0 = arith.constant 0 : i32
    %2 = arith.cmpi ne, %1, %c0_i32_0 : i32
    scf.if %2 {
      %cst_10 = arith.constant 0.000000e+00 : f32
      %12 = vector.broadcast %cst_10 : f32 to vector<32x128xf32>
      %c0_11 = arith.constant 0 : index
      %c0_12 = arith.constant 0 : index
      %13 = vector.load %arg7[%c0_11, %c0_12] : memref<32x128xf32, #tpu.memory_space<vmem>>, vector<32x128xf32>
      tpu.vector_store %arg7[%c0_11, %c0_12], %12 {strides = array<i32>} : memref<32x128xf32, #tpu.memory_space<vmem>>, vector<32x128xf32>,
    } else {
    }
    %c0 = arith.constant 0 : index
    %c0_1 = arith.constant 0 : index
    %3 = vector.load %arg7[%c0, %c0_1] : memref<32x128xf32, #tpu.memory_space<vmem>>, vector<32x128xf32>
    %c0_2 = arith.constant 0 : index
    %c0_3 = arith.constant 0 : index
    %4 = vector.load %arg3[%c0_2, %c0_3] : memref<32x128xbf16, #tpu.memory_space<vmem>>, vector<32x128xbf16>
    %c0_4 = arith.constant 0 : index
    %c0_5 = arith.constant 0 : index
    %5 = vector.load %arg4[%c0_4, %c0_5] : memref<128x128xbf16, #tpu.memory_space<vmem>>, vector<128x128xbf16>
    %cst = arith.constant dense<0.000000e+00> : vector<32x128xf32>
    %6 = tpu.matmul %4, %5, %cst {dimension_numbers = #tpu.dot_dimension_numbers<[1], [0], [0], [1], [0, 0, 1, 1], [], []>} : vector<32x128xbf16>, vector<128x128xbf16>, vector<32x128xf32> -> vector<32x128xf32>
    %7 = arith.addf %3, %6 : vector<32x128xf32>
    %c0_6 = arith.constant 0 : index
    %c0_7 = arith.constant 0 : index
    %8 = vector.load %arg7[%c0_6, %c0_7] : memref<32x128xf32, #tpu.memory_space<vmem>>, vector<32x128xf32>
    tpu.vector_store %arg7[%c0_6, %c0_7], %7 {strides = array<i32>} : memref<32x128xf32, #tpu.memory_space<vmem>>, vector<32x128xf32>,
    %c0_i32_8 = arith.constant 0 : i32
    %9 = arith.cmpi eq, %arg2, %c0_i32_8 : i32
    %10 = arith.extui %9 : i1 to i32
    %c0_i32_9 = arith.constant 0 : i32
    %11 = arith.cmpi ne, %10, %c0_i32_9 : i32
    scf.if %11 {
      %c0_10 = arith.constant 0 : index
      %c0_11 = arith.constant 0 : index
      %12 = vector.load %arg7[%c0_10, %c0_11] : memref<32x128xf32, #tpu.memory_space<vmem>>, vector<32x128xf32>
      %c0_12 = arith.constant 0 : index
      %c0_13 = arith.constant 0 : index
      %13 = vector.load %arg5[%c0_12, %c0_13] : memref<1x128xf32, #tpu.memory_space<vmem>>, vector<1x128xf32>
      %14 = vector.broadcast %13 : vector<1x128xf32> to vector<32x128xf32>
      %15 = arith.addf %12, %14 : vector<32x128xf32>
      %c0_14 = arith.constant 0 : index
      %c0_15 = arith.constant 0 : index
      %16 = vector.load %arg6[%c0_14, %c0_15] : memref<32x128xf32, #tpu.memory_space<vmem>>, vector<32x128xf32>
      tpu.vector_store %arg6[%c0_14, %c0_15], %15 {strides = array<i32>} : memref<32x128xf32, #tpu.memory_space<vmem>>, vector<32x128xf32>,
    } else {
    }
    return
  }
  func.func @transform_0(%arg0: i32, %arg1: i32, %arg2: i32) -> (i32, i32) {
    %c0_i32 = arith.constant 0 : i32
    return %arg0, %arg2 : i32, i32
  }
  func.func @transform_1(%arg0: i32, %arg1: i32, %arg2: i32) -> (i32, i32) {
    %c0_i32 = arith.constant 0 : i32
    return %arg2, %arg1 : i32, i32
  }
  func.func @transform_2(%arg0: i32, %arg1: i32, %arg2: i32) -> (i32, i32) {
    %c0_i32 = arith.constant 0 : i32
    %c0_i32_0 = arith.constant 0 : i32
    return %c0_i32, %arg1 : i32, i32
  }
  func.func @transform_3(%arg0: i32, %arg1: i32, %arg2: i32) -> (i32, i32) {
    %c0_i32 = arith.constant 0 : i32
    return %arg0, %arg1 : i32, i32
  }
}

module attributes {stable_mosaic.version = 11 : i64} {
  func.func @_mm_kernel(%arg0: i32, %arg1: i32, %arg2: i32, %arg3: memref<32x128xbf16, #tpu.memory_space<vmem>>, %arg4: memref<128x128xbf16, #tpu.memory_space<vmem>>, %arg5: memref<1x128xf32, #tpu.memory_space<vmem>>, %arg6: memref<32x128xf32, #tpu.memory_space<vmem>>, %arg7: memref<32x128xf32, #tpu.memory_space<vmem>>) attributes {dimension_semantics = [#tpu.dimension_semantics<parallel>, #tpu.dimension_semantics<parallel>, #tpu.dimension_semantics<arbitrary>], iteration_bounds = array<i64: 1, 1, 1>, scalar_prefetch = 0 : i64, scratch_operands = 1 : i64, tpu.core_type = #tpu.core_type<tc>, window_params = [{transform_indices = @transform_0, window_bounds = array<i64: 32, 128>}, {transform_indices = @transform_1, window_bounds = array<i64: 128, 128>}, {transform_indices = @transform_2, window_bounds = array<i64: 1, 128>}, {transform_indices = @transform_3, window_bounds = array<i64: 32, 128>}]} {
    %c0_i32 = arith.constant 0 : i32
    %0 = arith.cmpi eq, %arg2, %c0_i32 : i32
    %1 = arith.extui %0 : i1 to i32
    %c0_i32_0 = arith.constant 0 : i32
    %2 = arith.cmpi ne, %1, %c0_i32_0 : i32
    scf.if %2 {
      %cst_10 = arith.constant 0.000000e+00 : f32
      %12 = vector.broadcast %cst_10 : f32 to vector<32x128xf32>
      %c0_11 = arith.constant 0 : index
      %c0_12 = arith.constant 0 : index
      %13 = vector.load %arg7[%c0_11, %c0_12] : memref<32x128xf32, #tpu.memory_space<vmem>>, vector<32x128xf32>
      tpu.vector_store %arg7[%c0_11, %c0_12], %12 {strides = array<i32>} : memref<32x128xf32, #tpu.memory_space<vmem>>, vector<32x128xf32>,
    } else {
    }
    %c0 = arith.constant 0 : index
    %c0_1 = arith.constant 0 : index
    %3 = vector.load %arg7[%c0, %c0_1] : memref<32x128xf32, #tpu.memory_space<vmem>>, vector<32x128xf32>
    %c0_2 = arith.constant 0 : index
    %c0_3 = arith.constant 0 : index
    %4 = vector.load %arg3[%c0_2, %c0_3] : memref<32x128xbf16, #tpu.memory_space<vmem>>, vector<32x128xbf16>
    %c0_4 = arith.constant 0 : index
    %c0_5 = arith.constant 0 : index
    %5 = vector.load %arg4[%c0_4, %c0_5] : memref<128x128xbf16, #tpu.memory_space<vmem>>, vector<128x128xbf16>
    %cst = arith.constant dense<0.000000e+00> : vector<32x128xf32>
    %6 = tpu.matmul %4, %5, %cst {dimension_numbers = #tpu.dot_dimension_numbers<[1], [0], [0], [1], [0, 0, 1, 1], [], []>} : vector<32x128xbf16>, vector<128x128xbf16>, vector<32x128xf32> -> vector<32x128xf32>
    %7 = arith.addf %3, %6 : vector<32x128xf32>
    %c0_6 = arith.constant 0 : index
    %c0_7 = arith.constant 0 : index
    %8 = vector.load %arg7[%c0_6, %c0_7] : memref<32x128xf32, #tpu.memory_space<vmem>>, vector<32x128xf32>
    tpu.vector_store %arg7[%c0_6, %c0_7], %7 {strides = array<i32>} : memref<32x128xf32, #tpu.memory_space<vmem>>, vector<32x128xf32>,
    %c0_i32_8 = arith.constant 0 : i32
    %9 = arith.cmpi eq, %arg2, %c0_i32_8 : i32
    %10 = arith.extui %9 : i1 to i32
    %c0_i32_9 = arith.constant 0 : i32
    %11 = arith.cmpi ne, %10, %c0_i32_9 : i32
    scf.if %11 {
      %c0_10 = arith.constant 0 : index
      %c0_11 = arith.constant 0 : index
      %12 = vector.load %arg7[%c0_10, %c0_11] : memref<32x128xf32, #tpu.memory_space<vmem>>, vector<32x128xf32>
      %c0_12 = arith.constant 0 : index
      %c0_13 = arith.constant 0 : index
      %13 = vector.load %arg5[%c0_12, %c0_13] : memref<1x128xf32, #tpu.memory_space<vmem>>, vector<1x128xf32>
      %14 = vector.broadcast %13 : vector<1x128xf32> to vector<32x128xf32>
      %15 = arith.addf %12, %14 : vector<32x128xf32>
      %cst_14 = arith.constant 0.000000e+00 : f32
      %16 = vector.broadcast %cst_14 : f32 to vector<32x128xf32>
      %17 = arith.cmpf ogt, %15, %16 : vector<32x128xf32>
      %cst_15 = arith.constant 0.00999999977 : f32
      %18 = vector.broadcast %cst_15 : f32 to vector<32x128xf32>
      %19 = arith.mulf %18, %15 : vector<32x128xf32>
      %20 = arith.select %17, %15, %19 : vector<32x128xi1>, vector<32x128xf32>
      %c0_16 = arith.constant 0 : index
      %c0_17 = arith.constant 0 : index
      %21 = vector.load %arg6[%c0_16, %c0_17] : memref<32x128xf32, #tpu.memory_space<vmem>>, vector<32x128xf32>
      tpu.vector_store %arg6[%c0_16, %c0_17], %20 {strides = array<i32>} : memref<32x128xf32, #tpu.memory_space<vmem>>, vector<32x128xf32>,
    } else {
    }
    return
  }
  func.func @transform_0(%arg0: i32, %arg1: i32, %arg2: i32) -> (i32, i32) {
    %c0_i32 = arith.constant 0 : i32
    return %arg0, %arg2 : i32, i32
  }
  func.func @transform_1(%arg0: i32, %arg1: i32, %arg2: i32) -> (i32, i32) {
    %c0_i32 = arith.constant 0 : i32
    return %arg2, %arg1 : i32, i32
  }
  func.func @transform_2(%arg0: i32, %arg1: i32, %arg2: i32) -> (i32, i32) {
    %c0_i32 = arith.constant 0 : i32
    %c0_i32_0 = arith.constant 0 : i32
    return %c0_i32, %arg1 : i32, i32
  }
  func.func @transform_3(%arg0: i32, %arg1: i32, %arg2: i32) -> (i32, i32) {
    %c0_i32 = arith.constant 0 : i32
    return %arg0, %arg1 : i32, i32
  }
}

module attributes {stable_mosaic.version = 11 : i64} {
  func.func @_gdn_kernel(%arg0: i32, %arg1: memref<32x128xf32, #tpu.memory_space<vmem>>, %arg2: memref<128x128xf32, #tpu.memory_space<vmem>>, %arg3: memref<1x128xf32, #tpu.memory_space<vmem>>, %arg4: memref<32x128xf32, #tpu.memory_space<vmem>>, %arg5: memref<32x128xf32, #tpu.memory_space<vmem>>) attributes {dimension_semantics = [#tpu.dimension_semantics<parallel>], iteration_bounds = array<i64: 1>, scalar_prefetch = 0 : i64, scratch_operands = 0 : i64, tpu.core_type = #tpu.core_type<tc>, window_params = [{transform_indices = @transform_0, window_bounds = array<i64: 32, 128>}, {pipeline_mode = #tpu.pipeline_mode<synchronous>, transform_indices = @transform_1, window_bounds = array<i64: 128, 128>}, {pipeline_mode = #tpu.pipeline_mode<synchronous>, transform_indices = @transform_2, window_bounds = array<i64: 1, 128>}, {transform_indices = @transform_3, window_bounds = array<i64: 32, 128>}, {transform_indices = @transform_4, window_bounds = array<i64: 32, 128>}]} {
    %c0 = arith.constant 0 : index
    %c0_0 = arith.constant 0 : index
    %0 = vector.load %arg1[%c0, %c0_0] : memref<32x128xf32, #tpu.memory_space<vmem>>, vector<32x128xf32>
    %1 = arith.mulf %0, %0 : vector<32x128xf32>
    %c0_1 = arith.constant 0 : index
    %c0_2 = arith.constant 0 : index
    %2 = vector.load %arg2[%c0_1, %c0_2] : memref<128x128xf32, #tpu.memory_space<vmem>>, vector<128x128xf32>
    %cst = arith.constant dense<0.000000e+00> : vector<32x128xf32>
    %3 = tpu.matmul %1, %2, %cst {dimension_numbers = #tpu.dot_dimension_numbers<[1], [0], [0], [1], [0, 0, 1, 1], [], []>} : vector<32x128xf32>, vector<128x128xf32>, vector<32x128xf32> -> vector<32x128xf32>
    %c0_3 = arith.constant 0 : index
    %c0_4 = arith.constant 0 : index
    %4 = vector.load %arg3[%c0_3, %c0_4] : memref<1x128xf32, #tpu.memory_space<vmem>>, vector<1x128xf32>
    %5 = vector.broadcast %4 : vector<1x128xf32> to vector<32x128xf32>
    %6 = arith.addf %3, %5 : vector<32x128xf32>
    %7 = math.rsqrt %6 : vector<32x128xf32>
    %8 = arith.mulf %0, %7 : vector<32x128xf32>
    %c0_5 = arith.constant 0 : index
    %c0_6 = arith.constant 0 : index
    %9 = vector.load %arg4[%c0_5, %c0_6] : memref<32x128xf32, #tpu.memory_space<vmem>>, vector<32x128xf32>
    %10 = arith.addf %8, %9 : vector<32x128xf32>
    %c0_7 = arith.constant 0 : index
    %c0_8 = arith.constant 0 : index
    %11 = vector.load %arg5[%c0_7, %c0_8] : memref<32x128xf32, #tpu.memory_space<vmem>>, vector<32x128xf32>
    tpu.vector_store %arg5[%c0_7, %c0_8], %10 {strides = array<i32>} : memref<32x128xf32, #tpu.memory_space<vmem>>, vector<32x128xf32>,
    return
  }
  func.func @transform_0(%arg0: i32) -> (i32, i32) {
    %c0_i32 = arith.constant 0 : i32
    %c0_i32_0 = arith.constant 0 : i32
    return %arg0, %c0_i32 : i32, i32
  }
  func.func @transform_1(%arg0: i32) -> (i32, i32) {
    %c0_i32 = arith.constant 0 : i32
    %c0_i32_0 = arith.constant 0 : i32
    %c0_i32_1 = arith.constant 0 : i32
    return %c0_i32, %c0_i32_0 : i32, i32
  }
  func.func @transform_2(%arg0: i32) -> (i32, i32) {
    %c0_i32 = arith.constant 0 : i32
    %c0_i32_0 = arith.constant 0 : i32
    %c0_i32_1 = arith.constant 0 : i32
    return %c0_i32, %c0_i32_0 : i32, i32
  }
  func.func @transform_3(%arg0: i32) -> (i32, i32) {
    %c0_i32 = arith.constant 0 : i32
    %c0_i32_0 = arith.constant 0 : i32
    return %arg0, %c0_i32 : i32, i32
  }
  func.func @transform_4(%arg0: i32) -> (i32, i32) {
    %c0_i32 = arith.constant 0 : i32
    %c0_i32_0 = arith.constant 0 : i32
    return %arg0, %c0_i32 : i32, i32
  }
}

module attributes {stable_mosaic.version = 11 : i64} {
  func.func @_mm_kernel(%arg0: i32, %arg1: i32, %arg2: i32, %arg3: memref<32x128xbf16, #tpu.memory_space<vmem>>, %arg4: memref<128x128xbf16, #tpu.memory_space<vmem>>, %arg5: memref<1x128xf32, #tpu.memory_space<vmem>>, %arg6: memref<32x128xf32, #tpu.memory_space<vmem>>, %arg7: memref<32x128xf32, #tpu.memory_space<vmem>>) attributes {dimension_semantics = [#tpu.dimension_semantics<parallel>, #tpu.dimension_semantics<parallel>, #tpu.dimension_semantics<arbitrary>], iteration_bounds = array<i64: 1, 1, 1>, scalar_prefetch = 0 : i64, scratch_operands = 1 : i64, tpu.core_type = #tpu.core_type<tc>, window_params = [{transform_indices = @transform_0, window_bounds = array<i64: 32, 128>}, {transform_indices = @transform_1, window_bounds = array<i64: 128, 128>}, {transform_indices = @transform_2, window_bounds = array<i64: 1, 128>}, {transform_indices = @transform_3, window_bounds = array<i64: 32, 128>}]} {
    %c0_i32 = arith.constant 0 : i32
    %0 = arith.cmpi eq, %arg2, %c0_i32 : i32
    %1 = arith.extui %0 : i1 to i32
    %c0_i32_0 = arith.constant 0 : i32
    %2 = arith.cmpi ne, %1, %c0_i32_0 : i32
    scf.if %2 {
      %cst_10 = arith.constant 0.000000e+00 : f32
      %12 = vector.broadcast %cst_10 : f32 to vector<32x128xf32>
      %c0_11 = arith.constant 0 : index
      %c0_12 = arith.constant 0 : index
      %13 = vector.load %arg7[%c0_11, %c0_12] : memref<32x128xf32, #tpu.memory_space<vmem>>, vector<32x128xf32>
      tpu.vector_store %arg7[%c0_11, %c0_12], %12 {strides = array<i32>} : memref<32x128xf32, #tpu.memory_space<vmem>>, vector<32x128xf32>,
    } else {
    }
    %c0 = arith.constant 0 : index
    %c0_1 = arith.constant 0 : index
    %3 = vector.load %arg7[%c0, %c0_1] : memref<32x128xf32, #tpu.memory_space<vmem>>, vector<32x128xf32>
    %c0_2 = arith.constant 0 : index
    %c0_3 = arith.constant 0 : index
    %4 = vector.load %arg3[%c0_2, %c0_3] : memref<32x128xbf16, #tpu.memory_space<vmem>>, vector<32x128xbf16>
    %c0_4 = arith.constant 0 : index
    %c0_5 = arith.constant 0 : index
    %5 = vector.load %arg4[%c0_4, %c0_5] : memref<128x128xbf16, #tpu.memory_space<vmem>>, vector<128x128xbf16>
    %cst = arith.constant dense<0.000000e+00> : vector<32x128xf32>
    %6 = tpu.matmul %4, %5, %cst {dimension_numbers = #tpu.dot_dimension_numbers<[1], [0], [0], [1], [0, 0, 1, 1], [], []>} : vector<32x128xbf16>, vector<128x128xbf16>, vector<32x128xf32> -> vector<32x128xf32>
    %7 = arith.addf %3, %6 : vector<32x128xf32>
    %c0_6 = arith.constant 0 : index
    %c0_7 = arith.constant 0 : index
    %8 = vector.load %arg7[%c0_6, %c0_7] : memref<32x128xf32, #tpu.memory_space<vmem>>, vector<32x128xf32>
    tpu.vector_store %arg7[%c0_6, %c0_7], %7 {strides = array<i32>} : memref<32x128xf32, #tpu.memory_space<vmem>>, vector<32x128xf32>,
    %c0_i32_8 = arith.constant 0 : i32
    %9 = arith.cmpi eq, %arg2, %c0_i32_8 : i32
    %10 = arith.extui %9 : i1 to i32
    %c0_i32_9 = arith.constant 0 : i32
    %11 = arith.cmpi ne, %10, %c0_i32_9 : i32
    scf.if %11 {
      %c0_10 = arith.constant 0 : index
      %c0_11 = arith.constant 0 : index
      %12 = vector.load %arg7[%c0_10, %c0_11] : memref<32x128xf32, #tpu.memory_space<vmem>>, vector<32x128xf32>
      %c0_12 = arith.constant 0 : index
      %c0_13 = arith.constant 0 : index
      %13 = vector.load %arg5[%c0_12, %c0_13] : memref<1x128xf32, #tpu.memory_space<vmem>>, vector<1x128xf32>
      %14 = vector.broadcast %13 : vector<1x128xf32> to vector<32x128xf32>
      %15 = arith.addf %12, %14 : vector<32x128xf32>
      %cst_14 = arith.constant 0.000000e+00 : f32
      %16 = vector.broadcast %cst_14 : f32 to vector<32x128xf32>
      %17 = arith.maximumf %15, %16 : vector<32x128xf32>
      %c0_15 = arith.constant 0 : index
      %c0_16 = arith.constant 0 : index
      %18 = vector.load %arg6[%c0_15, %c0_16] : memref<32x128xf32, #tpu.memory_space<vmem>>, vector<32x128xf32>
      tpu.vector_store %arg6[%c0_15, %c0_16], %17 {strides = array<i32>} : memref<32x128xf32, #tpu.memory_space<vmem>>, vector<32x128xf32>,
    } else {
    }
    return
  }
  func.func @transform_0(%arg0: i32, %arg1: i32, %arg2: i32) -> (i32, i32) {
    %c0_i32 = arith.constant 0 : i32
    return %arg0, %arg2 : i32, i32
  }
  func.func @transform_1(%arg0: i32, %arg1: i32, %arg2: i32) -> (i32, i32) {
    %c0_i32 = arith.constant 0 : i32
    return %arg2, %arg1 : i32, i32
  }
  func.func @transform_2(%arg0: i32, %arg1: i32, %arg2: i32) -> (i32, i32) {
    %c0_i32 = arith.constant 0 : i32
    %c0_i32_0 = arith.constant 0 : i32
    return %c0_i32, %arg1 : i32, i32
  }
  func.func @transform_3(%arg0: i32, %arg1: i32, %arg2: i32) -> (i32, i32) {
    %c0_i32 = arith.constant 0 : i32
    return %arg0, %arg1 : i32, i32
  }
}

module attributes {stable_mosaic.version = 11 : i64} {
  func.func @_mm_kernel(%arg0: i32, %arg1: i32, %arg2: i32, %arg3: memref<32x128xbf16, #tpu.memory_space<vmem>>, %arg4: memref<128x128xbf16, #tpu.memory_space<vmem>>, %arg5: memref<1x128xf32, #tpu.memory_space<vmem>>, %arg6: memref<32x128xf32, #tpu.memory_space<vmem>>, %arg7: memref<32x128xf32, #tpu.memory_space<vmem>>, %arg8: memref<32x128xf32, #tpu.memory_space<vmem>>, %arg9: memref<32x128xf32, #tpu.memory_space<vmem>>) attributes {dimension_semantics = [#tpu.dimension_semantics<parallel>, #tpu.dimension_semantics<parallel>, #tpu.dimension_semantics<arbitrary>], iteration_bounds = array<i64: 1, 1, 1>, scalar_prefetch = 0 : i64, scratch_operands = 1 : i64, tpu.core_type = #tpu.core_type<tc>, window_params = [{transform_indices = @transform_0, window_bounds = array<i64: 32, 128>}, {transform_indices = @transform_1, window_bounds = array<i64: 128, 128>}, {transform_indices = @transform_2, window_bounds = array<i64: 1, 128>}, {transform_indices = @transform_3, window_bounds = array<i64: 32, 128>}, {transform_indices = @transform_4, window_bounds = array<i64: 32, 128>}, {transform_indices = @transform_5, window_bounds = array<i64: 32, 128>}]} {
    %c0_i32 = arith.constant 0 : i32
    %0 = arith.cmpi eq, %arg2, %c0_i32 : i32
    %1 = arith.extui %0 : i1 to i32
    %c0_i32_0 = arith.constant 0 : i32
    %2 = arith.cmpi ne, %1, %c0_i32_0 : i32
    scf.if %2 {
      %cst_10 = arith.constant 0.000000e+00 : f32
      %12 = vector.broadcast %cst_10 : f32 to vector<32x128xf32>
      %c0_11 = arith.constant 0 : index
      %c0_12 = arith.constant 0 : index
      %13 = vector.load %arg9[%c0_11, %c0_12] : memref<32x128xf32, #tpu.memory_space<vmem>>, vector<32x128xf32>
      tpu.vector_store %arg9[%c0_11, %c0_12], %12 {strides = array<i32>} : memref<32x128xf32, #tpu.memory_space<vmem>>, vector<32x128xf32>,
    } else {
    }
    %c0 = arith.constant 0 : index
    %c0_1 = arith.constant 0 : index
    %3 = vector.load %arg9[%c0, %c0_1] : memref<32x128xf32, #tpu.memory_space<vmem>>, vector<32x128xf32>
    %c0_2 = arith.constant 0 : index
    %c0_3 = arith.constant 0 : index
    %4 = vector.load %arg3[%c0_2, %c0_3] : memref<32x128xbf16, #tpu.memory_space<vmem>>, vector<32x128xbf16>
    %c0_4 = arith.constant 0 : index
    %c0_5 = arith.constant 0 : index
    %5 = vector.load %arg4[%c0_4, %c0_5] : memref<128x128xbf16, #tpu.memory_space<vmem>>, vector<128x128xbf16>
    %cst = arith.constant dense<0.000000e+00> : vector<32x128xf32>
    %6 = tpu.matmul %4, %5, %cst {dimension_numbers = #tpu.dot_dimension_numbers<[1], [0], [0], [1], [0, 0, 1, 1], [], []>} : vector<32x128xbf16>, vector<128x128xbf16>, vector<32x128xf32> -> vector<32x128xf32>
    %7 = arith.addf %3, %6 : vector<32x128xf32>
    %c0_6 = arith.constant 0 : index
    %c0_7 = arith.constant 0 : index
    %8 = vector.load %arg9[%c0_6, %c0_7] : memref<32x128xf32, #tpu.memory_space<vmem>>, vector<32x128xf32>
    tpu.vector_store %arg9[%c0_6, %c0_7], %7 {strides = array<i32>} : memref<32x128xf32, #tpu.memory_space<vmem>>, vector<32x128xf32>,
    %c0_i32_8 = arith.constant 0 : i32
    %9 = arith.cmpi eq, %arg2, %c0_i32_8 : i32
    %10 = arith.extui %9 : i1 to i32
    %c0_i32_9 = arith.constant 0 : i32
    %11 = arith.cmpi ne, %10, %c0_i32_9 : i32
    scf.if %11 {
      %c0_10 = arith.constant 0 : index
      %c0_11 = arith.constant 0 : index
      %12 = vector.load %arg9[%c0_10, %c0_11] : memref<32x128xf32, #tpu.memory_space<vmem>>, vector<32x128xf32>
      %c0_12 = arith.constant 0 : index
      %c0_13 = arith.constant 0 : index
      %13 = vector.load %arg5[%c0_12, %c0_13] : memref<1x128xf32, #tpu.memory_space<vmem>>, vector<1x128xf32>
      %14 = vector.broadcast %13 : vector<1x128xf32> to vector<32x128xf32>
      %15 = arith.addf %12, %14 : vector<32x128xf32>
      %c0_14 = arith.constant 0 : index
      %c0_15 = arith.constant 0 : index
      %16 = vector.load %arg6[%c0_14, %c0_15] : memref<32x128xf32, #tpu.memory_space<vmem>>, vector<32x128xf32>
      %17 = arith.negf %15 : vector<32x128xf32>
      %18 = math.exp %17 : vector<32x128xf32>
      %cst_16 = arith.constant 1.000000e+00 : f32
      %19 = vector.broadcast %cst_16 : f32 to vector<32x128xf32>
      %20 = arith.addf %19, %18 : vector<32x128xf32>
      %21 = arith.divf %19, %20 : vector<32x128xf32>
      %22 = arith.mulf %16, %21 : vector<32x128xf32>
      %c0_17 = arith.constant 0 : index
      %c0_18 = arith.constant 0 : index
      %23 = vector.load %arg7[%c0_17, %c0_18] : memref<32x128xf32, #tpu.memory_space<vmem>>, vector<32x128xf32>
      %24 = arith.addf %22, %23 : vector<32x128xf32>
      %c0_19 = arith.constant 0 : index
      %c0_20 = arith.constant 0 : index
      %25 = vector.load %arg8[%c0_19, %c0_20] : memref<32x128xf32, #tpu.memory_space<vmem>>, vector<32x128xf32>
      tpu.vector_store %arg8[%c0_19, %c0_20], %24 {strides = array<i32>} : memref<32x128xf32, #tpu.memory_space<vmem>>, vector<32x128xf32>,
    } else {
    }
    return
  }
  func.func @transform_0(%arg0: i32, %arg1: i32, %arg2: i32) -> (i32, i32) {
    %c0_i32 = arith.constant 0 : i32
    return %arg0, %arg2 : i32, i32
  }
  func.func @transform_1(%arg0: i32, %arg1: i32, %arg2: i32) -> (i32, i32) {
    %c0_i32 = arith.constant 0 : i32
    return %arg2, %arg1 : i32, i32
  }
  func.func @transform_2(%arg0: i32, %arg1: i32, %arg2: i32) -> (i32, i32) {
    %c0_i32 = arith.constant 0 : i32
    %c0_i32_0 = arith.constant 0 : i32
    return %c0_i32, %arg1 : i32, i32
  }
  func.func @transform_3(%arg0: i32, %arg1: i32, %arg2: i32) -> (i32, i32) {
    %c0_i32 = arith.constant 0 : i32
    return %arg0, %arg1 : i32, i32
  }
  func.func @transform_4(%arg0: i32, %arg1: i32, %arg2: i32) -> (i32, i32) {
    %c0_i32 = arith.constant 0 : i32
    return %arg0, %arg1 : i32, i32
  }
  func.func @transform_5(%arg0: i32, %arg1: i32, %arg2: i32) -> (i32, i32) {
    %c0_i32 = arith.constant 0 : i32
    return %arg0, %arg1 : i32, i32
  }
}

module attributes {stable_mosaic.version = 11 : i64} {
  func.func @_mm_kernel(%arg0: i32, %arg1: i32, %arg2: i32, %arg3: memref<32x128xbf16, #tpu.memory_space<vmem>>, %arg4: memref<128x128xbf16, #tpu.memory_space<vmem>>, %arg5: memref<1x128xf32, #tpu.memory_space<vmem>>, %arg6: memref<32x128xf32, #tpu.memory_space<vmem>>, %arg7: memref<32x128xf32, #tpu.memory_space<vmem>>, %arg8: memref<32x128xf32, #tpu.memory_space<vmem>>) attributes {dimension_semantics = [#tpu.dimension_semantics<parallel>, #tpu.dimension_semantics<parallel>, #tpu.dimension_semantics<arbitrary>], iteration_bounds = array<i64: 1, 1, 1>, scalar_prefetch = 0 : i64, scratch_operands = 1 : i64, tpu.core_type = #tpu.core_type<tc>, window_params = [{transform_indices = @transform_0, window_bounds = array<i64: 32, 128>}, {transform_indices = @transform_1, window_bounds = array<i64: 128, 128>}, {transform_indices = @transform_2, window_bounds = array<i64: 1, 128>}, {transform_indices = @transform_3, window_bounds = array<i64: 32, 128>}, {transform_indices = @transform_4, window_bounds = array<i64: 32, 128>}]} {
    %c0_i32 = arith.constant 0 : i32
    %0 = arith.cmpi eq, %arg2, %c0_i32 : i32
    %1 = arith.extui %0 : i1 to i32
    %c0_i32_0 = arith.constant 0 : i32
    %2 = arith.cmpi ne, %1, %c0_i32_0 : i32
    scf.if %2 {
      %cst_10 = arith.constant 0.000000e+00 : f32
      %12 = vector.broadcast %cst_10 : f32 to vector<32x128xf32>
      %c0_11 = arith.constant 0 : index
      %c0_12 = arith.constant 0 : index
      %13 = vector.load %arg8[%c0_11, %c0_12] : memref<32x128xf32, #tpu.memory_space<vmem>>, vector<32x128xf32>
      tpu.vector_store %arg8[%c0_11, %c0_12], %12 {strides = array<i32>} : memref<32x128xf32, #tpu.memory_space<vmem>>, vector<32x128xf32>,
    } else {
    }
    %c0 = arith.constant 0 : index
    %c0_1 = arith.constant 0 : index
    %3 = vector.load %arg8[%c0, %c0_1] : memref<32x128xf32, #tpu.memory_space<vmem>>, vector<32x128xf32>
    %c0_2 = arith.constant 0 : index
    %c0_3 = arith.constant 0 : index
    %4 = vector.load %arg3[%c0_2, %c0_3] : memref<32x128xbf16, #tpu.memory_space<vmem>>, vector<32x128xbf16>
    %c0_4 = arith.constant 0 : index
    %c0_5 = arith.constant 0 : index
    %5 = vector.load %arg4[%c0_4, %c0_5] : memref<128x128xbf16, #tpu.memory_space<vmem>>, vector<128x128xbf16>
    %cst = arith.constant dense<0.000000e+00> : vector<32x128xf32>
    %6 = tpu.matmul %4, %5, %cst {dimension_numbers = #tpu.dot_dimension_numbers<[1], [0], [0], [1], [0, 0, 1, 1], [], []>} : vector<32x128xbf16>, vector<128x128xbf16>, vector<32x128xf32> -> vector<32x128xf32>
    %7 = arith.addf %3, %6 : vector<32x128xf32>
    %c0_6 = arith.constant 0 : index
    %c0_7 = arith.constant 0 : index
    %8 = vector.load %arg8[%c0_6, %c0_7] : memref<32x128xf32, #tpu.memory_space<vmem>>, vector<32x128xf32>
    tpu.vector_store %arg8[%c0_6, %c0_7], %7 {strides = array<i32>} : memref<32x128xf32, #tpu.memory_space<vmem>>, vector<32x128xf32>,
    %c0_i32_8 = arith.constant 0 : i32
    %9 = arith.cmpi eq, %arg2, %c0_i32_8 : i32
    %10 = arith.extui %9 : i1 to i32
    %c0_i32_9 = arith.constant 0 : i32
    %11 = arith.cmpi ne, %10, %c0_i32_9 : i32
    scf.if %11 {
      %c0_10 = arith.constant 0 : index
      %c0_11 = arith.constant 0 : index
      %12 = vector.load %arg8[%c0_10, %c0_11] : memref<32x128xf32, #tpu.memory_space<vmem>>, vector<32x128xf32>
      %c0_12 = arith.constant 0 : index
      %c0_13 = arith.constant 0 : index
      %13 = vector.load %arg5[%c0_12, %c0_13] : memref<1x128xf32, #tpu.memory_space<vmem>>, vector<1x128xf32>
      %14 = vector.broadcast %13 : vector<1x128xf32> to vector<32x128xf32>
      %15 = arith.addf %12, %14 : vector<32x128xf32>
      %c0_14 = arith.constant 0 : index
      %c0_15 = arith.constant 0 : index
      %16 = vector.load %arg6[%c0_14, %c0_15] : memref<32x128xf32, #tpu.memory_space<vmem>>, vector<32x128xf32>
      %17 = arith.addf %15, %16 : vector<32x128xf32>
      %cst_16 = arith.constant 0.000000e+00 : f32
      %18 = vector.broadcast %cst_16 : f32 to vector<32x128xf32>
      %19 = arith.maximumf %17, %18 : vector<32x128xf32>
      %c0_17 = arith.constant 0 : index
      %c0_18 = arith.constant 0 : index
      %20 = vector.load %arg7[%c0_17, %c0_18] : memref<32x128xf32, #tpu.memory_space<vmem>>, vector<32x128xf32>
      tpu.vector_store %arg7[%c0_17, %c0_18], %19 {strides = array<i32>} : memref<32x128xf32, #tpu.memory_space<vmem>>, vector<32x128xf32>,
    } else {
    }
    return
  }
  func.func @transform_0(%arg0: i32, %arg1: i32, %arg2: i32) -> (i32, i32) {
    %c0_i32 = arith.constant 0 : i32
    return %arg0, %arg2 : i32, i32
  }
  func.func @transform_1(%arg0: i32, %arg1: i32, %arg2: i32) -> (i32, i32) {
    %c0_i32 = arith.constant 0 : i32
    return %arg2, %arg1 : i32, i32
  }
  func.func @transform_2(%arg0: i32, %arg1: i32, %arg2: i32) -> (i32, i32) {
    %c0_i32 = arith.constant 0 : i32
    %c0_i32_0 = arith.constant 0 : i32
    return %c0_i32, %arg1 : i32, i32
  }
  func.func @transform_3(%arg0: i32, %arg1: i32, %arg2: i32) -> (i32, i32) {
    %c0_i32 = arith.constant 0 : i32
    return %arg0, %arg1 : i32, i32
  }
  func.func @transform_4(%arg0: i32, %arg1: i32, %arg2: i32) -> (i32, i32) {
    %c0_i32 = arith.constant 0 : i32
    return %arg0, %arg1 : i32, i32
  }
}

module attributes {stable_mosaic.version = 11 : i64} {
  func.func @_mm_kernel(%arg0: i32, %arg1: i32, %arg2: i32, %arg3: memref<32x128xbf16, #tpu.memory_space<vmem>>, %arg4: memref<128x128xbf16, #tpu.memory_space<vmem>>, %arg5: memref<1x128xf32, #tpu.memory_space<vmem>>, %arg6: memref<32x128xf32, #tpu.memory_space<vmem>>, %arg7: memref<32x128xf32, #tpu.memory_space<vmem>>, %arg8: memref<32x128xf32, #tpu.memory_space<vmem>>) attributes {dimension_semantics = [#tpu.dimension_semantics<parallel>, #tpu.dimension_semantics<parallel>, #tpu.dimension_semantics<arbitrary>], iteration_bounds = array<i64: 1, 1, 1>, scalar_prefetch = 0 : i64, scratch_operands = 1 : i64, tpu.core_type = #tpu.core_type<tc>, window_params = [{transform_indices = @transform_0, window_bounds = array<i64: 32, 128>}, {transform_indices = @transform_1, window_bounds = array<i64: 128, 128>}, {transform_indices = @transform_2, window_bounds = array<i64: 1, 128>}, {transform_indices = @transform_3, window_bounds = array<i64: 32, 128>}, {transform_indices = @transform_4, window_bounds = array<i64: 32, 128>}]} {
    %c0_i32 = arith.constant 0 : i32
    %0 = arith.cmpi eq, %arg2, %c0_i32 : i32
    %1 = arith.extui %0 : i1 to i32
    %c0_i32_0 = arith.constant 0 : i32
    %2 = arith.cmpi ne, %1, %c0_i32_0 : i32
    scf.if %2 {
      %cst_10 = arith.constant 0.000000e+00 : f32
      %12 = vector.broadcast %cst_10 : f32 to vector<32x128xf32>
      %c0_11 = arith.constant 0 : index
      %c0_12 = arith.constant 0 : index
      %13 = vector.load %arg8[%c0_11, %c0_12] : memref<32x128xf32, #tpu.memory_space<vmem>>, vector<32x128xf32>
      tpu.vector_store %arg8[%c0_11, %c0_12], %12 {strides = array<i32>} : memref<32x128xf32, #tpu.memory_space<vmem>>, vector<32x128xf32>,
    } else {
    }
    %c0 = arith.constant 0 : index
    %c0_1 = arith.constant 0 : index
    %3 = vector.load %arg8[%c0, %c0_1] : memref<32x128xf32, #tpu.memory_space<vmem>>, vector<32x128xf32>
    %c0_2 = arith.constant 0 : index
    %c0_3 = arith.constant 0 : index
    %4 = vector.load %arg3[%c0_2, %c0_3] : memref<32x128xbf16, #tpu.memory_space<vmem>>, vector<32x128xbf16>
    %c0_4 = arith.constant 0 : index
    %c0_5 = arith.constant 0 : index
    %5 = vector.load %arg4[%c0_4, %c0_5] : memref<128x128xbf16, #tpu.memory_space<vmem>>, vector<128x128xbf16>
    %cst = arith.constant dense<0.000000e+00> : vector<32x128xf32>
    %6 = tpu.matmul %4, %5, %cst {dimension_numbers = #tpu.dot_dimension_numbers<[1], [0], [0], [1], [0, 0, 1, 1], [], []>} : vector<32x128xbf16>, vector<128x128xbf16>, vector<32x128xf32> -> vector<32x128xf32>
    %7 = arith.addf %3, %6 : vector<32x128xf32>
    %c0_6 = arith.constant 0 : index
    %c0_7 = arith.constant 0 : index
    %8 = vector.load %arg8[%c0_6, %c0_7] : memref<32x128xf32, #tpu.memory_space<vmem>>, vector<32x128xf32>
    tpu.vector_store %arg8[%c0_6, %c0_7], %7 {strides = array<i32>} : memref<32x128xf32, #tpu.memory_space<vmem>>, vector<32x128xf32>,
    %c0_i32_8 = arith.constant 0 : i32
    %9 = arith.cmpi eq, %arg2, %c0_i32_8 : i32
    %10 = arith.extui %9 : i1 to i32
    %c0_i32_9 = arith.constant 0 : i32
    %11 = arith.cmpi ne, %10, %c0_i32_9 : i32
    scf.if %11 {
      %c0_10 = arith.constant 0 : index
      %c0_11 = arith.constant 0 : index
      %12 = vector.load %arg8[%c0_10, %c0_11] : memref<32x128xf32, #tpu.memory_space<vmem>>, vector<32x128xf32>
      %c0_12 = arith.constant 0 : index
      %c0_13 = arith.constant 0 : index
      %13 = vector.load %arg5[%c0_12, %c0_13] : memref<1x128xf32, #tpu.memory_space<vmem>>, vector<1x128xf32>
      %14 = vector.broadcast %13 : vector<1x128xf32> to vector<32x128xf32>
      %15 = arith.addf %12, %14 : vector<32x128xf32>
      %cst_14 = arith.constant 0.000000e+00 : f32
      %16 = vector.broadcast %cst_14 : f32 to vector<32x128xf32>
      %17 = arith.cmpf ogt, %15, %16 : vector<32x128xf32>
      %cst_15 = arith.constant 0.00999999977 : f32
      %18 = vector.broadcast %cst_15 : f32 to vector<32x128xf32>
      %19 = arith.mulf %18, %15 : vector<32x128xf32>
      %20 = arith.select %17, %15, %19 : vector<32x128xi1>, vector<32x128xf32>
      %c0_16 = arith.constant 0 : index
      %c0_17 = arith.constant 0 : index
      %21 = vector.load %arg6[%c0_16, %c0_17] : memref<32x128xf32, #tpu.memory_space<vmem>>, vector<32x128xf32>
      %22 = arith.addf %20, %21 : vector<32x128xf32>
      %c0_18 = arith.constant 0 : index
      %c0_19 = arith.constant 0 : index
      %23 = vector.load %arg7[%c0_18, %c0_19] : memref<32x128xf32, #tpu.memory_space<vmem>>, vector<32x128xf32>
      tpu.vector_store %arg7[%c0_18, %c0_19], %22 {strides = array<i32>} : memref<32x128xf32, #tpu.memory_space<vmem>>, vector<32x128xf32>,
    } else {
    }
    return
  }
  func.func @transform_0(%arg0: i32, %arg1: i32, %arg2: i32) -> (i32, i32) {
    %c0_i32 = arith.constant 0 : i32
    return %arg0, %arg2 : i32, i32
  }
  func.func @transform_1(%arg0: i32, %arg1: i32, %arg2: i32) -> (i32, i32) {
    %c0_i32 = arith.constant 0 : i32
    return %arg2, %arg1 : i32, i32
  }
  func.func @transform_2(%arg0: i32, %arg1: i32, %arg2: i32) -> (i32, i32) {
    %c0_i32 = arith.constant 0 : i32
    %c0_i32_0 = arith.constant 0 : i32
    return %c0_i32, %arg1 : i32, i32
  }
  func.func @transform_3(%arg0: i32, %arg1: i32, %arg2: i32) -> (i32, i32) {
    %c0_i32 = arith.constant 0 : i32
    return %arg0, %arg1 : i32, i32
  }
  func.func @transform_4(%arg0: i32, %arg1: i32, %arg2: i32) -> (i32, i32) {
    %c0_i32 = arith.constant 0 : i32
    return %arg0, %arg1 : i32, i32
  }
}

module attributes {stable_mosaic.version = 11 : i64} {
  func.func @_gdn_kernel(%arg0: i32, %arg1: memref<128x128xf32, #tpu.memory_space<vmem>>, %arg2: memref<128x128xf32, #tpu.memory_space<vmem>>, %arg3: memref<1x128xf32, #tpu.memory_space<vmem>>, %arg4: memref<128x128xf32, #tpu.memory_space<vmem>>, %arg5: memref<128x128xf32, #tpu.memory_space<vmem>>) attributes {dimension_semantics = [#tpu.dimension_semantics<parallel>], iteration_bounds = array<i64: 1>, scalar_prefetch = 0 : i64, scratch_operands = 0 : i64, tpu.core_type = #tpu.core_type<tc>, window_params = [{transform_indices = @transform_0, window_bounds = array<i64: 128, 128>}, {pipeline_mode = #tpu.pipeline_mode<synchronous>, transform_indices = @transform_1, window_bounds = array<i64: 128, 128>}, {pipeline_mode = #tpu.pipeline_mode<synchronous>, transform_indices = @transform_2, window_bounds = array<i64: 1, 128>}, {transform_indices = @transform_3, window_bounds = array<i64: 128, 128>}, {transform_indices = @transform_4, window_bounds = array<i64: 128, 128>}]} {
    %c0 = arith.constant 0 : index
    %c0_0 = arith.constant 0 : index
    %0 = vector.load %arg1[%c0, %c0_0] : memref<128x128xf32, #tpu.memory_space<vmem>>, vector<128x128xf32>
    %1 = arith.mulf %0, %0 : vector<128x128xf32>
    %c0_1 = arith.constant 0 : index
    %c0_2 = arith.constant 0 : index
    %2 = vector.load %arg2[%c0_1, %c0_2] : memref<128x128xf32, #tpu.memory_space<vmem>>, vector<128x128xf32>
    %cst = arith.constant dense<0.000000e+00> : vector<128x128xf32>
    %3 = tpu.matmul %1, %2, %cst {dimension_numbers = #tpu.dot_dimension_numbers<[1], [0], [0], [1], [0, 0, 1, 1], [], []>} : vector<128x128xf32>, vector<128x128xf32>, vector<128x128xf32> -> vector<128x128xf32>
    %c0_3 = arith.constant 0 : index
    %c0_4 = arith.constant 0 : index
    %4 = vector.load %arg3[%c0_3, %c0_4] : memref<1x128xf32, #tpu.memory_space<vmem>>, vector<1x128xf32>
    %5 = vector.broadcast %4 : vector<1x128xf32> to vector<128x128xf32>
    %6 = arith.addf %3, %5 : vector<128x128xf32>
    %7 = math.sqrt %6 : vector<128x128xf32>
    %8 = arith.mulf %0, %7 : vector<128x128xf32>
    %c0_5 = arith.constant 0 : index
    %c0_6 = arith.constant 0 : index
    %9 = vector.load %arg4[%c0_5, %c0_6] : memref<128x128xf32, #tpu.memory_space<vmem>>, vector<128x128xf32>
    %10 = arith.addf %8, %9 : vector<128x128xf32>
    %c0_7 = arith.constant 0 : index
    %c0_8 = arith.constant 0 : index
    %11 = vector.load %arg5[%c0_7, %c0_8] : memref<128x128xf32, #tpu.memory_space<vmem>>, vector<128x128xf32>
    tpu.vector_store %arg5[%c0_7, %c0_8], %10 {strides = array<i32>} : memref<128x128xf32, #tpu.memory_space<vmem>>, vector<128x128xf32>,
    return
  }
  func.func @transform_0(%arg0: i32) -> (i32, i32) {
    %c0_i32 = arith.constant 0 : i32
    %c0_i32_0 = arith.constant 0 : i32
    return %arg0, %c0_i32 : i32, i32
  }
  func.func @transform_1(%arg0: i32) -> (i32, i32) {
    %c0_i32 = arith.constant 0 : i32
    %c0_i32_0 = arith.constant 0 : i32
    %c0_i32_1 = arith.constant 0 : i32
    return %c0_i32, %c0_i32_0 : i32, i32
  }
  func.func @transform_2(%arg0: i32) -> (i32, i32) {
    %c0_i32 = arith.constant 0 : i32
    %c0_i32_0 = arith.constant 0 : i32
    %c0_i32_1 = arith.constant 0 : i32
    return %c0_i32, %c0_i32_0 : i32, i32
  }
  func.func @transform_3(%arg0: i32) -> (i32, i32) {
    %c0_i32 = arith.constant 0 : i32
    %c0_i32_0 = arith.constant 0 : i32
    return %arg0, %c0_i32 : i32, i32
  }
  func.func @transform_4(%arg0: i32) -> (i32, i32) {
    %c0_i32 = arith.constant 0 : i32
    %c0_i32_0 = arith.constant 0 : i32
    return %arg0, %c0_i32 : i32, i32
  }
}

</mosaic_0001>

<llo_original>
// kernel: _forward.61
$region0: #{_forward.61}
  #allocation0 [shape = 'u32[]', space=smem, size = 0x4, offset = 0x4, fixed_abs, tag = 'smem constant byte address 0x4 - core index']
  #allocation1 [shape = 'u32[144,128]{1,0:T(1,128)}', space=vmem, size = 0x12000, scoped, tag = 'internal scratch']
  #allocation2 [shape = 'f32[128,128]{1,0:T(8,128)}', space=vmem, size = 0x10000, scoped, tag = 'scratch operand']
  %s0 = inlined_call_operand.vmem [shape: bf16[128,128], index: 0, kind: input, shape index: {}]
  %s1 = inlined_call_operand.vmem [shape: bf16[128,128], index: 1, kind: input, shape index: {}]
  %s2 = inlined_call_operand.vmem [shape: f32[1,128], index: 2, kind: input, shape index: {}]
  %s3 = inlined_call_operand.vmem [shape: f32[128,128], index: 3, kind: output, shape index: {}]
  %s4 = sld [smem:[#allocation0]]
  $region30: #{_forward.61} parent=0
    _
  %s6 = ssub.s32 1, %s4
  %s7 = scalar_select 0, %s6, %s4
  // Predicated region
  $region2: #{_forward.61} parent=0 // pred_check
    _
  $region3: #{_forward.61} parent=0 // pred_check_branch
    %9 = sbr.rel (0) target = $region5
  $region4: #{_forward.61} parent=0 // pred_region
    _
  $region5: #{_forward.61} parent=0 // pred_fallthru
    _
  // Predicated region
  $region6: #{_forward.61} parent=0 // pred_check
    _
  $region7: #{_forward.61} parent=0 // pred_check_branch
    %11 = sbr.rel (0) target = $region9
  $region8: #{_forward.61} parent=0 // pred_region
    _
  $region9: #{_forward.61} parent=0 // pred_fallthru
    _
  // Predicated region
  $region10: #{_forward.61} parent=0 // pred_check
    _
  $region11: #{_forward.61} parent=0 // pred_check_branch
    %13 = sbr.rel (0) target = $region13
  $region12: #{_forward.61} parent=0 // pred_region
    _
  $region13: #{_forward.61} parent=0 // pred_fallthru
    _
  %p15 = scmp.eq.s32.totalorder 0, 0
  // Predicated region
  $region14: #{_forward.61} parent=0 // pred_check
    %p16 = pneg %p15
  $region15: #{_forward.61} parent=0 // pred_check_branch
    %18 = sbr.rel (%p16) target = $region17
  $region16: #{_forward.61} parent=0 // pred_region
    %19 = vst [vmem:[#allocation2] sm:$0xff] 0.0
    %20 = vst [vmem:[#allocation2 + $0x8] sm:$0xff] 0.0
    %21 = vst [vmem:[#allocation2 + $0x10] sm:$0xff] 0.0
    %22 = vst [vmem:[#allocation2 + $0x18] sm:$0xff] 0.0
    %23 = vst [vmem:[#allocation2 + $0x20] sm:$0xff] 0.0
    %24 = vst [vmem:[#allocation2 + $0x28] sm:$0xff] 0.0
    %25 = vst [vmem:[#allocation2 + $0x30] sm:$0xff] 0.0
    %26 = vst [vmem:[#allocation2 + $0x38] sm:$0xff] 0.0
    %27 = vst [vmem:[#allocation2 + $0x40] sm:$0xff] 0.0
    %28 = vst [vmem:[#allocation2 + $0x48] sm:$0xff] 0.0
    %29 = vst [vmem:[#allocation2 + $0x50] sm:$0xff] 0.0
    %30 = vst [vmem:[#allocation2 + $0x58] sm:$0xff] 0.0
    %31 = vst [vmem:[#allocation2 + $0x60] sm:$0xff] 0.0
    %32 = vst [vmem:[#allocation2 + $0x68] sm:$0xff] 0.0
    %33 = vst [vmem:[#allocation2 + $0x70] sm:$0xff] 0.0
    %34 = vst [vmem:[#allocation2 + $0x78] sm:$0xff] 0.0
  $region17: #{_forward.61} parent=0 // pred_fallthru
    _
  %v35 = vld [vmem:[#allocation2] sm:$0xff]
  %v36 = vld [vmem:[#allocation2 + $0x8] sm:$0xff]
  %v37 = vld [vmem:[#allocation2 + $0x10] sm:$0xff]
  %v38 = vld [vmem:[#allocation2 + $0x18] sm:$0xff]
  %v39 = vld [vmem:[#allocation2 + $0x20] sm:$0xff]
  %v40 = vld [vmem:[#allocation2 + $0x28] sm:$0xff]
  %v41 = vld [vmem:[#allocation2 + $0x30] sm:$0xff]
  %v42 = vld [vmem:[#allocation2 + $0x38] sm:$0xff]
  %v43 = vld [vmem:[#allocation2 + $0x40] sm:$0xff]
  %v44 = vld [vmem:[#allocation2 + $0x48] sm:$0xff]
  %v45 = vld [vmem:[#allocation2 + $0x50] sm:$0xff]
  %v46 = vld [vmem:[#allocation2 + $0x58] sm:$0xff]
  %v47 = vld [vmem:[#allocation2 + $0x60] sm:$0xff]
  %v48 = vld [vmem:[#allocation2 + $0x68] sm:$0xff]
  %v49 = vld [vmem:[#allocation2 + $0x70] sm:$0xff]
  %v50 = vld [vmem:[#allocation2 + $0x78] sm:$0xff]
  %v51 = vld [vmem:[%s0] sm:$0xf]
  %v52 = vld [vmem:[%s0 + $0x4] sm:$0xf]
  %v53 = vld [vmem:[%s0 + $0x8] sm:$0xf]
  %v54 = vld [vmem:[%s0 + $0xc] sm:$0xf]
  %v55 = vld [vmem:[%s0 + $0x10] sm:$0xf]
  %v56 = vld [vmem:[%s0 + $0x14] sm:$0xf]
  %v57 = vld [vmem:[%s0 + $0x18] sm:$0xf]
  %v58 = vld [vmem:[%s0 + $0x1c] sm:$0xf]
  %v59 = vld [vmem:[%s0 + $0x20] sm:$0xf]
  %v60 = vld [vmem:[%s0 + $0x24] sm:$0xf]
  %v61 = vld [vmem:[%s0 + $0x28] sm:$0xf]
  %v62 = vld [vmem:[%s0 + $0x2c] sm:$0xf]
  %v63 = vld [vmem:[%s0 + $0x30] sm:$0xf]
  %v64 = vld [vmem:[%s0 + $0x34] sm:$0xf]
  %v65 = vld [vmem:[%s0 + $0x38] sm:$0xf]
  %v66 = vld [vmem:[%s0 + $0x3c] sm:$0xf]
  %v67 = vld [vmem:[%s1] sm:$0xf]
  %v68 = vld [vmem:[%s1 + $0x4] sm:$0xf]
  %v69 = vld [vmem:[%s1 + $0x8] sm:$0xf]
  %v70 = vld [vmem:[%s1 + $0xc] sm:$0xf]
  %v71 = vld [vmem:[%s1 + $0x10] sm:$0xf]
  %v72 = vld [vmem:[%s1 + $0x14] sm:$0xf]
  %v73 = vld [vmem:[%s1 + $0x18] sm:$0xf]
  %v74 = vld [vmem:[%s1 + $0x1c] sm:$0xf]
  %v75 = vld [vmem:[%s1 + $0x20] sm:$0xf]
  %v76 = vld [vmem:[%s1 + $0x24] sm:$0xf]
  %v77 = vld [vmem:[%s1 + $0x28] sm:$0xf]
  %v78 = vld [vmem:[%s1 + $0x2c] sm:$0xf]
  %v79 = vld [vmem:[%s1 + $0x30] sm:$0xf]
  %v80 = vld [vmem:[%s1 + $0x34] sm:$0xf]
  %v81 = vld [vmem:[%s1 + $0x38] sm:$0xf]
  %v82 = vld [vmem:[%s1 + $0x3c] sm:$0xf]
  %v99 = vunpack.c.l.b16 %v51
  %v100 = vunpack.c.l.b16 %v52
  %v101 = vunpack.c.l.b16 %v53
  %v102 = vunpack.c.l.b16 %v54
  %v103 = vunpack.c.l.b16 %v55
  %v104 = vunpack.c.l.b16 %v56
  %v105 = vunpack.c.l.b16 %v57
  %v106 = vunpack.c.l.b16 %v58
  %v107 = vunpack.c.l.b16 %v59
  %v108 = vunpack.c.l.b16 %v60
  %v109 = vunpack.c.l.b16 %v61
  %v110 = vunpack.c.l.b16 %v62
  %v111 = vunpack.c.l.b16 %v63
  %v112 = vunpack.c.l.b16 %v64
  %v113 = vunpack.c.l.b16 %v65
  %v114 = vunpack.c.l.b16 %v66
  %v115 = vpack.c.b16 %v100, %v99
  %v116 = vpack.c.b16 %v102, %v101
  %v117 = vpack.c.b16 %v104, %v103
  %v118 = vpack.c.b16 %v106, %v105
  %v119 = vpack.c.b16 %v108, %v107
  %v120 = vpack.c.b16 %v110, %v109
  %v121 = vpack.c.b16 %v112, %v111
  %v122 = vpack.c.b16 %v114, %v113
  %v147 = vunpack.c.l.b16 %v67
  %v148 = vunpack.c.l.b16 %v68
  %v149 = vunpack.c.l.b16 %v69
  %v150 = vunpack.c.l.b16 %v70
  %v151 = vunpack.c.l.b16 %v71
  %v152 = vunpack.c.l.b16 %v72
  %v153 = vunpack.c.l.b16 %v73
  %v154 = vunpack.c.l.b16 %v74
  %v155 = vunpack.c.l.b16 %v75
  %v156 = vunpack.c.l.b16 %v76
  %v157 = vunpack.c.l.b16 %v77
  %v158 = vunpack.c.l.b16 %v78
  %v159 = vunpack.c.l.b16 %v79
  %v160 = vunpack.c.l.b16 %v80
  %v161 = vunpack.c.l.b16 %v81
  %v162 = vunpack.c.l.b16 %v82
  %v163 = vpack.c.b16 %v148, %v147
  %v164 = vpack.c.b16 %v150, %v149
  %v165 = vpack.c.b16 %v152, %v151
  %v166 = vpack.c.b16 %v154, %v153
  %v167 = vpack.c.b16 %v156, %v155
  %v168 = vpack.c.b16 %v158, %v157
  %v169 = vpack.c.b16 %v160, %v159
  %v170 = vpack.c.b16 %v162, %v161
  %179 = vmatprep.subr.bf16.mxu0 0
  %180 = vmatpush1.bf16.msra.mxu0 %v170
  %181 = vmatprep.subr.bf16.mxu0 0
  %182 = vmatpush1.bf16.msra.mxu0 %v169
  %183 = vmatprep.subr.bf16.mxu0 0
  %184 = vmatpush1.bf16.msra.mxu0 %v168
  %185 = vmatprep.subr.bf16.mxu0 0
  %186 = vmatpush1.bf16.msra.mxu0 %v167
  %187 = vmatprep.subr.bf16.mxu0 0
  %188 = vmatpush1.bf16.msra.mxu0 %v166
  %189 = vmatprep.subr.bf16.mxu0 0
  %190 = vmatpush1.bf16.msra.mxu0 %v165
  %191 = vmatprep.subr.bf16.mxu0 0
  %192 = vmatpush1.bf16.msra.mxu0 %v164
  %193 = vmatprep.subr.bf16.mxu0 0
  %194 = vmatpush1.bf16.msra.mxu0 %v163
  %195 = vmatprep.subr.bf16.mxu0 0
  %196 = vmatpush2.bf16.msra.mxu0 0
  %197 = vmatprep.subr.bf16.mxu0 0
  %198 = vmatpush2.bf16.msra.mxu0 0
  %199 = vmatprep.subr.bf16.mxu0 0
  %200 = vmatpush2.bf16.msra.mxu0 0
  %201 = vmatprep.subr.bf16.mxu0 0
  %202 = vmatpush2.bf16.msra.mxu0 0
  %203 = vmatprep.subr.bf16.mxu0 0
  %204 = vmatpush2.bf16.msra.mxu0 0
  %205 = vmatprep.subr.bf16.mxu0 0
  %206 = vmatpush2.bf16.msra.mxu0 0
  %207 = vmatprep.subr.bf16.mxu0 0
  %208 = vmatpush2.bf16.msra.mxu0 0
  %209 = vmatprep.subr.bf16.mxu0 0
  %210 = vmatpush2.bf16.msra.mxu0 0
  %211 = vmatprep.mubr.bf16.mxu0 0
  %212 = vmatmul.mubr.bf16.gmra.mxu0 %v115
  %v213 = vpop.f32.mrf.mxu0
  %v214 = vadd.f32 0.0, %v213
  %v215 = vpop.f32.mrf.mxu0
  %v216 = vpop.f32.mrf.mxu0
  %v217 = vadd.f32 0.0, %v216
  %v218 = vpop.f32.mrf.mxu0
  %219 = vmatprep.mubr.bf16.mxu0 0
  %220 = vmatmul.mubr.bf16.gmra.mxu0 %v116
  %v221 = vpop.f32.mrf.mxu0
  %v222 = vadd.f32 0.0, %v221
  %v223 = vpop.f32.mrf.mxu0
  %v224 = vpop.f32.mrf.mxu0
  %v225 = vadd.f32 0.0, %v224
  %v226 = vpop.f32.mrf.mxu0
  %227 = vmatprep.mubr.bf16.mxu0 0
  %228 = vmatmul.mubr.bf16.gmra.mxu0 %v117
  %v229 = vpop.f32.mrf.mxu0
  %v230 = vadd.f32 0.0, %v229
  %v231 = vpop.f32.mrf.mxu0
  %v232 = vpop.f32.mrf.mxu0
  %v233 = vadd.f32 0.0, %v232
  %v234 = vpop.f32.mrf.mxu0
  %235 = vmatprep.mubr.bf16.mxu0 0
  %236 = vmatmul.mubr.bf16.gmra.mxu0 %v118
  %v237 = vpop.f32.mrf.mxu0
  %v238 = vadd.f32 0.0, %v237
  %v239 = vpop.f32.mrf.mxu0
  %v240 = vpop.f32.mrf.mxu0
  %v241 = vadd.f32 0.0, %v240
  %v242 = vpop.f32.mrf.mxu0
  %243 = vmatprep.mubr.bf16.mxu0 0
  %244 = vmatmul.mubr.bf16.gmra.mxu0 %v119
  %v245 = vpop.f32.mrf.mxu0
  %v246 = vadd.f32 0.0, %v245
  %v247 = vpop.f32.mrf.mxu0
  %v248 = vpop.f32.mrf.mxu0
  %v249 = vadd.f32 0.0, %v248
  %v250 = vpop.f32.mrf.mxu0
  %251 = vmatprep.mubr.bf16.mxu0 0
  %252 = vmatmul.mubr.bf16.gmra.mxu0 %v120
  %v253 = vpop.f32.mrf.mxu0
  %v254 = vadd.f32 0.0, %v253
  %v255 = vpop.f32.mrf.mxu0
  %v256 = vpop.f32.mrf.mxu0
  %v257 = vadd.f32 0.0, %v256
  %v258 = vpop.f32.mrf.mxu0
  %259 = vmatprep.mubr.bf16.mxu0 0
  %260 = vmatmul.mubr.bf16.gmra.mxu0 %v121
  %v261 = vpop.f32.mrf.mxu0
  %v262 = vadd.f32 0.0, %v261
  %v263 = vpop.f32.mrf.mxu0
  %v264 = vpop.f32.mrf.mxu0
  %v265 = vadd.f32 0.0, %v264
  %v266 = vpop.f32.mrf.mxu0
  %267 = vmatprep.mubr.bf16.mxu0 0
  %268 = vmatmul.mubr.bf16.gmra.mxu0 %v122
  %v269 = vpop.f32.mrf.mxu0
  %v270 = vadd.f32 0.0, %v269
  %v271 = vpop.f32.mrf.mxu0
  %v272 = vpop.f32.mrf.mxu0
  %v273 = vadd.f32 0.0, %v272
  %v274 = vpop.f32.mrf.mxu0
  %275 = vdwg.mxu0
  %v276 = vadd.f32 %v35, %v214
  %v277 = vadd.f32 %v36, %v217
  %v278 = vadd.f32 %v37, %v222
  %v279 = vadd.f32 %v38, %v225
  %v280 = vadd.f32 %v39, %v230
  %v281 = vadd.f32 %v40, %v233
  %v282 = vadd.f32 %v41, %v238
  %v283 = vadd.f32 %v42, %v241
  %v284 = vadd.f32 %v43, %v246
  %v285 = vadd.f32 %v44, %v249
  %v286 = vadd.f32 %v45, %v254
  %v287 = vadd.f32 %v46, %v257
  %v288 = vadd.f32 %v47, %v262
  %v289 = vadd.f32 %v48, %v265
  %v290 = vadd.f32 %v49, %v270
  %v291 = vadd.f32 %v50, %v273
  %292 = vst [vmem:[#allocation2] sm:$0xff] %v276
  %293 = vst [vmem:[#allocation2 + $0x8] sm:$0xff] %v277
  %294 = vst [vmem:[#allocation2 + $0x10] sm:$0xff] %v278
  %295 = vst [vmem:[#allocation2 + $0x18] sm:$0xff] %v279
  %296 = vst [vmem:[#allocation2 + $0x20] sm:$0xff] %v280
  %297 = vst [vmem:[#allocation2 + $0x28] sm:$0xff] %v281
  %298 = vst [vmem:[#allocation2 + $0x30] sm:$0xff] %v282
  %299 = vst [vmem:[#allocation2 + $0x38] sm:$0xff] %v283
  %300 = vst [vmem:[#allocation2 + $0x40] sm:$0xff] %v284
  %301 = vst [vmem:[#allocation2 + $0x48] sm:$0xff] %v285
  %302 = vst [vmem:[#allocation2 + $0x50] sm:$0xff] %v286
  %303 = vst [vmem:[#allocation2 + $0x58] sm:$0xff] %v287
  %304 = vst [vmem:[#allocation2 + $0x60] sm:$0xff] %v288
  %305 = vst [vmem:[#allocation2 + $0x68] sm:$0xff] %v289
  %306 = vst [vmem:[#allocation2 + $0x70] sm:$0xff] %v290
  %307 = vst [vmem:[#allocation2 + $0x78] sm:$0xff] %v291
  // Predicated region
  $region18: #{_forward.61} parent=0 // pred_check
    %p308 = pneg %p15
  $region19: #{_forward.61} parent=0 // pred_check_branch
    %310 = sbr.rel (%p308) target = $region21
  $region20: #{_forward.61} parent=0 // pred_region
    %v311 = vld [vmem:[#allocation2] sm:$0xff]
    %v312 = vld [vmem:[#allocation2 + $0x8] sm:$0xff]
    %v313 = vld [vmem:[#allocation2 + $0x10] sm:$0xff]
    %v314 = vld [vmem:[#allocation2 + $0x18] sm:$0xff]
    %v315 = vld [vmem:[#allocation2 + $0x20] sm:$0xff]
    %v316 = vld [vmem:[#allocation2 + $0x28] sm:$0xff]
    %v317 = vld [vmem:[#allocation2 + $0x30] sm:$0xff]
    %v318 = vld [vmem:[#allocation2 + $0x38] sm:$0xff]
    %v319 = vld [vmem:[#allocation2 + $0x40] sm:$0xff]
    %v320 = vld [vmem:[#allocation2 + $0x48] sm:$0xff]
    %v321 = vld [vmem:[#allocation2 + $0x50] sm:$0xff]
    %v322 = vld [vmem:[#allocation2 + $0x58] sm:$0xff]
    %v323 = vld [vmem:[#allocation2 + $0x60] sm:$0xff]
    %v324 = vld [vmem:[#allocation2 + $0x68] sm:$0xff]
    %v325 = vld [vmem:[#allocation2 + $0x70] sm:$0xff]
    %v326 = vld [vmem:[#allocation2 + $0x78] sm:$0xff]
    %v327 = vld [vmem:[%s2] sm:$0x1]
    %v329 = vlaneseq
    %v330 = vshrl.u32 %v329, 7
    %v331 = vsub.s32 0, %v330
    %v332 = vrot.slane %v327, %v331
    %v334 = vadd.f32 %v311, %v332
    %v335 = vadd.f32 %v312, %v332
    %v336 = vadd.f32 %v313, %v332
    %v337 = vadd.f32 %v314, %v332
    %v338 = vadd.f32 %v315, %v332
    %v339 = vadd.f32 %v316, %v332
    %v340 = vadd.f32 %v317, %v332
    %v341 = vadd.f32 %v318, %v332
    %v342 = vadd.f32 %v319, %v332
    %v343 = vadd.f32 %v320, %v332
    %v344 = vadd.f32 %v321, %v332
    %v345 = vadd.f32 %v322, %v332
    %v346 = vadd.f32 %v323, %v332
    %v347 = vadd.f32 %v324, %v332
    %v348 = vadd.f32 %v325, %v332
    %v349 = vadd.f32 %v326, %v332
    %350 = vst [vmem:[%s3] sm:$0xff] %v334
    %351 = vst [vmem:[%s3 + $0x8] sm:$0xff] %v335
    %352 = vst [vmem:[%s3 + $0x10] sm:$0xff] %v336
    %353 = vst [vmem:[%s3 + $0x18] sm:$0xff] %v337
    %354 = vst [vmem:[%s3 + $0x20] sm:$0xff] %v338
    %355 = vst [vmem:[%s3 + $0x28] sm:$0xff] %v339
    %356 = vst [vmem:[%s3 + $0x30] sm:$0xff] %v340
    %357 = vst [vmem:[%s3 + $0x38] sm:$0xff] %v341
    %358 = vst [vmem:[%s3 + $0x40] sm:$0xff] %v342
    %359 = vst [vmem:[%s3 + $0x48] sm:$0xff] %v343
    %360 = vst [vmem:[%s3 + $0x50] sm:$0xff] %v344
    %361 = vst [vmem:[%s3 + $0x58] sm:$0xff] %v345
    %362 = vst [vmem:[%s3 + $0x60] sm:$0xff] %v346
    %363 = vst [vmem:[%s3 + $0x68] sm:$0xff] %v347
    %364 = vst [vmem:[%s3 + $0x70] sm:$0xff] %v348
    %365 = vst [vmem:[%s3 + $0x78] sm:$0xff] %v349
  $region21: #{_forward.61} parent=0 // pred_fallthru
    _
  // Predicated region
  $region22: #{_forward.61} parent=0 // pred_check
    _
  $region23: #{_forward.61} parent=0 // pred_check_branch
    %367 = sbr.rel (0) target = $region25
  $region24: #{_forward.61} parent=0 // pred_region
    _
  $region25: #{_forward.61} parent=0 // pred_fallthru
    _
  // Predicated region
  $region26: #{_forward.61} parent=0 // pred_check
    _
  $region27: #{_forward.61} parent=0 // pred_check_branch
    %369 = sbr.rel (0) target = $region29
  $region28: #{_forward.61} parent=0 // pred_region
    _
  $region29: #{_forward.61} parent=0 // pred_fallthru
    _

// kernel: _forward.59
$region0: #{_forward.59}
  #allocation0 [shape = 'u32[]', space=smem, size = 0x4, offset = 0x4, fixed_abs, tag = 'smem constant byte address 0x4 - core index']
  #allocation1 [shape = 'u32[144,128]{1,0:T(1,128)}', space=vmem, size = 0x12000, scoped, tag = 'internal scratch']
  #allocation2 [shape = 'f32[128,128]{1,0:T(8,128)}', space=vmem, size = 0x10000, scoped, tag = 'scratch operand']
  %s0 = inlined_call_operand.vmem [shape: bf16[128,128], index: 0, kind: input, shape index: {}]
  %s1 = inlined_call_operand.vmem [shape: bf16[128,128], index: 1, kind: input, shape index: {}]
  %s2 = inlined_call_operand.vmem [shape: f32[1,128], index: 2, kind: input, shape index: {}]
  %s3 = inlined_call_operand.vmem [shape: f32[128,128], index: 3, kind: output, shape index: {}]
  %s4 = sld [smem:[#allocation0]]
  $region30: #{_forward.59} parent=0
    _
  %s6 = ssub.s32 1, %s4
  %s7 = scalar_select 0, %s6, %s4
  // Predicated region
  $region2: #{_forward.59} parent=0 // pred_check
    _
  $region3: #{_forward.59} parent=0 // pred_check_branch
    %9 = sbr.rel (0) target = $region5
  $region4: #{_forward.59} parent=0 // pred_region
    _
  $region5: #{_forward.59} parent=0 // pred_fallthru
    _
  // Predicated region
  $region6: #{_forward.59} parent=0 // pred_check
    _
  $region7: #{_forward.59} parent=0 // pred_check_branch
    %11 = sbr.rel (0) target = $region9
  $region8: #{_forward.59} parent=0 // pred_region
    _
  $region9: #{_forward.59} parent=0 // pred_fallthru
    _
  // Predicated region
  $region10: #{_forward.59} parent=0 // pred_check
    _
  $region11: #{_forward.59} parent=0 // pred_check_branch
    %13 = sbr.rel (0) target = $region13
  $region12: #{_forward.59} parent=0 // pred_region
    _
  $region13: #{_forward.59} parent=0 // pred_fallthru
    _
  %p15 = scmp.eq.s32.totalorder 0, 0
  // Predicated region
  $region14: #{_forward.59} parent=0 // pred_check
    %p16 = pneg %p15
  $region15: #{_forward.59} parent=0 // pred_check_branch
    %18 = sbr.rel (%p16) target = $region17
  $region16: #{_forward.59} parent=0 // pred_region
    %19 = vst [vmem:[#allocation2] sm:$0xff] 0.0
    %20 = vst [vmem:[#allocation2 + $0x8] sm:$0xff] 0.0
    %21 = vst [vmem:[#allocation2 + $0x10] sm:$0xff] 0.0
    %22 = vst [vmem:[#allocation2 + $0x18] sm:$0xff] 0.0
    %23 = vst [vmem:[#allocation2 + $0x20] sm:$0xff] 0.0
    %24 = vst [vmem:[#allocation2 + $0x28] sm:$0xff] 0.0
    %25 = vst [vmem:[#allocation2 + $0x30] sm:$0xff] 0.0
    %26 = vst [vmem:[#allocation2 + $0x38] sm:$0xff] 0.0
    %27 = vst [vmem:[#allocation2 + $0x40] sm:$0xff] 0.0
    %28 = vst [vmem:[#allocation2 + $0x48] sm:$0xff] 0.0
    %29 = vst [vmem:[#allocation2 + $0x50] sm:$0xff] 0.0
    %30 = vst [vmem:[#allocation2 + $0x58] sm:$0xff] 0.0
    %31 = vst [vmem:[#allocation2 + $0x60] sm:$0xff] 0.0
    %32 = vst [vmem:[#allocation2 + $0x68] sm:$0xff] 0.0
    %33 = vst [vmem:[#allocation2 + $0x70] sm:$0xff] 0.0
    %34 = vst [vmem:[#allocation2 + $0x78] sm:$0xff] 0.0
  $region17: #{_forward.59} parent=0 // pred_fallthru
    _
  %v35 = vld [vmem:[#allocation2] sm:$0xff]
  %v36 = vld [vmem:[#allocation2 + $0x8] sm:$0xff]
  %v37 = vld [vmem:[#allocation2 + $0x10] sm:$0xff]
  %v38 = vld [vmem:[#allocation2 + $0x18] sm:$0xff]
  %v39 = vld [vmem:[#allocation2 + $0x20] sm:$0xff]
  %v40 = vld [vmem:[#allocation2 + $0x28] sm:$0xff]
  %v41 = vld [vmem:[#allocation2 + $0x30] sm:$0xff]
  %v42 = vld [vmem:[#allocation2 + $0x38] sm:$0xff]
  %v43 = vld [vmem:[#allocation2 + $0x40] sm:$0xff]
  %v44 = vld [vmem:[#allocation2 + $0x48] sm:$0xff]
  %v45 = vld [vmem:[#allocation2 + $0x50] sm:$0xff]
  %v46 = vld [vmem:[#allocation2 + $0x58] sm:$0xff]
  %v47 = vld [vmem:[#allocation2 + $0x60] sm:$0xff]
  %v48 = vld [vmem:[#allocation2 + $0x68] sm:$0xff]
  %v49 = vld [vmem:[#allocation2 + $0x70] sm:$0xff]
  %v50 = vld [vmem:[#allocation2 + $0x78] sm:$0xff]
  %v51 = vld [vmem:[%s0] sm:$0xf]
  %v52 = vld [vmem:[%s0 + $0x4] sm:$0xf]
  %v53 = vld [vmem:[%s0 + $0x8] sm:$0xf]
  %v54 = vld [vmem:[%s0 + $0xc] sm:$0xf]
  %v55 = vld [vmem:[%s0 + $0x10] sm:$0xf]
  %v56 = vld [vmem:[%s0 + $0x14] sm:$0xf]
  %v57 = vld [vmem:[%s0 + $0x18] sm:$0xf]
  %v58 = vld [vmem:[%s0 + $0x1c] sm:$0xf]
  %v59 = vld [vmem:[%s0 + $0x20] sm:$0xf]
  %v60 = vld [vmem:[%s0 + $0x24] sm:$0xf]
  %v61 = vld [vmem:[%s0 + $0x28] sm:$0xf]
  %v62 = vld [vmem:[%s0 + $0x2c] sm:$0xf]
  %v63 = vld [vmem:[%s0 + $0x30] sm:$0xf]
  %v64 = vld [vmem:[%s0 + $0x34] sm:$0xf]
  %v65 = vld [vmem:[%s0 + $0x38] sm:$0xf]
  %v66 = vld [vmem:[%s0 + $0x3c] sm:$0xf]
  %v67 = vld [vmem:[%s1] sm:$0xf]
  %v68 = vld [vmem:[%s1 + $0x4] sm:$0xf]
  %v69 = vld [vmem:[%s1 + $0x8] sm:$0xf]
  %v70 = vld [vmem:[%s1 + $0xc] sm:$0xf]
  %v71 = vld [vmem:[%s1 + $0x10] sm:$0xf]
  %v72 = vld [vmem:[%s1 + $0x14] sm:$0xf]
  %v73 = vld [vmem:[%s1 + $0x18] sm:$0xf]
  %v74 = vld [vmem:[%s1 + $0x1c] sm:$0xf]
  %v75 = vld [vmem:[%s1 + $0x20] sm:$0xf]
  %v76 = vld [vmem:[%s1 + $0x24] sm:$0xf]
  %v77 = vld [vmem:[%s1 + $0x28] sm:$0xf]
  %v78 = vld [vmem:[%s1 + $0x2c] sm:$0xf]
  %v79 = vld [vmem:[%s1 + $0x30] sm:$0xf]
  %v80 = vld [vmem:[%s1 + $0x34] sm:$0xf]
  %v81 = vld [vmem:[%s1 + $0x38] sm:$0xf]
  %v82 = vld [vmem:[%s1 + $0x3c] sm:$0xf]
  %v99 = vunpack.c.l.b16 %v51
  %v100 = vunpack.c.l.b16 %v52
  %v101 = vunpack.c.l.b16 %v53
  %v102 = vunpack.c.l.b16 %v54
  %v103 = vunpack.c.l.b16 %v55
  %v104 = vunpack.c.l.b16 %v56
  %v105 = vunpack.c.l.b16 %v57
  %v106 = vunpack.c.l.b16 %v58
  %v107 = vunpack.c.l.b16 %v59
  %v108 = vunpack.c.l.b16 %v60
  %v109 = vunpack.c.l.b16 %v61
  %v110 = vunpack.c.l.b16 %v62
  %v111 = vunpack.c.l.b16 %v63
  %v112 = vunpack.c.l.b16 %v64
  %v113 = vunpack.c.l.b16 %v65
  %v114 = vunpack.c.l.b16 %v66
  %v115 = vpack.c.b16 %v100, %v99
  %v116 = vpack.c.b16 %v102, %v101
  %v117 = vpack.c.b16 %v104, %v103
  %v118 = vpack.c.b16 %v106, %v105
  %v119 = vpack.c.b16 %v108, %v107
  %v120 = vpack.c.b16 %v110, %v109
  %v121 = vpack.c.b16 %v112, %v111
  %v122 = vpack.c.b16 %v114, %v113
  %v147 = vunpack.c.l.b16 %v67
  %v148 = vunpack.c.l.b16 %v68
  %v149 = vunpack.c.l.b16 %v69
  %v150 = vunpack.c.l.b16 %v70
  %v151 = vunpack.c.l.b16 %v71
  %v152 = vunpack.c.l.b16 %v72
  %v153 = vunpack.c.l.b16 %v73
  %v154 = vunpack.c.l.b16 %v74
  %v155 = vunpack.c.l.b16 %v75
  %v156 = vunpack.c.l.b16 %v76
  %v157 = vunpack.c.l.b16 %v77
  %v158 = vunpack.c.l.b16 %v78
  %v159 = vunpack.c.l.b16 %v79
  %v160 = vunpack.c.l.b16 %v80
  %v161 = vunpack.c.l.b16 %v81
  %v162 = vunpack.c.l.b16 %v82
  %v163 = vpack.c.b16 %v148, %v147
  %v164 = vpack.c.b16 %v150, %v149
  %v165 = vpack.c.b16 %v152, %v151
  %v166 = vpack.c.b16 %v154, %v153
  %v167 = vpack.c.b16 %v156, %v155
  %v168 = vpack.c.b16 %v158, %v157
  %v169 = vpack.c.b16 %v160, %v159
  %v170 = vpack.c.b16 %v162, %v161
  %179 = vmatprep.subr.bf16.mxu0 0
  %180 = vmatpush1.bf16.msra.mxu0 %v170
  %181 = vmatprep.subr.bf16.mxu0 0
  %182 = vmatpush1.bf16.msra.mxu0 %v169
  %183 = vmatprep.subr.bf16.mxu0 0
  %184 = vmatpush1.bf16.msra.mxu0 %v168
  %185 = vmatprep.subr.bf16.mxu0 0
  %186 = vmatpush1.bf16.msra.mxu0 %v167
  %187 = vmatprep.subr.bf16.mxu0 0
  %188 = vmatpush1.bf16.msra.mxu0 %v166
  %189 = vmatprep.subr.bf16.mxu0 0
  %190 = vmatpush1.bf16.msra.mxu0 %v165
  %191 = vmatprep.subr.bf16.mxu0 0
  %192 = vmatpush1.bf16.msra.mxu0 %v164
  %193 = vmatprep.subr.bf16.mxu0 0
  %194 = vmatpush1.bf16.msra.mxu0 %v163
  %195 = vmatprep.subr.bf16.mxu0 0
  %196 = vmatpush2.bf16.msra.mxu0 0
  %197 = vmatprep.subr.bf16.mxu0 0
  %198 = vmatpush2.bf16.msra.mxu0 0
  %199 = vmatprep.subr.bf16.mxu0 0
  %200 = vmatpush2.bf16.msra.mxu0 0
  %201 = vmatprep.subr.bf16.mxu0 0
  %202 = vmatpush2.bf16.msra.mxu0 0
  %203 = vmatprep.subr.bf16.mxu0 0
  %204 = vmatpush2.bf16.msra.mxu0 0
  %205 = vmatprep.subr.bf16.mxu0 0
  %206 = vmatpush2.bf16.msra.mxu0 0
  %207 = vmatprep.subr.bf16.mxu0 0
  %208 = vmatpush2.bf16.msra.mxu0 0
  %209 = vmatprep.subr.bf16.mxu0 0
  %210 = vmatpush2.bf16.msra.mxu0 0
  %211 = vmatprep.mubr.bf16.mxu0 0
  %212 = vmatmul.mubr.bf16.gmra.mxu0 %v115
  %v213 = vpop.f32.mrf.mxu0
  %v214 = vadd.f32 0.0, %v213
  %v215 = vpop.f32.mrf.mxu0
  %v216 = vpop.f32.mrf.mxu0
  %v217 = vadd.f32 0.0, %v216
  %v218 = vpop.f32.mrf.mxu0
  %219 = vmatprep.mubr.bf16.mxu0 0
  %220 = vmatmul.mubr.bf16.gmra.mxu0 %v116
  %v221 = vpop.f32.mrf.mxu0
  %v222 = vadd.f32 0.0, %v221
  %v223 = vpop.f32.mrf.mxu0
  %v224 = vpop.f32.mrf.mxu0
  %v225 = vadd.f32 0.0, %v224
  %v226 = vpop.f32.mrf.mxu0
  %227 = vmatprep.mubr.bf16.mxu0 0
  %228 = vmatmul.mubr.bf16.gmra.mxu0 %v117
  %v229 = vpop.f32.mrf.mxu0
  %v230 = vadd.f32 0.0, %v229
  %v231 = vpop.f32.mrf.mxu0
  %v232 = vpop.f32.mrf.mxu0
  %v233 = vadd.f32 0.0, %v232
  %v234 = vpop.f32.mrf.mxu0
  %235 = vmatprep.mubr.bf16.mxu0 0
  %236 = vmatmul.mubr.bf16.gmra.mxu0 %v118
  %v237 = vpop.f32.mrf.mxu0
  %v238 = vadd.f32 0.0, %v237
  %v239 = vpop.f32.mrf.mxu0
  %v240 = vpop.f32.mrf.mxu0
  %v241 = vadd.f32 0.0, %v240
  %v242 = vpop.f32.mrf.mxu0
  %243 = vmatprep.mubr.bf16.mxu0 0
  %244 = vmatmul.mubr.bf16.gmra.mxu0 %v119
  %v245 = vpop.f32.mrf.mxu0
  %v246 = vadd.f32 0.0, %v245
  %v247 = vpop.f32.mrf.mxu0
  %v248 = vpop.f32.mrf.mxu0
  %v249 = vadd.f32 0.0, %v248
  %v250 = vpop.f32.mrf.mxu0
  %251 = vmatprep.mubr.bf16.mxu0 0
  %252 = vmatmul.mubr.bf16.gmra.mxu0 %v120
  %v253 = vpop.f32.mrf.mxu0
  %v254 = vadd.f32 0.0, %v253
  %v255 = vpop.f32.mrf.mxu0
  %v256 = vpop.f32.mrf.mxu0
  %v257 = vadd.f32 0.0, %v256
  %v258 = vpop.f32.mrf.mxu0
  %259 = vmatprep.mubr.bf16.mxu0 0
  %260 = vmatmul.mubr.bf16.gmra.mxu0 %v121
  %v261 = vpop.f32.mrf.mxu0
  %v262 = vadd.f32 0.0, %v261
  %v263 = vpop.f32.mrf.mxu0
  %v264 = vpop.f32.mrf.mxu0
  %v265 = vadd.f32 0.0, %v264
  %v266 = vpop.f32.mrf.mxu0
  %267 = vmatprep.mubr.bf16.mxu0 0
  %268 = vmatmul.mubr.bf16.gmra.mxu0 %v122
  %v269 = vpop.f32.mrf.mxu0
  %v270 = vadd.f32 0.0, %v269
  %v271 = vpop.f32.mrf.mxu0
  %v272 = vpop.f32.mrf.mxu0
  %v273 = vadd.f32 0.0, %v272
  %v274 = vpop.f32.mrf.mxu0
  %275 = vdwg.mxu0
  %v276 = vadd.f32 %v35, %v214
  %v277 = vadd.f32 %v36, %v217
  %v278 = vadd.f32 %v37, %v222
  %v279 = vadd.f32 %v38, %v225
  %v280 = vadd.f32 %v39, %v230
  %v281 = vadd.f32 %v40, %v233
  %v282 = vadd.f32 %v41, %v238
  %v283 = vadd.f32 %v42, %v241
  %v284 = vadd.f32 %v43, %v246
  %v285 = vadd.f32 %v44, %v249
  %v286 = vadd.f32 %v45, %v254
  %v287 = vadd.f32 %v46, %v257
  %v288 = vadd.f32 %v47, %v262
  %v289 = vadd.f32 %v48, %v265
  %v290 = vadd.f32 %v49, %v270
  %v291 = vadd.f32 %v50, %v273
  %292 = vst [vmem:[#allocation2] sm:$0xff] %v276
  %293 = vst [vmem:[#allocation2 + $0x8] sm:$0xff] %v277
  %294 = vst [vmem:[#allocation2 + $0x10] sm:$0xff] %v278
  %295 = vst [vmem:[#allocation2 + $0x18] sm:$0xff] %v279
  %296 = vst [vmem:[#allocation2 + $0x20] sm:$0xff] %v280
  %297 = vst [vmem:[#allocation2 + $0x28] sm:$0xff] %v281
  %298 = vst [vmem:[#allocation2 + $0x30] sm:$0xff] %v282
  %299 = vst [vmem:[#allocation2 + $0x38] sm:$0xff] %v283
  %300 = vst [vmem:[#allocation2 + $0x40] sm:$0xff] %v284
  %301 = vst [vmem:[#allocation2 + $0x48] sm:$0xff] %v285
  %302 = vst [vmem:[#allocation2 + $0x50] sm:$0xff] %v286
  %303 = vst [vmem:[#allocation2 + $0x58] sm:$0xff] %v287
  %304 = vst [vmem:[#allocation2 + $0x60] sm:$0xff] %v288
  %305 = vst [vmem:[#allocation2 + $0x68] sm:$0xff] %v289
  %306 = vst [vmem:[#allocation2 + $0x70] sm:$0xff] %v290
  %307 = vst [vmem:[#allocation2 + $0x78] sm:$0xff] %v291
  // Predicated region
  $region18: #{_forward.59} parent=0 // pred_check
    %p308 = pneg %p15
  $region19: #{_forward.59} parent=0 // pred_check_branch
    %310 = sbr.rel (%p308) target = $region21
  $region20: #{_forward.59} parent=0 // pred_region
    %v311 = vld [vmem:[#allocation2] sm:$0xff]
    %v312 = vld [vmem:[#allocation2 + $0x8] sm:$0xff]
    %v313 = vld [vmem:[#allocation2 + $0x10] sm:$0xff]
    %v314 = vld [vmem:[#allocation2 + $0x18] sm:$0xff]
    %v315 = vld [vmem:[#allocation2 + $0x20] sm:$0xff]
    %v316 = vld [vmem:[#allocation2 + $0x28] sm:$0xff]
    %v317 = vld [vmem:[#allocation2 + $0x30] sm:$0xff]
    %v318 = vld [vmem:[#allocation2 + $0x38] sm:$0xff]
    %v319 = vld [vmem:[#allocation2 + $0x40] sm:$0xff]
    %v320 = vld [vmem:[#allocation2 + $0x48] sm:$0xff]
    %v321 = vld [vmem:[#allocation2 + $0x50] sm:$0xff]
    %v322 = vld [vmem:[#allocation2 + $0x58] sm:$0xff]
    %v323 = vld [vmem:[#allocation2 + $0x60] sm:$0xff]
    %v324 = vld [vmem:[#allocation2 + $0x68] sm:$0xff]
    %v325 = vld [vmem:[#allocation2 + $0x70] sm:$0xff]
    %v326 = vld [vmem:[#allocation2 + $0x78] sm:$0xff]
    %v327 = vld [vmem:[%s2] sm:$0x1]
    %v329 = vlaneseq
    %v330 = vshrl.u32 %v329, 7
    %v331 = vsub.s32 0, %v330
    %v332 = vrot.slane %v327, %v331
    %v334 = vadd.f32 %v311, %v332
    %v335 = vadd.f32 %v312, %v332
    %v336 = vadd.f32 %v313, %v332
    %v337 = vadd.f32 %v314, %v332
    %v338 = vadd.f32 %v315, %v332
    %v339 = vadd.f32 %v316, %v332
    %v340 = vadd.f32 %v317, %v332
    %v341 = vadd.f32 %v318, %v332
    %v342 = vadd.f32 %v319, %v332
    %v343 = vadd.f32 %v320, %v332
    %v344 = vadd.f32 %v321, %v332
    %v345 = vadd.f32 %v322, %v332
    %v346 = vadd.f32 %v323, %v332
    %v347 = vadd.f32 %v324, %v332
    %v348 = vadd.f32 %v325, %v332
    %v349 = vadd.f32 %v326, %v332
    %vm350 = vcmp.gt.f32.partialorder %v334, 0.0
    %vm351 = vcmp.gt.f32.partialorder %v335, 0.0
    %vm352 = vcmp.gt.f32.partialorder %v336, 0.0
    %vm353 = vcmp.gt.f32.partialorder %v337, 0.0
    %vm354 = vcmp.gt.f32.partialorder %v338, 0.0
    %vm355 = vcmp.gt.f32.partialorder %v339, 0.0
    %vm356 = vcmp.gt.f32.partialorder %v340, 0.0
    %vm357 = vcmp.gt.f32.partialorder %v341, 0.0
    %vm358 = vcmp.gt.f32.partialorder %v342, 0.0
    %vm359 = vcmp.gt.f32.partialorder %v343, 0.0
    %vm360 = vcmp.gt.f32.partialorder %v344, 0.0
    %vm361 = vcmp.gt.f32.partialorder %v345, 0.0
    %vm362 = vcmp.gt.f32.partialorder %v346, 0.0
    %vm363 = vcmp.gt.f32.partialorder %v347, 0.0
    %vm364 = vcmp.gt.f32.partialorder %v348, 0.0
    %vm365 = vcmp.gt.f32.partialorder %v349, 0.0
    %v366 = vmul.f32 %v334, 0.01
    %v367 = vmul.f32 %v335, 0.01
    %v368 = vmul.f32 %v336, 0.01
    %v369 = vmul.f32 %v337, 0.01
    %v370 = vmul.f32 %v338, 0.01
    %v371 = vmul.f32 %v339, 0.01
    %v372 = vmul.f32 %v340, 0.01
    %v373 = vmul.f32 %v341, 0.01
    %v374 = vmul.f32 %v342, 0.01
    %v375 = vmul.f32 %v343, 0.01
    %v376 = vmul.f32 %v344, 0.01
    %v377 = vmul.f32 %v345, 0.01
    %v378 = vmul.f32 %v346, 0.01
    %v379 = vmul.f32 %v347, 0.01
    %v380 = vmul.f32 %v348, 0.01
    %v381 = vmul.f32 %v349, 0.01
    %v382 = vsel %vm350, %v334, %v366
    %v383 = vsel %vm351, %v335, %v367
    %v384 = vsel %vm352, %v336, %v368
    %v385 = vsel %vm353, %v337, %v369
    %v386 = vsel %vm354, %v338, %v370
    %v387 = vsel %vm355, %v339, %v371
    %v388 = vsel %vm356, %v340, %v372
    %v389 = vsel %vm357, %v341, %v373
    %v390 = vsel %vm358, %v342, %v374
    %v391 = vsel %vm359, %v343, %v375
    %v392 = vsel %vm360, %v344, %v376
    %v393 = vsel %vm361, %v345, %v377
    %v394 = vsel %vm362, %v346, %v378
    %v395 = vsel %vm363, %v347, %v379
    %v396 = vsel %vm364, %v348, %v380
    %v397 = vsel %vm365, %v349, %v381
    %398 = vst [vmem:[%s3] sm:$0xff] %v382
    %399 = vst [vmem:[%s3 + $0x8] sm:$0xff] %v383
    %400 = vst [vmem:[%s3 + $0x10] sm:$0xff] %v384
    %401 = vst [vmem:[%s3 + $0x18] sm:$0xff] %v385
    %402 = vst [vmem:[%s3 + $0x20] sm:$0xff] %v386
    %403 = vst [vmem:[%s3 + $0x28] sm:$0xff] %v387
    %404 = vst [vmem:[%s3 + $0x30] sm:$0xff] %v388
    %405 = vst [vmem:[%s3 + $0x38] sm:$0xff] %v389
    %406 = vst [vmem:[%s3 + $0x40] sm:$0xff] %v390
    %407 = vst [vmem:[%s3 + $0x48] sm:$0xff] %v391
    %408 = vst [vmem:[%s3 + $0x50] sm:$0xff] %v392
    %409 = vst [vmem:[%s3 + $0x58] sm:$0xff] %v393
    %410 = vst [vmem:[%s3 + $0x60] sm:$0xff] %v394
    %411 = vst [vmem:[%s3 + $0x68] sm:$0xff] %v395
    %412 = vst [vmem:[%s3 + $0x70] sm:$0xff] %v396
    %413 = vst [vmem:[%s3 + $0x78] sm:$0xff] %v397
  $region21: #{_forward.59} parent=0 // pred_fallthru
    _
  // Predicated region
  $region22: #{_forward.59} parent=0 // pred_check
    _
  $region23: #{_forward.59} parent=0 // pred_check_branch
    %415 = sbr.rel (0) target = $region25
  $region24: #{_forward.59} parent=0 // pred_region
    _
  $region25: #{_forward.59} parent=0 // pred_fallthru
    _
  // Predicated region
  $region26: #{_forward.59} parent=0 // pred_check
    _
  $region27: #{_forward.59} parent=0 // pred_check_branch
    %417 = sbr.rel (0) target = $region29
  $region28: #{_forward.59} parent=0 // pred_region
    _
  $region29: #{_forward.59} parent=0 // pred_fallthru
    _

// kernel: _forward.62
$region0: #{_forward.62}
  #allocation0 [shape = 'u32[]', space=smem, size = 0x4, offset = 0x4, fixed_abs, tag = 'smem constant byte address 0x4 - core index']
  #allocation1 [shape = 'u32[144,128]{1,0:T(1,128)}', space=vmem, size = 0x12000, scoped, tag = 'internal scratch']
  %s0 = inlined_call_operand.vmem [shape: f32[128,128], index: 0, kind: input, shape index: {}]
  %s1 = inlined_call_operand.vmem [shape: f32[128,128], index: 1, kind: input, shape index: {}]
  %s2 = inlined_call_operand.vmem [shape: f32[1,128], index: 2, kind: input, shape index: {}]
  %s3 = inlined_call_operand.vmem [shape: f32[128,128], index: 3, kind: input, shape index: {}]
  %s4 = inlined_call_operand.vmem [shape: f32[128,128], index: 4, kind: output, shape index: {}]
  %s5 = sld [smem:[#allocation0]]
  $region26: #{_forward.62} parent=0
    _
  %s7 = ssub.s32 1, %s5
  %s8 = scalar_select 0, %s7, %s5
  // Predicated region
  $region2: #{_forward.62} parent=0 // pred_check
    _
  $region3: #{_forward.62} parent=0 // pred_check_branch
    %10 = sbr.rel (0) target = $region5
  $region4: #{_forward.62} parent=0 // pred_region
    _
  $region5: #{_forward.62} parent=0 // pred_fallthru
    _
  // Predicated region
  $region6: #{_forward.62} parent=0 // pred_check
    _
  $region7: #{_forward.62} parent=0 // pred_check_branch
    %12 = sbr.rel (0) target = $region9
  $region8: #{_forward.62} parent=0 // pred_region
    _
  $region9: #{_forward.62} parent=0 // pred_fallthru
    _
  // Predicated region
  $region10: #{_forward.62} parent=0 // pred_check
    _
  $region11: #{_forward.62} parent=0 // pred_check_branch
    %14 = sbr.rel (0) target = $region13
  $region12: #{_forward.62} parent=0 // pred_region
    _
  $region13: #{_forward.62} parent=0 // pred_fallthru
    _
  // Predicated region
  $region14: #{_forward.62} parent=0 // pred_check
    _
  $region15: #{_forward.62} parent=0 // pred_check_branch
    %16 = sbr.rel (0) target = $region17
  $region16: #{_forward.62} parent=0 // pred_region
    _
  $region17: #{_forward.62} parent=0 // pred_fallthru
    _
  %v17 = vld [vmem:[%s0] sm:$0xff]
  %v18 = vld [vmem:[%s0 + $0x8] sm:$0xff]
  %v19 = vld [vmem:[%s0 + $0x10] sm:$0xff]
  %v20 = vld [vmem:[%s0 + $0x18] sm:$0xff]
  %v21 = vld [vmem:[%s0 + $0x20] sm:$0xff]
  %v22 = vld [vmem:[%s0 + $0x28] sm:$0xff]
  %v23 = vld [vmem:[%s0 + $0x30] sm:$0xff]
  %v24 = vld [vmem:[%s0 + $0x38] sm:$0xff]
  %v25 = vld [vmem:[%s0 + $0x40] sm:$0xff]
  %v26 = vld [vmem:[%s0 + $0x48] sm:$0xff]
  %v27 = vld [vmem:[%s0 + $0x50] sm:$0xff]
  %v28 = vld [vmem:[%s0 + $0x58] sm:$0xff]
  %v29 = vld [vmem:[%s0 + $0x60] sm:$0xff]
  %v30 = vld [vmem:[%s0 + $0x68] sm:$0xff]
  %v31 = vld [vmem:[%s0 + $0x70] sm:$0xff]
  %v32 = vld [vmem:[%s0 + $0x78] sm:$0xff]
  %v33 = vmul.f32 %v17, %v17
  %v34 = vmul.f32 %v18, %v18
  %v35 = vmul.f32 %v19, %v19
  %v36 = vmul.f32 %v20, %v20
  %v37 = vmul.f32 %v21, %v21
  %v38 = vmul.f32 %v22, %v22
  %v39 = vmul.f32 %v23, %v23
  %v40 = vmul.f32 %v24, %v24
  %v41 = vmul.f32 %v25, %v25
  %v42 = vmul.f32 %v26, %v26
  %v43 = vmul.f32 %v27, %v27
  %v44 = vmul.f32 %v28, %v28
  %v45 = vmul.f32 %v29, %v29
  %v46 = vmul.f32 %v30, %v30
  %v47 = vmul.f32 %v31, %v31
  %v48 = vmul.f32 %v32, %v32
  %v49 = vld [vmem:[%s1] sm:$0xff]
  %v50 = vld [vmem:[%s1 + $0x8] sm:$0xff]
  %v51 = vld [vmem:[%s1 + $0x10] sm:$0xff]
  %v52 = vld [vmem:[%s1 + $0x18] sm:$0xff]
  %v53 = vld [vmem:[%s1 + $0x20] sm:$0xff]
  %v54 = vld [vmem:[%s1 + $0x28] sm:$0xff]
  %v55 = vld [vmem:[%s1 + $0x30] sm:$0xff]
  %v56 = vld [vmem:[%s1 + $0x38] sm:$0xff]
  %v57 = vld [vmem:[%s1 + $0x40] sm:$0xff]
  %v58 = vld [vmem:[%s1 + $0x48] sm:$0xff]
  %v59 = vld [vmem:[%s1 + $0x50] sm:$0xff]
  %v60 = vld [vmem:[%s1 + $0x58] sm:$0xff]
  %v61 = vld [vmem:[%s1 + $0x60] sm:$0xff]
  %v62 = vld [vmem:[%s1 + $0x68] sm:$0xff]
  %v63 = vld [vmem:[%s1 + $0x70] sm:$0xff]
  %v64 = vld [vmem:[%s1 + $0x78] sm:$0xff]
  %v65 = vld [vmem:[%s2] sm:$0x1]
  %v67 = vlaneseq
  %v68 = vshrl.u32 %v67, 7
  %v69 = vsub.s32 0, %v68
  %v70 = vrot.slane %v65, %v69
  %72 = vmatprep.subr.mxu0 0.0
  %73 = vmatpush1.msra.mxu0 %v64
  %74 = vmatprep.subr.mxu0 0.0
  %75 = vmatpush1.msra.mxu0 %v63
  %76 = vmatprep.subr.mxu0 0.0
  %77 = vmatpush1.msra.mxu0 %v62
  %78 = vmatprep.subr.mxu0 0.0
  %79 = vmatpush1.msra.mxu0 %v61
  %80 = vmatprep.subr.mxu0 0.0
  %81 = vmatpush1.msra.mxu0 %v60
  %82 = vmatprep.subr.mxu0 0.0
  %83 = vmatpush1.msra.mxu0 %v59
  %84 = vmatprep.subr.mxu0 0.0
  %85 = vmatpush1.msra.mxu0 %v58
  %86 = vmatprep.subr.mxu0 0.0
  %87 = vmatpush1.msra.mxu0 %v57
  %88 = vmatprep.subr.mxu0 0.0
  %89 = vmatpush1.msra.mxu0 %v56
  %90 = vmatprep.subr.mxu0 0.0
  %91 = vmatpush1.msra.mxu0 %v55
  %92 = vmatprep.subr.mxu0 0.0
  %93 = vmatpush1.msra.mxu0 %v54
  %94 = vmatprep.subr.mxu0 0.0
  %95 = vmatpush1.msra.mxu0 %v53
  %96 = vmatprep.subr.mxu0 0.0
  %97 = vmatpush1.msra.mxu0 %v52
  %98 = vmatprep.subr.mxu0 0.0
  %99 = vmatpush1.msra.mxu0 %v51
  %100 = vmatprep.subr.mxu0 0.0
  %101 = vmatpush1.msra.mxu0 %v50
  %102 = vmatprep.subr.mxu0 0.0
  %103 = vmatpush1.msra.mxu0 %v49
  %104 = vmatprep.subr.mxu0 0.0
  %105 = vmatpush2.msra.mxu0 0.0
  %106 = vmatprep.subr.mxu0 0.0
  %107 = vmatpush2.msra.mxu0 0.0
  %108 = vmatprep.subr.mxu0 0.0
  %109 = vmatpush2.msra.mxu0 0.0
  %110 = vmatprep.subr.mxu0 0.0
  %111 = vmatpush2.msra.mxu0 0.0
  %112 = vmatprep.subr.mxu0 0.0
  %113 = vmatpush2.msra.mxu0 0.0
  %114 = vmatprep.subr.mxu0 0.0
  %115 = vmatpush2.msra.mxu0 0.0
  %116 = vmatprep.subr.mxu0 0.0
  %117 = vmatpush2.msra.mxu0 0.0
  %118 = vmatprep.subr.mxu0 0.0
  %119 = vmatpush2.msra.mxu0 0.0
  %120 = vmatprep.subr.mxu0 0.0
  %121 = vmatpush2.msra.mxu0 0.0
  %122 = vmatprep.subr.mxu0 0.0
  %123 = vmatpush2.msra.mxu0 0.0
  %124 = vmatprep.subr.mxu0 0.0
  %125 = vmatpush2.msra.mxu0 0.0
  %126 = vmatprep.subr.mxu0 0.0
  %127 = vmatpush2.msra.mxu0 0.0
  %128 = vmatprep.subr.mxu0 0.0
  %129 = vmatpush2.msra.mxu0 0.0
  %130 = vmatprep.subr.mxu0 0.0
  %131 = vmatpush2.msra.mxu0 0.0
  %132 = vmatprep.subr.mxu0 0.0
  %133 = vmatpush2.msra.mxu0 0.0
  %134 = vmatprep.subr.mxu0 0.0
  %135 = vmatpush2.msra.mxu0 0.0
  %136 = vmatprep.mubr.f32.mxu0 0.0
  %137 = vmatmul.mubr.f32.gmra.mxu0 %v33
  %v138 = vpop.f32.mrf.mxu0
  %v139 = vadd.f32 %v70, %v138
  %v140 = vpop.f32.mrf.mxu0
  %141 = vmatprep.mubr.f32.mxu0 0.0
  %142 = vmatmul.mubr.f32.gmra.mxu0 %v34
  %v143 = vpop.f32.mrf.mxu0
  %v144 = vadd.f32 %v70, %v143
  %v145 = vpop.f32.mrf.mxu0
  %146 = vmatprep.mubr.f32.mxu0 0.0
  %147 = vmatmul.mubr.f32.gmra.mxu0 %v35
  %v148 = vpop.f32.mrf.mxu0
  %v149 = vadd.f32 %v70, %v148
  %v150 = vpop.f32.mrf.mxu0
  %151 = vmatprep.mubr.f32.mxu0 0.0
  %152 = vmatmul.mubr.f32.gmra.mxu0 %v36
  %v153 = vpop.f32.mrf.mxu0
  %v154 = vadd.f32 %v70, %v153
  %v155 = vpop.f32.mrf.mxu0
  %156 = vmatprep.mubr.f32.mxu0 0.0
  %157 = vmatmul.mubr.f32.gmra.mxu0 %v37
  %v158 = vpop.f32.mrf.mxu0
  %v159 = vadd.f32 %v70, %v158
  %v160 = vpop.f32.mrf.mxu0
  %161 = vmatprep.mubr.f32.mxu0 0.0
  %162 = vmatmul.mubr.f32.gmra.mxu0 %v38
  %v163 = vpop.f32.mrf.mxu0
  %v164 = vadd.f32 %v70, %v163
  %v165 = vpop.f32.mrf.mxu0
  %166 = vmatprep.mubr.f32.mxu0 0.0
  %167 = vmatmul.mubr.f32.gmra.mxu0 %v39
  %v168 = vpop.f32.mrf.mxu0
  %v169 = vadd.f32 %v70, %v168
  %v170 = vpop.f32.mrf.mxu0
  %171 = vmatprep.mubr.f32.mxu0 0.0
  %172 = vmatmul.mubr.f32.gmra.mxu0 %v40
  %v173 = vpop.f32.mrf.mxu0
  %v174 = vadd.f32 %v70, %v173
  %v175 = vpop.f32.mrf.mxu0
  %176 = vmatprep.mubr.f32.mxu0 0.0
  %177 = vmatmul.mubr.f32.gmra.mxu0 %v41
  %v178 = vpop.f32.mrf.mxu0
  %v179 = vadd.f32 %v70, %v178
  %v180 = vpop.f32.mrf.mxu0
  %181 = vmatprep.mubr.f32.mxu0 0.0
  %182 = vmatmul.mubr.f32.gmra.mxu0 %v42
  %v183 = vpop.f32.mrf.mxu0
  %v184 = vadd.f32 %v70, %v183
  %v185 = vpop.f32.mrf.mxu0
  %186 = vmatprep.mubr.f32.mxu0 0.0
  %187 = vmatmul.mubr.f32.gmra.mxu0 %v43
  %v188 = vpop.f32.mrf.mxu0
  %v189 = vadd.f32 %v70, %v188
  %v190 = vpop.f32.mrf.mxu0
  %191 = vmatprep.mubr.f32.mxu0 0.0
  %192 = vmatmul.mubr.f32.gmra.mxu0 %v44
  %v193 = vpop.f32.mrf.mxu0
  %v194 = vadd.f32 %v70, %v193
  %v195 = vpop.f32.mrf.mxu0
  %196 = vmatprep.mubr.f32.mxu0 0.0
  %197 = vmatmul.mubr.f32.gmra.mxu0 %v45
  %v198 = vpop.f32.mrf.mxu0
  %v199 = vadd.f32 %v70, %v198
  %v200 = vpop.f32.mrf.mxu0
  %201 = vmatprep.mubr.f32.mxu0 0.0
  %202 = vmatmul.mubr.f32.gmra.mxu0 %v46
  %v203 = vpop.f32.mrf.mxu0
  %v204 = vadd.f32 %v70, %v203
  %v205 = vpop.f32.mrf.mxu0
  %206 = vmatprep.mubr.f32.mxu0 0.0
  %207 = vmatmul.mubr.f32.gmra.mxu0 %v47
  %v208 = vpop.f32.mrf.mxu0
  %v209 = vadd.f32 %v70, %v208
  %v210 = vpop.f32.mrf.mxu0
  %211 = vmatprep.mubr.f32.mxu0 0.0
  %212 = vmatmul.mubr.f32.gmra.mxu0 %v48
  %v213 = vpop.f32.mrf.mxu0
  %v214 = vadd.f32 %v70, %v213
  %v215 = vpop.f32.mrf.mxu0
  %216 = vdwg.mxu0
  %v217 = vrsqrt.pop %v139
  %v218 = vrsqrt.pop %v144
  %v219 = vrsqrt.pop %v149
  %v220 = vrsqrt.pop %v154
  %v221 = vrsqrt.pop %v159
  %v222 = vrsqrt.pop %v164
  %v223 = vrsqrt.pop %v169
  %v224 = vrsqrt.pop %v174
  %v225 = vrsqrt.pop %v179
  %v226 = vrsqrt.pop %v184
  %v227 = vrsqrt.pop %v189
  %v228 = vrsqrt.pop %v194
  %v229 = vrsqrt.pop %v199
  %v230 = vrsqrt.pop %v204
  %v231 = vrsqrt.pop %v209
  %v232 = vrsqrt.pop %v214
  %v233 = vmul.f32 %v17, %v217
  %v234 = vmul.f32 %v18, %v218
  %v235 = vmul.f32 %v19, %v219
  %v236 = vmul.f32 %v20, %v220
  %v237 = vmul.f32 %v21, %v221
  %v238 = vmul.f32 %v22, %v222
  %v239 = vmul.f32 %v23, %v223
  %v240 = vmul.f32 %v24, %v224
  %v241 = vmul.f32 %v25, %v225
  %v242 = vmul.f32 %v26, %v226
  %v243 = vmul.f32 %v27, %v227
  %v244 = vmul.f32 %v28, %v228
  %v245 = vmul.f32 %v29, %v229
  %v246 = vmul.f32 %v30, %v230
  %v247 = vmul.f32 %v31, %v231
  %v248 = vmul.f32 %v32, %v232
  %v249 = vld [vmem:[%s3] sm:$0xff]
  %v250 = vld [vmem:[%s3 + $0x8] sm:$0xff]
  %v251 = vld [vmem:[%s3 + $0x10] sm:$0xff]
  %v252 = vld [vmem:[%s3 + $0x18] sm:$0xff]
  %v253 = vld [vmem:[%s3 + $0x20] sm:$0xff]
  %v254 = vld [vmem:[%s3 + $0x28] sm:$0xff]
  %v255 = vld [vmem:[%s3 + $0x30] sm:$0xff]
  %v256 = vld [vmem:[%s3 + $0x38] sm:$0xff]
  %v257 = vld [vmem:[%s3 + $0x40] sm:$0xff]
  %v258 = vld [vmem:[%s3 + $0x48] sm:$0xff]
  %v259 = vld [vmem:[%s3 + $0x50] sm:$0xff]
  %v260 = vld [vmem:[%s3 + $0x58] sm:$0xff]
  %v261 = vld [vmem:[%s3 + $0x60] sm:$0xff]
  %v262 = vld [vmem:[%s3 + $0x68] sm:$0xff]
  %v263 = vld [vmem:[%s3 + $0x70] sm:$0xff]
  %v264 = vld [vmem:[%s3 + $0x78] sm:$0xff]
  %v265 = vadd.f32 %v233, %v249
  %v266 = vadd.f32 %v234, %v250
  %v267 = vadd.f32 %v235, %v251
  %v268 = vadd.f32 %v236, %v252
  %v269 = vadd.f32 %v237, %v253
  %v270 = vadd.f32 %v238, %v254
  %v271 = vadd.f32 %v239, %v255
  %v272 = vadd.f32 %v240, %v256
  %v273 = vadd.f32 %v241, %v257
  %v274 = vadd.f32 %v242, %v258
  %v275 = vadd.f32 %v243, %v259
  %v276 = vadd.f32 %v244, %v260
  %v277 = vadd.f32 %v245, %v261
  %v278 = vadd.f32 %v246, %v262
  %v279 = vadd.f32 %v247, %v263
  %v280 = vadd.f32 %v248, %v264
  %281 = vst [vmem:[%s4] sm:$0xff] %v265
  %282 = vst [vmem:[%s4 + $0x8] sm:$0xff] %v266
  %283 = vst [vmem:[%s4 + $0x10] sm:$0xff] %v267
  %284 = vst [vmem:[%s4 + $0x18] sm:$0xff] %v268
  %285 = vst [vmem:[%s4 + $0x20] sm:$0xff] %v269
  %286 = vst [vmem:[%s4 + $0x28] sm:$0xff] %v270
  %287 = vst [vmem:[%s4 + $0x30] sm:$0xff] %v271
  %288 = vst [vmem:[%s4 + $0x38] sm:$0xff] %v272
  %289 = vst [vmem:[%s4 + $0x40] sm:$0xff] %v273
  %290 = vst [vmem:[%s4 + $0x48] sm:$0xff] %v274
  %291 = vst [vmem:[%s4 + $0x50] sm:$0xff] %v275
  %292 = vst [vmem:[%s4 + $0x58] sm:$0xff] %v276
  %293 = vst [vmem:[%s4 + $0x60] sm:$0xff] %v277
  %294 = vst [vmem:[%s4 + $0x68] sm:$0xff] %v278
  %295 = vst [vmem:[%s4 + $0x70] sm:$0xff] %v279
  %296 = vst [vmem:[%s4 + $0x78] sm:$0xff] %v280
  // Predicated region
  $region18: #{_forward.62} parent=0 // pred_check
    _
  $region19: #{_forward.62} parent=0 // pred_check_branch
    %298 = sbr.rel (0) target = $region21
  $region20: #{_forward.62} parent=0 // pred_region
    _
  $region21: #{_forward.62} parent=0 // pred_fallthru
    _
  // Predicated region
  $region22: #{_forward.62} parent=0 // pred_check
    _
  $region23: #{_forward.62} parent=0 // pred_check_branch
    %300 = sbr.rel (0) target = $region25
  $region24: #{_forward.62} parent=0 // pred_region
    _
  $region25: #{_forward.62} parent=0 // pred_fallthru
    _

// kernel: _forward.64
$region0: #{_forward.64}
  #allocation0 [shape = 'u32[]', space=smem, size = 0x4, offset = 0x4, fixed_abs, tag = 'smem constant byte address 0x4 - core index']
  #allocation1 [shape = 'u32[144,128]{1,0:T(1,128)}', space=vmem, size = 0x12000, scoped, tag = 'internal scratch']
  #allocation2 [shape = 'f32[128,128]{1,0:T(8,128)}', space=vmem, size = 0x10000, scoped, tag = 'scratch operand']
  %s0 = inlined_call_operand.vmem [shape: bf16[128,128], index: 0, kind: input, shape index: {}]
  %s1 = inlined_call_operand.vmem [shape: bf16[128,128], index: 1, kind: input, shape index: {}]
  %s2 = inlined_call_operand.vmem [shape: f32[1,128], index: 2, kind: input, shape index: {}]
  %s3 = inlined_call_operand.vmem [shape: f32[128,128], index: 3, kind: input, shape index: {}]
  %s4 = inlined_call_operand.vmem [shape: f32[128,128], index: 4, kind: output, shape index: {}]
  %s5 = sld [smem:[#allocation0]]
  $region34: #{_forward.64} parent=0
    _
  %s7 = ssub.s32 1, %s5
  %s8 = scalar_select 0, %s7, %s5
  // Predicated region
  $region2: #{_forward.64} parent=0 // pred_check
    _
  $region3: #{_forward.64} parent=0 // pred_check_branch
    %10 = sbr.rel (0) target = $region5
  $region4: #{_forward.64} parent=0 // pred_region
    _
  $region5: #{_forward.64} parent=0 // pred_fallthru
    _
  // Predicated region
  $region6: #{_forward.64} parent=0 // pred_check
    _
  $region7: #{_forward.64} parent=0 // pred_check_branch
    %12 = sbr.rel (0) target = $region9
  $region8: #{_forward.64} parent=0 // pred_region
    _
  $region9: #{_forward.64} parent=0 // pred_fallthru
    _
  // Predicated region
  $region10: #{_forward.64} parent=0 // pred_check
    _
  $region11: #{_forward.64} parent=0 // pred_check_branch
    %14 = sbr.rel (0) target = $region13
  $region12: #{_forward.64} parent=0 // pred_region
    _
  $region13: #{_forward.64} parent=0 // pred_fallthru
    _
  // Predicated region
  $region14: #{_forward.64} parent=0 // pred_check
    _
  $region15: #{_forward.64} parent=0 // pred_check_branch
    %16 = sbr.rel (0) target = $region17
  $region16: #{_forward.64} parent=0 // pred_region
    _
  $region17: #{_forward.64} parent=0 // pred_fallthru
    _
  %p18 = scmp.eq.s32.totalorder 0, 0
  // Predicated region
  $region18: #{_forward.64} parent=0 // pred_check
    %p19 = pneg %p18
  $region19: #{_forward.64} parent=0 // pred_check_branch
    %21 = sbr.rel (%p19) target = $region21
  $region20: #{_forward.64} parent=0 // pred_region
    %22 = vst [vmem:[#allocation2] sm:$0xff] 0.0
    %23 = vst [vmem:[#allocation2 + $0x8] sm:$0xff] 0.0
    %24 = vst [vmem:[#allocation2 + $0x10] sm:$0xff] 0.0
    %25 = vst [vmem:[#allocation2 + $0x18] sm:$0xff] 0.0
    %26 = vst [vmem:[#allocation2 + $0x20] sm:$0xff] 0.0
    %27 = vst [vmem:[#allocation2 + $0x28] sm:$0xff] 0.0
    %28 = vst [vmem:[#allocation2 + $0x30] sm:$0xff] 0.0
    %29 = vst [vmem:[#allocation2 + $0x38] sm:$0xff] 0.0
    %30 = vst [vmem:[#allocation2 + $0x40] sm:$0xff] 0.0
    %31 = vst [vmem:[#allocation2 + $0x48] sm:$0xff] 0.0
    %32 = vst [vmem:[#allocation2 + $0x50] sm:$0xff] 0.0
    %33 = vst [vmem:[#allocation2 + $0x58] sm:$0xff] 0.0
    %34 = vst [vmem:[#allocation2 + $0x60] sm:$0xff] 0.0
    %35 = vst [vmem:[#allocation2 + $0x68] sm:$0xff] 0.0
    %36 = vst [vmem:[#allocation2 + $0x70] sm:$0xff] 0.0
    %37 = vst [vmem:[#allocation2 + $0x78] sm:$0xff] 0.0
  $region21: #{_forward.64} parent=0 // pred_fallthru
    _
  %v38 = vld [vmem:[#allocation2] sm:$0xff]
  %v39 = vld [vmem:[#allocation2 + $0x8] sm:$0xff]
  %v40 = vld [vmem:[#allocation2 + $0x10] sm:$0xff]
  %v41 = vld [vmem:[#allocation2 + $0x18] sm:$0xff]
  %v42 = vld [vmem:[#allocation2 + $0x20] sm:$0xff]
  %v43 = vld [vmem:[#allocation2 + $0x28] sm:$0xff]
  %v44 = vld [vmem:[#allocation2 + $0x30] sm:$0xff]
  %v45 = vld [vmem:[#allocation2 + $0x38] sm:$0xff]
  %v46 = vld [vmem:[#allocation2 + $0x40] sm:$0xff]
  %v47 = vld [vmem:[#allocation2 + $0x48] sm:$0xff]
  %v48 = vld [vmem:[#allocation2 + $0x50] sm:$0xff]
  %v49 = vld [vmem:[#allocation2 + $0x58] sm:$0xff]
  %v50 = vld [vmem:[#allocation2 + $0x60] sm:$0xff]
  %v51 = vld [vmem:[#allocation2 + $0x68] sm:$0xff]
  %v52 = vld [vmem:[#allocation2 + $0x70] sm:$0xff]
  %v53 = vld [vmem:[#allocation2 + $0x78] sm:$0xff]
  %v54 = vld [vmem:[%s0] sm:$0xf]
  %v55 = vld [vmem:[%s0 + $0x4] sm:$0xf]
  %v56 = vld [vmem:[%s0 + $0x8] sm:$0xf]
  %v57 = vld [vmem:[%s0 + $0xc] sm:$0xf]
  %v58 = vld [vmem:[%s0 + $0x10] sm:$0xf]
  %v59 = vld [vmem:[%s0 + $0x14] sm:$0xf]
  %v60 = vld [vmem:[%s0 + $0x18] sm:$0xf]
  %v61 = vld [vmem:[%s0 + $0x1c] sm:$0xf]
  %v62 = vld [vmem:[%s0 + $0x20] sm:$0xf]
  %v63 = vld [vmem:[%s0 + $0x24] sm:$0xf]
  %v64 = vld [vmem:[%s0 + $0x28] sm:$0xf]
  %v65 = vld [vmem:[%s0 + $0x2c] sm:$0xf]
  %v66 = vld [vmem:[%s0 + $0x30] sm:$0xf]
  %v67 = vld [vmem:[%s0 + $0x34] sm:$0xf]
  %v68 = vld [vmem:[%s0 + $0x38] sm:$0xf]
  %v69 = vld [vmem:[%s0 + $0x3c] sm:$0xf]
  %v70 = vld [vmem:[%s1] sm:$0xf]
  %v71 = vld [vmem:[%s1 + $0x4] sm:$0xf]
  %v72 = vld [vmem:[%s1 + $0x8] sm:$0xf]
  %v73 = vld [vmem:[%s1 + $0xc] sm:$0xf]
  %v74 = vld [vmem:[%s1 + $0x10] sm:$0xf]
  %v75 = vld [vmem:[%s1 + $0x14] sm:$0xf]
  %v76 = vld [vmem:[%s1 + $0x18] sm:$0xf]
  %v77 = vld [vmem:[%s1 + $0x1c] sm:$0xf]
  %v78 = vld [vmem:[%s1 + $0x20] sm:$0xf]
  %v79 = vld [vmem:[%s1 + $0x24] sm:$0xf]
  %v80 = vld [vmem:[%s1 + $0x28] sm:$0xf]
  %v81 = vld [vmem:[%s1 + $0x2c] sm:$0xf]
  %v82 = vld [vmem:[%s1 + $0x30] sm:$0xf]
  %v83 = vld [vmem:[%s1 + $0x34] sm:$0xf]
  %v84 = vld [vmem:[%s1 + $0x38] sm:$0xf]
  %v85 = vld [vmem:[%s1 + $0x3c] sm:$0xf]
  %v102 = vunpack.c.l.b16 %v54
  %v103 = vunpack.c.l.b16 %v55
  %v104 = vunpack.c.l.b16 %v56
  %v105 = vunpack.c.l.b16 %v57
  %v106 = vunpack.c.l.b16 %v58
  %v107 = vunpack.c.l.b16 %v59
  %v108 = vunpack.c.l.b16 %v60
  %v109 = vunpack.c.l.b16 %v61
  %v110 = vunpack.c.l.b16 %v62
  %v111 = vunpack.c.l.b16 %v63
  %v112 = vunpack.c.l.b16 %v64
  %v113 = vunpack.c.l.b16 %v65
  %v114 = vunpack.c.l.b16 %v66
  %v115 = vunpack.c.l.b16 %v67
  %v116 = vunpack.c.l.b16 %v68
  %v117 = vunpack.c.l.b16 %v69
  %v118 = vpack.c.b16 %v103, %v102
  %v119 = vpack.c.b16 %v105, %v104
  %v120 = vpack.c.b16 %v107, %v106
  %v121 = vpack.c.b16 %v109, %v108
  %v122 = vpack.c.b16 %v111, %v110
  %v123 = vpack.c.b16 %v113, %v112
  %v124 = vpack.c.b16 %v115, %v114
  %v125 = vpack.c.b16 %v117, %v116
  %v150 = vunpack.c.l.b16 %v70
  %v151 = vunpack.c.l.b16 %v71
  %v152 = vunpack.c.l.b16 %v72
  %v153 = vunpack.c.l.b16 %v73
  %v154 = vunpack.c.l.b16 %v74
  %v155 = vunpack.c.l.b16 %v75
  %v156 = vunpack.c.l.b16 %v76
  %v157 = vunpack.c.l.b16 %v77
  %v158 = vunpack.c.l.b16 %v78
  %v159 = vunpack.c.l.b16 %v79
  %v160 = vunpack.c.l.b16 %v80
  %v161 = vunpack.c.l.b16 %v81
  %v162 = vunpack.c.l.b16 %v82
  %v163 = vunpack.c.l.b16 %v83
  %v164 = vunpack.c.l.b16 %v84
  %v165 = vunpack.c.l.b16 %v85
  %v166 = vpack.c.b16 %v151, %v150
  %v167 = vpack.c.b16 %v153, %v152
  %v168 = vpack.c.b16 %v155, %v154
  %v169 = vpack.c.b16 %v157, %v156
  %v170 = vpack.c.b16 %v159, %v158
  %v171 = vpack.c.b16 %v161, %v160
  %v172 = vpack.c.b16 %v163, %v162
  %v173 = vpack.c.b16 %v165, %v164
  %182 = vmatprep.subr.bf16.mxu0 0
  %183 = vmatpush1.bf16.msra.mxu0 %v173
  %184 = vmatprep.subr.bf16.mxu0 0
  %185 = vmatpush1.bf16.msra.mxu0 %v172
  %186 = vmatprep.subr.bf16.mxu0 0
  %187 = vmatpush1.bf16.msra.mxu0 %v171
  %188 = vmatprep.subr.bf16.mxu0 0
  %189 = vmatpush1.bf16.msra.mxu0 %v170
  %190 = vmatprep.subr.bf16.mxu0 0
  %191 = vmatpush1.bf16.msra.mxu0 %v169
  %192 = vmatprep.subr.bf16.mxu0 0
  %193 = vmatpush1.bf16.msra.mxu0 %v168
  %194 = vmatprep.subr.bf16.mxu0 0
  %195 = vmatpush1.bf16.msra.mxu0 %v167
  %196 = vmatprep.subr.bf16.mxu0 0
  %197 = vmatpush1.bf16.msra.mxu0 %v166
  %198 = vmatprep.subr.bf16.mxu0 0
  %199 = vmatpush2.bf16.msra.mxu0 0
  %200 = vmatprep.subr.bf16.mxu0 0
  %201 = vmatpush2.bf16.msra.mxu0 0
  %202 = vmatprep.subr.bf16.mxu0 0
  %203 = vmatpush2.bf16.msra.mxu0 0
  %204 = vmatprep.subr.bf16.mxu0 0
  %205 = vmatpush2.bf16.msra.mxu0 0
  %206 = vmatprep.subr.bf16.mxu0 0
  %207 = vmatpush2.bf16.msra.mxu0 0
  %208 = vmatprep.subr.bf16.mxu0 0
  %209 = vmatpush2.bf16.msra.mxu0 0
  %210 = vmatprep.subr.bf16.mxu0 0
  %211 = vmatpush2.bf16.msra.mxu0 0
  %212 = vmatprep.subr.bf16.mxu0 0
  %213 = vmatpush2.bf16.msra.mxu0 0
  %214 = vmatprep.mubr.bf16.mxu0 0
  %215 = vmatmul.mubr.bf16.gmra.mxu0 %v118
  %v216 = vpop.f32.mrf.mxu0
  %v217 = vadd.f32 0.0, %v216
  %v218 = vpop.f32.mrf.mxu0
  %v219 = vpop.f32.mrf.mxu0
  %v220 = vadd.f32 0.0, %v219
  %v221 = vpop.f32.mrf.mxu0
  %222 = vmatprep.mubr.bf16.mxu0 0
  %223 = vmatmul.mubr.bf16.gmra.mxu0 %v119
  %v224 = vpop.f32.mrf.mxu0
  %v225 = vadd.f32 0.0, %v224
  %v226 = vpop.f32.mrf.mxu0
  %v227 = vpop.f32.mrf.mxu0
  %v228 = vadd.f32 0.0, %v227
  %v229 = vpop.f32.mrf.mxu0
  %230 = vmatprep.mubr.bf16.mxu0 0
  %231 = vmatmul.mubr.bf16.gmra.mxu0 %v120
  %v232 = vpop.f32.mrf.mxu0
  %v233 = vadd.f32 0.0, %v232
  %v234 = vpop.f32.mrf.mxu0
  %v235 = vpop.f32.mrf.mxu0
  %v236 = vadd.f32 0.0, %v235
  %v237 = vpop.f32.mrf.mxu0
  %238 = vmatprep.mubr.bf16.mxu0 0
  %239 = vmatmul.mubr.bf16.gmra.mxu0 %v121
  %v240 = vpop.f32.mrf.mxu0
  %v241 = vadd.f32 0.0, %v240
  %v242 = vpop.f32.mrf.mxu0
  %v243 = vpop.f32.mrf.mxu0
  %v244 = vadd.f32 0.0, %v243
  %v245 = vpop.f32.mrf.mxu0
  %246 = vmatprep.mubr.bf16.mxu0 0
  %247 = vmatmul.mubr.bf16.gmra.mxu0 %v122
  %v248 = vpop.f32.mrf.mxu0
  %v249 = vadd.f32 0.0, %v248
  %v250 = vpop.f32.mrf.mxu0
  %v251 = vpop.f32.mrf.mxu0
  %v252 = vadd.f32 0.0, %v251
  %v253 = vpop.f32.mrf.mxu0
  %254 = vmatprep.mubr.bf16.mxu0 0
  %255 = vmatmul.mubr.bf16.gmra.mxu0 %v123
  %v256 = vpop.f32.mrf.mxu0
  %v257 = vadd.f32 0.0, %v256
  %v258 = vpop.f32.mrf.mxu0
  %v259 = vpop.f32.mrf.mxu0
  %v260 = vadd.f32 0.0, %v259
  %v261 = vpop.f32.mrf.mxu0
  %262 = vmatprep.mubr.bf16.mxu0 0
  %263 = vmatmul.mubr.bf16.gmra.mxu0 %v124
  %v264 = vpop.f32.mrf.mxu0
  %v265 = vadd.f32 0.0, %v264
  %v266 = vpop.f32.mrf.mxu0
  %v267 = vpop.f32.mrf.mxu0
  %v268 = vadd.f32 0.0, %v267
  %v269 = vpop.f32.mrf.mxu0
  %270 = vmatprep.mubr.bf16.mxu0 0
  %271 = vmatmul.mubr.bf16.gmra.mxu0 %v125
  %v272 = vpop.f32.mrf.mxu0
  %v273 = vadd.f32 0.0, %v272
  %v274 = vpop.f32.mrf.mxu0
  %v275 = vpop.f32.mrf.mxu0
  %v276 = vadd.f32 0.0, %v275
  %v277 = vpop.f32.mrf.mxu0
  %278 = vdwg.mxu0
  %v279 = vadd.f32 %v38, %v217
  %v280 = vadd.f32 %v39, %v220
  %v281 = vadd.f32 %v40, %v225
  %v282 = vadd.f32 %v41, %v228
  %v283 = vadd.f32 %v42, %v233
  %v284 = vadd.f32 %v43, %v236
  %v285 = vadd.f32 %v44, %v241
  %v286 = vadd.f32 %v45, %v244
  %v287 = vadd.f32 %v46, %v249
  %v288 = vadd.f32 %v47, %v252
  %v289 = vadd.f32 %v48, %v257
  %v290 = vadd.f32 %v49, %v260
  %v291 = vadd.f32 %v50, %v265
  %v292 = vadd.f32 %v51, %v268
  %v293 = vadd.f32 %v52, %v273
  %v294 = vadd.f32 %v53, %v276
  %295 = vst [vmem:[#allocation2] sm:$0xff] %v279
  %296 = vst [vmem:[#allocation2 + $0x8] sm:$0xff] %v280
  %297 = vst [vmem:[#allocation2 + $0x10] sm:$0xff] %v281
  %298 = vst [vmem:[#allocation2 + $0x18] sm:$0xff] %v282
  %299 = vst [vmem:[#allocation2 + $0x20] sm:$0xff] %v283
  %300 = vst [vmem:[#allocation2 + $0x28] sm:$0xff] %v284
  %301 = vst [vmem:[#allocation2 + $0x30] sm:$0xff] %v285
  %302 = vst [vmem:[#allocation2 + $0x38] sm:$0xff] %v286
  %303 = vst [vmem:[#allocation2 + $0x40] sm:$0xff] %v287
  %304 = vst [vmem:[#allocation2 + $0x48] sm:$0xff] %v288
  %305 = vst [vmem:[#allocation2 + $0x50] sm:$0xff] %v289
  %306 = vst [vmem:[#allocation2 + $0x58] sm:$0xff] %v290
  %307 = vst [vmem:[#allocation2 + $0x60] sm:$0xff] %v291
  %308 = vst [vmem:[#allocation2 + $0x68] sm:$0xff] %v292
  %309 = vst [vmem:[#allocation2 + $0x70] sm:$0xff] %v293
  %310 = vst [vmem:[#allocation2 + $0x78] sm:$0xff] %v294
  // Predicated region
  $region22: #{_forward.64} parent=0 // pred_check
    %p311 = pneg %p18
  $region23: #{_forward.64} parent=0 // pred_check_branch
    %313 = sbr.rel (%p311) target = $region25
  $region24: #{_forward.64} parent=0 // pred_region
    %v314 = vld [vmem:[#allocation2] sm:$0xff]
    %v315 = vld [vmem:[#allocation2 + $0x8] sm:$0xff]
    %v316 = vld [vmem:[#allocation2 + $0x10] sm:$0xff]
    %v317 = vld [vmem:[#allocation2 + $0x18] sm:$0xff]
    %v318 = vld [vmem:[#allocation2 + $0x20] sm:$0xff]
    %v319 = vld [vmem:[#allocation2 + $0x28] sm:$0xff]
    %v320 = vld [vmem:[#allocation2 + $0x30] sm:$0xff]
    %v321 = vld [vmem:[#allocation2 + $0x38] sm:$0xff]
    %v322 = vld [vmem:[#allocation2 + $0x40] sm:$0xff]
    %v323 = vld [vmem:[#allocation2 + $0x48] sm:$0xff]
    %v324 = vld [vmem:[#allocation2 + $0x50] sm:$0xff]
    %v325 = vld [vmem:[#allocation2 + $0x58] sm:$0xff]
    %v326 = vld [vmem:[#allocation2 + $0x60] sm:$0xff]
    %v327 = vld [vmem:[#allocation2 + $0x68] sm:$0xff]
    %v328 = vld [vmem:[#allocation2 + $0x70] sm:$0xff]
    %v329 = vld [vmem:[#allocation2 + $0x78] sm:$0xff]
    %v330 = vld [vmem:[%s2] sm:$0x1]
    %v332 = vlaneseq
    %v333 = vshrl.u32 %v332, 7
    %v334 = vsub.s32 0, %v333
    %v335 = vrot.slane %v330, %v334
    %v337 = vadd.f32 %v314, %v335
    %v338 = vadd.f32 %v315, %v335
    %v339 = vadd.f32 %v316, %v335
    %v340 = vadd.f32 %v317, %v335
    %v341 = vadd.f32 %v318, %v335
    %v342 = vadd.f32 %v319, %v335
    %v343 = vadd.f32 %v320, %v335
    %v344 = vadd.f32 %v321, %v335
    %v345 = vadd.f32 %v322, %v335
    %v346 = vadd.f32 %v323, %v335
    %v347 = vadd.f32 %v324, %v335
    %v348 = vadd.f32 %v325, %v335
    %v349 = vadd.f32 %v326, %v335
    %v350 = vadd.f32 %v327, %v335
    %v351 = vadd.f32 %v328, %v335
    %v352 = vadd.f32 %v329, %v335
    %vm353 = vcmp.gt.f32.partialorder %v337, 0.0
    %vm354 = vcmp.gt.f32.partialorder %v338, 0.0
    %vm355 = vcmp.gt.f32.partialorder %v339, 0.0
    %vm356 = vcmp.gt.f32.partialorder %v340, 0.0
    %vm357 = vcmp.gt.f32.partialorder %v341, 0.0
    %vm358 = vcmp.gt.f32.partialorder %v342, 0.0
    %vm359 = vcmp.gt.f32.partialorder %v343, 0.0
    %vm360 = vcmp.gt.f32.partialorder %v344, 0.0
    %vm361 = vcmp.gt.f32.partialorder %v345, 0.0
    %vm362 = vcmp.gt.f32.partialorder %v346, 0.0
    %vm363 = vcmp.gt.f32.partialorder %v347, 0.0
    %vm364 = vcmp.gt.f32.partialorder %v348, 0.0
    %vm365 = vcmp.gt.f32.partialorder %v349, 0.0
    %vm366 = vcmp.gt.f32.partialorder %v350, 0.0
    %vm367 = vcmp.gt.f32.partialorder %v351, 0.0
    %vm368 = vcmp.gt.f32.partialorder %v352, 0.0
    %v369 = vmul.f32 %v337, 0.01
    %v370 = vmul.f32 %v338, 0.01
    %v371 = vmul.f32 %v339, 0.01
    %v372 = vmul.f32 %v340, 0.01
    %v373 = vmul.f32 %v341, 0.01
    %v374 = vmul.f32 %v342, 0.01
    %v375 = vmul.f32 %v343, 0.01
    %v376 = vmul.f32 %v344, 0.01
    %v377 = vmul.f32 %v345, 0.01
    %v378 = vmul.f32 %v346, 0.01
    %v379 = vmul.f32 %v347, 0.01
    %v380 = vmul.f32 %v348, 0.01
    %v381 = vmul.f32 %v349, 0.01
    %v382 = vmul.f32 %v350, 0.01
    %v383 = vmul.f32 %v351, 0.01
    %v384 = vmul.f32 %v352, 0.01
    %v385 = vsel %vm353, %v337, %v369
    %v386 = vsel %vm354, %v338, %v370
    %v387 = vsel %vm355, %v339, %v371
    %v388 = vsel %vm356, %v340, %v372
    %v389 = vsel %vm357, %v341, %v373
    %v390 = vsel %vm358, %v342, %v374
    %v391 = vsel %vm359, %v343, %v375
    %v392 = vsel %vm360, %v344, %v376
    %v393 = vsel %vm361, %v345, %v377
    %v394 = vsel %vm362, %v346, %v378
    %v395 = vsel %vm363, %v347, %v379
    %v396 = vsel %vm364, %v348, %v380
    %v397 = vsel %vm365, %v349, %v381
    %v398 = vsel %vm366, %v350, %v382
    %v399 = vsel %vm367, %v351, %v383
    %v400 = vsel %vm368, %v352, %v384
    %v401 = vld [vmem:[%s3] sm:$0xff]
    %v402 = vld [vmem:[%s3 + $0x8] sm:$0xff]
    %v403 = vld [vmem:[%s3 + $0x10] sm:$0xff]
    %v404 = vld [vmem:[%s3 + $0x18] sm:$0xff]
    %v405 = vld [vmem:[%s3 + $0x20] sm:$0xff]
    %v406 = vld [vmem:[%s3 + $0x28] sm:$0xff]
    %v407 = vld [vmem:[%s3 + $0x30] sm:$0xff]
    %v408 = vld [vmem:[%s3 + $0x38] sm:$0xff]
    %v409 = vld [vmem:[%s3 + $0x40] sm:$0xff]
    %v410 = vld [vmem:[%s3 + $0x48] sm:$0xff]
    %v411 = vld [vmem:[%s3 + $0x50] sm:$0xff]
    %v412 = vld [vmem:[%s3 + $0x58] sm:$0xff]
    %v413 = vld [vmem:[%s3 + $0x60] sm:$0xff]
    %v414 = vld [vmem:[%s3 + $0x68] sm:$0xff]
    %v415 = vld [vmem:[%s3 + $0x70] sm:$0xff]
    %v416 = vld [vmem:[%s3 + $0x78] sm:$0xff]
    %v417 = vadd.f32 %v385, %v401
    %v418 = vadd.f32 %v386, %v402
    %v419 = vadd.f32 %v387, %v403
    %v420 = vadd.f32 %v388, %v404
    %v421 = vadd.f32 %v389, %v405
    %v422 = vadd.f32 %v390, %v406
    %v423 = vadd.f32 %v391, %v407
    %v424 = vadd.f32 %v392, %v408
    %v425 = vadd.f32 %v393, %v409
    %v426 = vadd.f32 %v394, %v410
    %v427 = vadd.f32 %v395, %v411
    %v428 = vadd.f32 %v396, %v412
    %v429 = vadd.f32 %v397, %v413
    %v430 = vadd.f32 %v398, %v414
    %v431 = vadd.f32 %v399, %v415
    %v432 = vadd.f32 %v400, %v416
    %433 = vst [vmem:[%s4] sm:$0xff] %v417
    %434 = vst [vmem:[%s4 + $0x8] sm:$0xff] %v418
    %435 = vst [vmem:[%s4 + $0x10] sm:$0xff] %v419
    %436 = vst [vmem:[%s4 + $0x18] sm:$0xff] %v420
    %437 = vst [vmem:[%s4 + $0x20] sm:$0xff] %v421
    %438 = vst [vmem:[%s4 + $0x28] sm:$0xff] %v422
    %439 = vst [vmem:[%s4 + $0x30] sm:$0xff] %v423
    %440 = vst [vmem:[%s4 + $0x38] sm:$0xff] %v424
    %441 = vst [vmem:[%s4 + $0x40] sm:$0xff] %v425
    %442 = vst [vmem:[%s4 + $0x48] sm:$0xff] %v426
    %443 = vst [vmem:[%s4 + $0x50] sm:$0xff] %v427
    %444 = vst [vmem:[%s4 + $0x58] sm:$0xff] %v428
    %445 = vst [vmem:[%s4 + $0x60] sm:$0xff] %v429
    %446 = vst [vmem:[%s4 + $0x68] sm:$0xff] %v430
    %447 = vst [vmem:[%s4 + $0x70] sm:$0xff] %v431
    %448 = vst [vmem:[%s4 + $0x78] sm:$0xff] %v432
  $region25: #{_forward.64} parent=0 // pred_fallthru
    _
  // Predicated region
  $region26: #{_forward.64} parent=0 // pred_check
    _
  $region27: #{_forward.64} parent=0 // pred_check_branch
    %450 = sbr.rel (0) target = $region29
  $region28: #{_forward.64} parent=0 // pred_region
    _
  $region29: #{_forward.64} parent=0 // pred_fallthru
    _
  // Predicated region
  $region30: #{_forward.64} parent=0 // pred_check
    _
  $region31: #{_forward.64} parent=0 // pred_check_branch
    %452 = sbr.rel (0) target = $region33
  $region32: #{_forward.64} parent=0 // pred_region
    _
  $region33: #{_forward.64} parent=0 // pred_fallthru
    _

// kernel: _forward.67
$region0: #{_forward.67}
  #allocation0 [shape = 'u32[]', space=smem, size = 0x4, offset = 0x4, fixed_abs, tag = 'smem constant byte address 0x4 - core index']
  #allocation1 [shape = 'u32[144,128]{1,0:T(1,128)}', space=vmem, size = 0x12000, scoped, tag = 'internal scratch']
  #allocation2 [shape = 'f32[32,128]{1,0:T(8,128)}', space=vmem, size = 0x4000, scoped, tag = 'scratch operand']
  %s0 = inlined_call_operand.vmem [shape: bf16[32,128], index: 0, kind: input, shape index: {}]
  %s1 = inlined_call_operand.vmem [shape: bf16[128,128], index: 1, kind: input, shape index: {}]
  %s2 = inlined_call_operand.vmem [shape: f32[1,128], index: 2, kind: input, shape index: {}]
  %s3 = inlined_call_operand.vmem [shape: f32[32,128], index: 3, kind: output, shape index: {}]
  %s4 = sld [smem:[#allocation0]]
  $region30: #{_forward.67} parent=0
    _
  %s6 = ssub.s32 1, %s4
  %s7 = scalar_select 0, %s6, %s4
  // Predicated region
  $region2: #{_forward.67} parent=0 // pred_check
    _
  $region3: #{_forward.67} parent=0 // pred_check_branch
    %9 = sbr.rel (0) target = $region5
  $region4: #{_forward.67} parent=0 // pred_region
    _
  $region5: #{_forward.67} parent=0 // pred_fallthru
    _
  // Predicated region
  $region6: #{_forward.67} parent=0 // pred_check
    _
  $region7: #{_forward.67} parent=0 // pred_check_branch
    %11 = sbr.rel (0) target = $region9
  $region8: #{_forward.67} parent=0 // pred_region
    _
  $region9: #{_forward.67} parent=0 // pred_fallthru
    _
  // Predicated region
  $region10: #{_forward.67} parent=0 // pred_check
    _
  $region11: #{_forward.67} parent=0 // pred_check_branch
    %13 = sbr.rel (0) target = $region13
  $region12: #{_forward.67} parent=0 // pred_region
    _
  $region13: #{_forward.67} parent=0 // pred_fallthru
    _
  %p15 = scmp.eq.s32.totalorder 0, 0
  // Predicated region
  $region14: #{_forward.67} parent=0 // pred_check
    %p16 = pneg %p15
  $region15: #{_forward.67} parent=0 // pred_check_branch
    %18 = sbr.rel (%p16) target = $region17
  $region16: #{_forward.67} parent=0 // pred_region
    %19 = vst [vmem:[#allocation2] sm:$0xff] 0.0
    %20 = vst [vmem:[#allocation2 + $0x8] sm:$0xff] 0.0
    %21 = vst [vmem:[#allocation2 + $0x10] sm:$0xff] 0.0
    %22 = vst [vmem:[#allocation2 + $0x18] sm:$0xff] 0.0
  $region17: #{_forward.67} parent=0 // pred_fallthru
    _
  %v23 = vld [vmem:[#allocation2] sm:$0xff]
  %v24 = vld [vmem:[#allocation2 + $0x8] sm:$0xff]
  %v25 = vld [vmem:[#allocation2 + $0x10] sm:$0xff]
  %v26 = vld [vmem:[#allocation2 + $0x18] sm:$0xff]
  %v27 = vld [vmem:[%s0] sm:$0xf]
  %v28 = vld [vmem:[%s0 + $0x4] sm:$0xf]
  %v29 = vld [vmem:[%s0 + $0x8] sm:$0xf]
  %v30 = vld [vmem:[%s0 + $0xc] sm:$0xf]
  %v31 = vld [vmem:[%s1] sm:$0xf]
  %v32 = vld [vmem:[%s1 + $0x4] sm:$0xf]
  %v33 = vld [vmem:[%s1 + $0x8] sm:$0xf]
  %v34 = vld [vmem:[%s1 + $0xc] sm:$0xf]
  %v35 = vld [vmem:[%s1 + $0x10] sm:$0xf]
  %v36 = vld [vmem:[%s1 + $0x14] sm:$0xf]
  %v37 = vld [vmem:[%s1 + $0x18] sm:$0xf]
  %v38 = vld [vmem:[%s1 + $0x1c] sm:$0xf]
  %v39 = vld [vmem:[%s1 + $0x20] sm:$0xf]
  %v40 = vld [vmem:[%s1 + $0x24] sm:$0xf]
  %v41 = vld [vmem:[%s1 + $0x28] sm:$0xf]
  %v42 = vld [vmem:[%s1 + $0x2c] sm:$0xf]
  %v43 = vld [vmem:[%s1 + $0x30] sm:$0xf]
  %v44 = vld [vmem:[%s1 + $0x34] sm:$0xf]
  %v45 = vld [vmem:[%s1 + $0x38] sm:$0xf]
  %v46 = vld [vmem:[%s1 + $0x3c] sm:$0xf]
  %v51 = vunpack.c.l.b16 %v27
  %v52 = vunpack.c.l.b16 %v28
  %v53 = vunpack.c.l.b16 %v29
  %v54 = vunpack.c.l.b16 %v30
  %v55 = vpack.c.b16 %v52, %v51
  %v56 = vpack.c.b16 %v54, %v53
  %v75 = vunpack.c.l.b16 %v31
  %v76 = vunpack.c.l.b16 %v32
  %v77 = vunpack.c.l.b16 %v33
  %v78 = vunpack.c.l.b16 %v34
  %v79 = vunpack.c.l.b16 %v35
  %v80 = vunpack.c.l.b16 %v36
  %v81 = vunpack.c.l.b16 %v37
  %v82 = vunpack.c.l.b16 %v38
  %v83 = vunpack.c.l.b16 %v39
  %v84 = vunpack.c.l.b16 %v40
  %v85 = vunpack.c.l.b16 %v41
  %v86 = vunpack.c.l.b16 %v42
  %v87 = vunpack.c.l.b16 %v43
  %v88 = vunpack.c.l.b16 %v44
  %v89 = vunpack.c.l.b16 %v45
  %v90 = vunpack.c.l.b16 %v46
  %v91 = vpack.c.b16 %v76, %v75
  %v92 = vpack.c.b16 %v78, %v77
  %v93 = vpack.c.b16 %v80, %v79
  %v94 = vpack.c.b16 %v82, %v81
  %v95 = vpack.c.b16 %v84, %v83
  %v96 = vpack.c.b16 %v86, %v85
  %v97 = vpack.c.b16 %v88, %v87
  %v98 = vpack.c.b16 %v90, %v89
  %107 = vmatprep.subr.bf16.mxu0 0
  %108 = vmatpush1.bf16.msra.mxu0 %v98
  %109 = vmatprep.subr.bf16.mxu0 0
  %110 = vmatpush1.bf16.msra.mxu0 %v97
  %111 = vmatprep.subr.bf16.mxu0 0
  %112 = vmatpush1.bf16.msra.mxu0 %v96
  %113 = vmatprep.subr.bf16.mxu0 0
  %114 = vmatpush1.bf16.msra.mxu0 %v95
  %115 = vmatprep.subr.bf16.mxu0 0
  %116 = vmatpush1.bf16.msra.mxu0 %v94
  %117 = vmatprep.subr.bf16.mxu0 0
  %118 = vmatpush1.bf16.msra.mxu0 %v93
  %119 = vmatprep.subr.bf16.mxu0 0
  %120 = vmatpush1.bf16.msra.mxu0 %v92
  %121 = vmatprep.subr.bf16.mxu0 0
  %122 = vmatpush1.bf16.msra.mxu0 %v91
  %123 = vmatprep.subr.bf16.mxu0 0
  %124 = vmatpush2.bf16.msra.mxu0 0
  %125 = vmatprep.subr.bf16.mxu0 0
  %126 = vmatpush2.bf16.msra.mxu0 0
  %127 = vmatprep.subr.bf16.mxu0 0
  %128 = vmatpush2.bf16.msra.mxu0 0
  %129 = vmatprep.subr.bf16.mxu0 0
  %130 = vmatpush2.bf16.msra.mxu0 0
  %131 = vmatprep.subr.bf16.mxu0 0
  %132 = vmatpush2.bf16.msra.mxu0 0
  %133 = vmatprep.subr.bf16.mxu0 0
  %134 = vmatpush2.bf16.msra.mxu0 0
  %135 = vmatprep.subr.bf16.mxu0 0
  %136 = vmatpush2.bf16.msra.mxu0 0
  %137 = vmatprep.subr.bf16.mxu0 0
  %138 = vmatpush2.bf16.msra.mxu0 0
  %139 = vmatprep.mubr.bf16.mxu0 0
  %140 = vmatmul.mubr.bf16.gmra.mxu0 %v55
  %v141 = vpop.f32.mrf.mxu0
  %v142 = vadd.f32 0.0, %v141
  %v143 = vpop.f32.mrf.mxu0
  %v144 = vpop.f32.mrf.mxu0
  %v145 = vadd.f32 0.0, %v144
  %v146 = vpop.f32.mrf.mxu0
  %147 = vmatprep.mubr.bf16.mxu0 0
  %148 = vmatmul.mubr.bf16.gmra.mxu0 %v56
  %v149 = vpop.f32.mrf.mxu0
  %v150 = vadd.f32 0.0, %v149
  %v151 = vpop.f32.mrf.mxu0
  %v152 = vpop.f32.mrf.mxu0
  %v153 = vadd.f32 0.0, %v152
  %v154 = vpop.f32.mrf.mxu0
  %155 = vdwg.mxu0
  %v156 = vadd.f32 %v23, %v142
  %v157 = vadd.f32 %v24, %v145
  %v158 = vadd.f32 %v25, %v150
  %v159 = vadd.f32 %v26, %v153
  %160 = vst [vmem:[#allocation2] sm:$0xff] %v156
  %161 = vst [vmem:[#allocation2 + $0x8] sm:$0xff] %v157
  %162 = vst [vmem:[#allocation2 + $0x10] sm:$0xff] %v158
  %163 = vst [vmem:[#allocation2 + $0x18] sm:$0xff] %v159
  // Predicated region
  $region18: #{_forward.67} parent=0 // pred_check
    %p164 = pneg %p15
  $region19: #{_forward.67} parent=0 // pred_check_branch
    %166 = sbr.rel (%p164) target = $region21
  $region20: #{_forward.67} parent=0 // pred_region
    %v167 = vld [vmem:[#allocation2] sm:$0xff]
    %v168 = vld [vmem:[#allocation2 + $0x8] sm:$0xff]
    %v169 = vld [vmem:[#allocation2 + $0x10] sm:$0xff]
    %v170 = vld [vmem:[#allocation2 + $0x18] sm:$0xff]
    %v171 = vld [vmem:[%s2] sm:$0x1]
    %v173 = vlaneseq
    %v174 = vshrl.u32 %v173, 7
    %v175 = vsub.s32 0, %v174
    %v176 = vrot.slane %v171, %v175
    %v178 = vadd.f32 %v167, %v176
    %v179 = vadd.f32 %v168, %v176
    %v180 = vadd.f32 %v169, %v176
    %v181 = vadd.f32 %v170, %v176
    %182 = vst [vmem:[%s3] sm:$0xff] %v178
    %183 = vst [vmem:[%s3 + $0x8] sm:$0xff] %v179
    %184 = vst [vmem:[%s3 + $0x10] sm:$0xff] %v180
    %185 = vst [vmem:[%s3 + $0x18] sm:$0xff] %v181
  $region21: #{_forward.67} parent=0 // pred_fallthru
    _
  // Predicated region
  $region22: #{_forward.67} parent=0 // pred_check
    _
  $region23: #{_forward.67} parent=0 // pred_check_branch
    %187 = sbr.rel (0) target = $region25
  $region24: #{_forward.67} parent=0 // pred_region
    _
  $region25: #{_forward.67} parent=0 // pred_fallthru
    _
  // Predicated region
  $region26: #{_forward.67} parent=0 // pred_check
    _
  $region27: #{_forward.67} parent=0 // pred_check_branch
    %189 = sbr.rel (0) target = $region29
  $region28: #{_forward.67} parent=0 // pred_region
    _
  $region29: #{_forward.67} parent=0 // pred_fallthru
    _

// kernel: _forward.65
$region0: #{_forward.65}
  #allocation0 [shape = 'u32[]', space=smem, size = 0x4, offset = 0x4, fixed_abs, tag = 'smem constant byte address 0x4 - core index']
  #allocation1 [shape = 'u32[144,128]{1,0:T(1,128)}', space=vmem, size = 0x12000, scoped, tag = 'internal scratch']
  #allocation2 [shape = 'f32[32,128]{1,0:T(8,128)}', space=vmem, size = 0x4000, scoped, tag = 'scratch operand']
  %s0 = inlined_call_operand.vmem [shape: bf16[32,128], index: 0, kind: input, shape index: {}]
  %s1 = inlined_call_operand.vmem [shape: bf16[128,128], index: 1, kind: input, shape index: {}]
  %s2 = inlined_call_operand.vmem [shape: f32[1,128], index: 2, kind: input, shape index: {}]
  %s3 = inlined_call_operand.vmem [shape: f32[32,128], index: 3, kind: output, shape index: {}]
  %s4 = sld [smem:[#allocation0]]
  $region30: #{_forward.65} parent=0
    _
  %s6 = ssub.s32 1, %s4
  %s7 = scalar_select 0, %s6, %s4
  // Predicated region
  $region2: #{_forward.65} parent=0 // pred_check
    _
  $region3: #{_forward.65} parent=0 // pred_check_branch
    %9 = sbr.rel (0) target = $region5
  $region4: #{_forward.65} parent=0 // pred_region
    _
  $region5: #{_forward.65} parent=0 // pred_fallthru
    _
  // Predicated region
  $region6: #{_forward.65} parent=0 // pred_check
    _
  $region7: #{_forward.65} parent=0 // pred_check_branch
    %11 = sbr.rel (0) target = $region9
  $region8: #{_forward.65} parent=0 // pred_region
    _
  $region9: #{_forward.65} parent=0 // pred_fallthru
    _
  // Predicated region
  $region10: #{_forward.65} parent=0 // pred_check
    _
  $region11: #{_forward.65} parent=0 // pred_check_branch
    %13 = sbr.rel (0) target = $region13
  $region12: #{_forward.65} parent=0 // pred_region
    _
  $region13: #{_forward.65} parent=0 // pred_fallthru
    _
  %p15 = scmp.eq.s32.totalorder 0, 0
  // Predicated region
  $region14: #{_forward.65} parent=0 // pred_check
    %p16 = pneg %p15
  $region15: #{_forward.65} parent=0 // pred_check_branch
    %18 = sbr.rel (%p16) target = $region17
  $region16: #{_forward.65} parent=0 // pred_region
    %19 = vst [vmem:[#allocation2] sm:$0xff] 0.0
    %20 = vst [vmem:[#allocation2 + $0x8] sm:$0xff] 0.0
    %21 = vst [vmem:[#allocation2 + $0x10] sm:$0xff] 0.0
    %22 = vst [vmem:[#allocation2 + $0x18] sm:$0xff] 0.0
  $region17: #{_forward.65} parent=0 // pred_fallthru
    _
  %v23 = vld [vmem:[#allocation2] sm:$0xff]
  %v24 = vld [vmem:[#allocation2 + $0x8] sm:$0xff]
  %v25 = vld [vmem:[#allocation2 + $0x10] sm:$0xff]
  %v26 = vld [vmem:[#allocation2 + $0x18] sm:$0xff]
  %v27 = vld [vmem:[%s0] sm:$0xf]
  %v28 = vld [vmem:[%s0 + $0x4] sm:$0xf]
  %v29 = vld [vmem:[%s0 + $0x8] sm:$0xf]
  %v30 = vld [vmem:[%s0 + $0xc] sm:$0xf]
  %v31 = vld [vmem:[%s1] sm:$0xf]
  %v32 = vld [vmem:[%s1 + $0x4] sm:$0xf]
  %v33 = vld [vmem:[%s1 + $0x8] sm:$0xf]
  %v34 = vld [vmem:[%s1 + $0xc] sm:$0xf]
  %v35 = vld [vmem:[%s1 + $0x10] sm:$0xf]
  %v36 = vld [vmem:[%s1 + $0x14] sm:$0xf]
  %v37 = vld [vmem:[%s1 + $0x18] sm:$0xf]
  %v38 = vld [vmem:[%s1 + $0x1c] sm:$0xf]
  %v39 = vld [vmem:[%s1 + $0x20] sm:$0xf]
  %v40 = vld [vmem:[%s1 + $0x24] sm:$0xf]
  %v41 = vld [vmem:[%s1 + $0x28] sm:$0xf]
  %v42 = vld [vmem:[%s1 + $0x2c] sm:$0xf]
  %v43 = vld [vmem:[%s1 + $0x30] sm:$0xf]
  %v44 = vld [vmem:[%s1 + $0x34] sm:$0xf]
  %v45 = vld [vmem:[%s1 + $0x38] sm:$0xf]
  %v46 = vld [vmem:[%s1 + $0x3c] sm:$0xf]
  %v51 = vunpack.c.l.b16 %v27
  %v52 = vunpack.c.l.b16 %v28
  %v53 = vunpack.c.l.b16 %v29
  %v54 = vunpack.c.l.b16 %v30
  %v55 = vpack.c.b16 %v52, %v51
  %v56 = vpack.c.b16 %v54, %v53
  %v75 = vunpack.c.l.b16 %v31
  %v76 = vunpack.c.l.b16 %v32
  %v77 = vunpack.c.l.b16 %v33
  %v78 = vunpack.c.l.b16 %v34
  %v79 = vunpack.c.l.b16 %v35
  %v80 = vunpack.c.l.b16 %v36
  %v81 = vunpack.c.l.b16 %v37
  %v82 = vunpack.c.l.b16 %v38
  %v83 = vunpack.c.l.b16 %v39
  %v84 = vunpack.c.l.b16 %v40
  %v85 = vunpack.c.l.b16 %v41
  %v86 = vunpack.c.l.b16 %v42
  %v87 = vunpack.c.l.b16 %v43
  %v88 = vunpack.c.l.b16 %v44
  %v89 = vunpack.c.l.b16 %v45
  %v90 = vunpack.c.l.b16 %v46
  %v91 = vpack.c.b16 %v76, %v75
  %v92 = vpack.c.b16 %v78, %v77
  %v93 = vpack.c.b16 %v80, %v79
  %v94 = vpack.c.b16 %v82, %v81
  %v95 = vpack.c.b16 %v84, %v83
  %v96 = vpack.c.b16 %v86, %v85
  %v97 = vpack.c.b16 %v88, %v87
  %v98 = vpack.c.b16 %v90, %v89
  %107 = vmatprep.subr.bf16.mxu0 0
  %108 = vmatpush1.bf16.msra.mxu0 %v98
  %109 = vmatprep.subr.bf16.mxu0 0
  %110 = vmatpush1.bf16.msra.mxu0 %v97
  %111 = vmatprep.subr.bf16.mxu0 0
  %112 = vmatpush1.bf16.msra.mxu0 %v96
  %113 = vmatprep.subr.bf16.mxu0 0
  %114 = vmatpush1.bf16.msra.mxu0 %v95
  %115 = vmatprep.subr.bf16.mxu0 0
  %116 = vmatpush1.bf16.msra.mxu0 %v94
  %117 = vmatprep.subr.bf16.mxu0 0
  %118 = vmatpush1.bf16.msra.mxu0 %v93
  %119 = vmatprep.subr.bf16.mxu0 0
  %120 = vmatpush1.bf16.msra.mxu0 %v92
  %121 = vmatprep.subr.bf16.mxu0 0
  %122 = vmatpush1.bf16.msra.mxu0 %v91
  %123 = vmatprep.subr.bf16.mxu0 0
  %124 = vmatpush2.bf16.msra.mxu0 0
  %125 = vmatprep.subr.bf16.mxu0 0
  %126 = vmatpush2.bf16.msra.mxu0 0
  %127 = vmatprep.subr.bf16.mxu0 0
  %128 = vmatpush2.bf16.msra.mxu0 0
  %129 = vmatprep.subr.bf16.mxu0 0
  %130 = vmatpush2.bf16.msra.mxu0 0
  %131 = vmatprep.subr.bf16.mxu0 0
  %132 = vmatpush2.bf16.msra.mxu0 0
  %133 = vmatprep.subr.bf16.mxu0 0
  %134 = vmatpush2.bf16.msra.mxu0 0
  %135 = vmatprep.subr.bf16.mxu0 0
  %136 = vmatpush2.bf16.msra.mxu0 0
  %137 = vmatprep.subr.bf16.mxu0 0
  %138 = vmatpush2.bf16.msra.mxu0 0
  %139 = vmatprep.mubr.bf16.mxu0 0
  %140 = vmatmul.mubr.bf16.gmra.mxu0 %v55
  %v141 = vpop.f32.mrf.mxu0
  %v142 = vadd.f32 0.0, %v141
  %v143 = vpop.f32.mrf.mxu0
  %v144 = vpop.f32.mrf.mxu0
  %v145 = vadd.f32 0.0, %v144
  %v146 = vpop.f32.mrf.mxu0
  %147 = vmatprep.mubr.bf16.mxu0 0
  %148 = vmatmul.mubr.bf16.gmra.mxu0 %v56
  %v149 = vpop.f32.mrf.mxu0
  %v150 = vadd.f32 0.0, %v149
  %v151 = vpop.f32.mrf.mxu0
  %v152 = vpop.f32.mrf.mxu0
  %v153 = vadd.f32 0.0, %v152
  %v154 = vpop.f32.mrf.mxu0
  %155 = vdwg.mxu0
  %v156 = vadd.f32 %v23, %v142
  %v157 = vadd.f32 %v24, %v145
  %v158 = vadd.f32 %v25, %v150
  %v159 = vadd.f32 %v26, %v153
  %160 = vst [vmem:[#allocation2] sm:$0xff] %v156
  %161 = vst [vmem:[#allocation2 + $0x8] sm:$0xff] %v157
  %162 = vst [vmem:[#allocation2 + $0x10] sm:$0xff] %v158
  %163 = vst [vmem:[#allocation2 + $0x18] sm:$0xff] %v159
  // Predicated region
  $region18: #{_forward.65} parent=0 // pred_check
    %p164 = pneg %p15
  $region19: #{_forward.65} parent=0 // pred_check_branch
    %166 = sbr.rel (%p164) target = $region21
  $region20: #{_forward.65} parent=0 // pred_region
    %v167 = vld [vmem:[#allocation2] sm:$0xff]
    %v168 = vld [vmem:[#allocation2 + $0x8] sm:$0xff]
    %v169 = vld [vmem:[#allocation2 + $0x10] sm:$0xff]
    %v170 = vld [vmem:[#allocation2 + $0x18] sm:$0xff]
    %v171 = vld [vmem:[%s2] sm:$0x1]
    %v173 = vlaneseq
    %v174 = vshrl.u32 %v173, 7
    %v175 = vsub.s32 0, %v174
    %v176 = vrot.slane %v171, %v175
    %v178 = vadd.f32 %v167, %v176
    %v179 = vadd.f32 %v168, %v176
    %v180 = vadd.f32 %v169, %v176
    %v181 = vadd.f32 %v170, %v176
    %vm182 = vcmp.gt.f32.partialorder %v178, 0.0
    %vm183 = vcmp.gt.f32.partialorder %v179, 0.0
    %vm184 = vcmp.gt.f32.partialorder %v180, 0.0
    %vm185 = vcmp.gt.f32.partialorder %v181, 0.0
    %v186 = vmul.f32 %v178, 0.01
    %v187 = vmul.f32 %v179, 0.01
    %v188 = vmul.f32 %v180, 0.01
    %v189 = vmul.f32 %v181, 0.01
    %v190 = vsel %vm182, %v178, %v186
    %v191 = vsel %vm183, %v179, %v187
    %v192 = vsel %vm184, %v180, %v188
    %v193 = vsel %vm185, %v181, %v189
    %194 = vst [vmem:[%s3] sm:$0xff] %v190
    %195 = vst [vmem:[%s3 + $0x8] sm:$0xff] %v191
    %196 = vst [vmem:[%s3 + $0x10] sm:$0xff] %v192
    %197 = vst [vmem:[%s3 + $0x18] sm:$0xff] %v193
  $region21: #{_forward.65} parent=0 // pred_fallthru
    _
  // Predicated region
  $region22: #{_forward.65} parent=0 // pred_check
    _
  $region23: #{_forward.65} parent=0 // pred_check_branch
    %199 = sbr.rel (0) target = $region25
  $region24: #{_forward.65} parent=0 // pred_region
    _
  $region25: #{_forward.65} parent=0 // pred_fallthru
    _
  // Predicated region
  $region26: #{_forward.65} parent=0 // pred_check
    _
  $region27: #{_forward.65} parent=0 // pred_check_branch
    %201 = sbr.rel (0) target = $region29
  $region28: #{_forward.65} parent=0 // pred_region
    _
  $region29: #{_forward.65} parent=0 // pred_fallthru
    _

// kernel: _forward.68
$region0: #{_forward.68}
  #allocation0 [shape = 'u32[]', space=smem, size = 0x4, offset = 0x4, fixed_abs, tag = 'smem constant byte address 0x4 - core index']
  #allocation1 [shape = 'u32[144,128]{1,0:T(1,128)}', space=vmem, size = 0x12000, scoped, tag = 'internal scratch']
  %s0 = inlined_call_operand.vmem [shape: f32[32,128], index: 0, kind: input, shape index: {}]
  %s1 = inlined_call_operand.vmem [shape: f32[128,128], index: 1, kind: input, shape index: {}]
  %s2 = inlined_call_operand.vmem [shape: f32[1,128], index: 2, kind: input, shape index: {}]
  %s3 = inlined_call_operand.vmem [shape: f32[32,128], index: 3, kind: input, shape index: {}]
  %s4 = inlined_call_operand.vmem [shape: f32[32,128], index: 4, kind: output, shape index: {}]
  %s5 = sld [smem:[#allocation0]]
  $region26: #{_forward.68} parent=0
    _
  %s7 = ssub.s32 1, %s5
  %s8 = scalar_select 0, %s7, %s5
  // Predicated region
  $region2: #{_forward.68} parent=0 // pred_check
    _
  $region3: #{_forward.68} parent=0 // pred_check_branch
    %10 = sbr.rel (0) target = $region5
  $region4: #{_forward.68} parent=0 // pred_region
    _
  $region5: #{_forward.68} parent=0 // pred_fallthru
    _
  // Predicated region
  $region6: #{_forward.68} parent=0 // pred_check
    _
  $region7: #{_forward.68} parent=0 // pred_check_branch
    %12 = sbr.rel (0) target = $region9
  $region8: #{_forward.68} parent=0 // pred_region
    _
  $region9: #{_forward.68} parent=0 // pred_fallthru
    _
  // Predicated region
  $region10: #{_forward.68} parent=0 // pred_check
    _
  $region11: #{_forward.68} parent=0 // pred_check_branch
    %14 = sbr.rel (0) target = $region13
  $region12: #{_forward.68} parent=0 // pred_region
    _
  $region13: #{_forward.68} parent=0 // pred_fallthru
    _
  // Predicated region
  $region14: #{_forward.68} parent=0 // pred_check
    _
  $region15: #{_forward.68} parent=0 // pred_check_branch
    %16 = sbr.rel (0) target = $region17
  $region16: #{_forward.68} parent=0 // pred_region
    _
  $region17: #{_forward.68} parent=0 // pred_fallthru
    _
  %v17 = vld [vmem:[%s0] sm:$0xff]
  %v18 = vld [vmem:[%s0 + $0x8] sm:$0xff]
  %v19 = vld [vmem:[%s0 + $0x10] sm:$0xff]
  %v20 = vld [vmem:[%s0 + $0x18] sm:$0xff]
  %v21 = vmul.f32 %v17, %v17
  %v22 = vmul.f32 %v18, %v18
  %v23 = vmul.f32 %v19, %v19
  %v24 = vmul.f32 %v20, %v20
  %v25 = vld [vmem:[%s1] sm:$0xff]
  %v26 = vld [vmem:[%s1 + $0x8] sm:$0xff]
  %v27 = vld [vmem:[%s1 + $0x10] sm:$0xff]
  %v28 = vld [vmem:[%s1 + $0x18] sm:$0xff]
  %v29 = vld [vmem:[%s1 + $0x20] sm:$0xff]
  %v30 = vld [vmem:[%s1 + $0x28] sm:$0xff]
  %v31 = vld [vmem:[%s1 + $0x30] sm:$0xff]
  %v32 = vld [vmem:[%s1 + $0x38] sm:$0xff]
  %v33 = vld [vmem:[%s1 + $0x40] sm:$0xff]
  %v34 = vld [vmem:[%s1 + $0x48] sm:$0xff]
  %v35 = vld [vmem:[%s1 + $0x50] sm:$0xff]
  %v36 = vld [vmem:[%s1 + $0x58] sm:$0xff]
  %v37 = vld [vmem:[%s1 + $0x60] sm:$0xff]
  %v38 = vld [vmem:[%s1 + $0x68] sm:$0xff]
  %v39 = vld [vmem:[%s1 + $0x70] sm:$0xff]
  %v40 = vld [vmem:[%s1 + $0x78] sm:$0xff]
  %v41 = vld [vmem:[%s2] sm:$0x1]
  %v43 = vlaneseq
  %v44 = vshrl.u32 %v43, 7
  %v45 = vsub.s32 0, %v44
  %v46 = vrot.slane %v41, %v45
  %48 = vmatprep.subr.mxu0 0.0
  %49 = vmatpush1.msra.mxu0 %v40
  %50 = vmatprep.subr.mxu0 0.0
  %51 = vmatpush1.msra.mxu0 %v39
  %52 = vmatprep.subr.mxu0 0.0
  %53 = vmatpush1.msra.mxu0 %v38
  %54 = vmatprep.subr.mxu0 0.0
  %55 = vmatpush1.msra.mxu0 %v37
  %56 = vmatprep.subr.mxu0 0.0
  %57 = vmatpush1.msra.mxu0 %v36
  %58 = vmatprep.subr.mxu0 0.0
  %59 = vmatpush1.msra.mxu0 %v35
  %60 = vmatprep.subr.mxu0 0.0
  %61 = vmatpush1.msra.mxu0 %v34
  %62 = vmatprep.subr.mxu0 0.0
  %63 = vmatpush1.msra.mxu0 %v33
  %64 = vmatprep.subr.mxu0 0.0
  %65 = vmatpush1.msra.mxu0 %v32
  %66 = vmatprep.subr.mxu0 0.0
  %67 = vmatpush1.msra.mxu0 %v31
  %68 = vmatprep.subr.mxu0 0.0
  %69 = vmatpush1.msra.mxu0 %v30
  %70 = vmatprep.subr.mxu0 0.0
  %71 = vmatpush1.msra.mxu0 %v29
  %72 = vmatprep.subr.mxu0 0.0
  %73 = vmatpush1.msra.mxu0 %v28
  %74 = vmatprep.subr.mxu0 0.0
  %75 = vmatpush1.msra.mxu0 %v27
  %76 = vmatprep.subr.mxu0 0.0
  %77 = vmatpush1.msra.mxu0 %v26
  %78 = vmatprep.subr.mxu0 0.0
  %79 = vmatpush1.msra.mxu0 %v25
  %80 = vmatprep.subr.mxu0 0.0
  %81 = vmatpush2.msra.mxu0 0.0
  %82 = vmatprep.subr.mxu0 0.0
  %83 = vmatpush2.msra.mxu0 0.0
  %84 = vmatprep.subr.mxu0 0.0
  %85 = vmatpush2.msra.mxu0 0.0
  %86 = vmatprep.subr.mxu0 0.0
  %87 = vmatpush2.msra.mxu0 0.0
  %88 = vmatprep.subr.mxu0 0.0
  %89 = vmatpush2.msra.mxu0 0.0
  %90 = vmatprep.subr.mxu0 0.0
  %91 = vmatpush2.msra.mxu0 0.0
  %92 = vmatprep.subr.mxu0 0.0
  %93 = vmatpush2.msra.mxu0 0.0
  %94 = vmatprep.subr.mxu0 0.0
  %95 = vmatpush2.msra.mxu0 0.0
  %96 = vmatprep.subr.mxu0 0.0
  %97 = vmatpush2.msra.mxu0 0.0
  %98 = vmatprep.subr.mxu0 0.0
  %99 = vmatpush2.msra.mxu0 0.0
  %100 = vmatprep.subr.mxu0 0.0
  %101 = vmatpush2.msra.mxu0 0.0
  %102 = vmatprep.subr.mxu0 0.0
  %103 = vmatpush2.msra.mxu0 0.0
  %104 = vmatprep.subr.mxu0 0.0
  %105 = vmatpush2.msra.mxu0 0.0
  %106 = vmatprep.subr.mxu0 0.0
  %107 = vmatpush2.msra.mxu0 0.0
  %108 = vmatprep.subr.mxu0 0.0
  %109 = vmatpush2.msra.mxu0 0.0
  %110 = vmatprep.subr.mxu0 0.0
  %111 = vmatpush2.msra.mxu0 0.0
  %112 = vmatprep.mubr.f32.mxu0 0.0
  %113 = vmatmul.mubr.f32.gmra.mxu0 %v21
  %v114 = vpop.f32.mrf.mxu0
  %v115 = vadd.f32 %v46, %v114
  %v116 = vpop.f32.mrf.mxu0
  %117 = vmatprep.mubr.f32.mxu0 0.0
  %118 = vmatmul.mubr.f32.gmra.mxu0 %v22
  %v119 = vpop.f32.mrf.mxu0
  %v120 = vadd.f32 %v46, %v119
  %v121 = vpop.f32.mrf.mxu0
  %122 = vmatprep.mubr.f32.mxu0 0.0
  %123 = vmatmul.mubr.f32.gmra.mxu0 %v23
  %v124 = vpop.f32.mrf.mxu0
  %v125 = vadd.f32 %v46, %v124
  %v126 = vpop.f32.mrf.mxu0
  %127 = vmatprep.mubr.f32.mxu0 0.0
  %128 = vmatmul.mubr.f32.gmra.mxu0 %v24
  %v129 = vpop.f32.mrf.mxu0
  %v130 = vadd.f32 %v46, %v129
  %v131 = vpop.f32.mrf.mxu0
  %132 = vdwg.mxu0
  %v133 = vrsqrt.pop %v115
  %v134 = vrsqrt.pop %v120
  %v135 = vrsqrt.pop %v125
  %v136 = vrsqrt.pop %v130
  %v137 = vmul.f32 %v17, %v133
  %v138 = vmul.f32 %v18, %v134
  %v139 = vmul.f32 %v19, %v135
  %v140 = vmul.f32 %v20, %v136
  %v141 = vld [vmem:[%s3] sm:$0xff]
  %v142 = vld [vmem:[%s3 + $0x8] sm:$0xff]
  %v143 = vld [vmem:[%s3 + $0x10] sm:$0xff]
  %v144 = vld [vmem:[%s3 + $0x18] sm:$0xff]
  %v145 = vadd.f32 %v137, %v141
  %v146 = vadd.f32 %v138, %v142
  %v147 = vadd.f32 %v139, %v143
  %v148 = vadd.f32 %v140, %v144
  %149 = vst [vmem:[%s4] sm:$0xff] %v145
  %150 = vst [vmem:[%s4 + $0x8] sm:$0xff] %v146
  %151 = vst [vmem:[%s4 + $0x10] sm:$0xff] %v147
  %152 = vst [vmem:[%s4 + $0x18] sm:$0xff] %v148
  // Predicated region
  $region18: #{_forward.68} parent=0 // pred_check
    _
  $region19: #{_forward.68} parent=0 // pred_check_branch
    %154 = sbr.rel (0) target = $region21
  $region20: #{_forward.68} parent=0 // pred_region
    _
  $region21: #{_forward.68} parent=0 // pred_fallthru
    _
  // Predicated region
  $region22: #{_forward.68} parent=0 // pred_check
    _
  $region23: #{_forward.68} parent=0 // pred_check_branch
    %156 = sbr.rel (0) target = $region25
  $region24: #{_forward.68} parent=0 // pred_region
    _
  $region25: #{_forward.68} parent=0 // pred_fallthru
    _

// kernel: _forward.69
$region0: #{_forward.69}
  #allocation0 [shape = 'u32[]', space=smem, size = 0x4, offset = 0x4, fixed_abs, tag = 'smem constant byte address 0x4 - core index']
  #allocation1 [shape = 'u32[144,128]{1,0:T(1,128)}', space=vmem, size = 0x12000, scoped, tag = 'internal scratch']
  #allocation2 [shape = 'f32[32,128]{1,0:T(8,128)}', space=vmem, size = 0x4000, scoped, tag = 'scratch operand']
  %s0 = inlined_call_operand.vmem [shape: bf16[32,128], index: 0, kind: input, shape index: {}]
  %s1 = inlined_call_operand.vmem [shape: bf16[128,128], index: 1, kind: input, shape index: {}]
  %s2 = inlined_call_operand.vmem [shape: f32[1,128], index: 2, kind: input, shape index: {}]
  %s3 = inlined_call_operand.vmem [shape: f32[32,128], index: 3, kind: output, shape index: {}]
  %s4 = sld [smem:[#allocation0]]
  $region30: #{_forward.69} parent=0
    _
  %s6 = ssub.s32 1, %s4
  %s7 = scalar_select 0, %s6, %s4
  // Predicated region
  $region2: #{_forward.69} parent=0 // pred_check
    _
  $region3: #{_forward.69} parent=0 // pred_check_branch
    %9 = sbr.rel (0) target = $region5
  $region4: #{_forward.69} parent=0 // pred_region
    _
  $region5: #{_forward.69} parent=0 // pred_fallthru
    _
  // Predicated region
  $region6: #{_forward.69} parent=0 // pred_check
    _
  $region7: #{_forward.69} parent=0 // pred_check_branch
    %11 = sbr.rel (0) target = $region9
  $region8: #{_forward.69} parent=0 // pred_region
    _
  $region9: #{_forward.69} parent=0 // pred_fallthru
    _
  // Predicated region
  $region10: #{_forward.69} parent=0 // pred_check
    _
  $region11: #{_forward.69} parent=0 // pred_check_branch
    %13 = sbr.rel (0) target = $region13
  $region12: #{_forward.69} parent=0 // pred_region
    _
  $region13: #{_forward.69} parent=0 // pred_fallthru
    _
  %p15 = scmp.eq.s32.totalorder 0, 0
  // Predicated region
  $region14: #{_forward.69} parent=0 // pred_check
    %p16 = pneg %p15
  $region15: #{_forward.69} parent=0 // pred_check_branch
    %18 = sbr.rel (%p16) target = $region17
  $region16: #{_forward.69} parent=0 // pred_region
    %19 = vst [vmem:[#allocation2] sm:$0xff] 0.0
    %20 = vst [vmem:[#allocation2 + $0x8] sm:$0xff] 0.0
    %21 = vst [vmem:[#allocation2 + $0x10] sm:$0xff] 0.0
    %22 = vst [vmem:[#allocation2 + $0x18] sm:$0xff] 0.0
  $region17: #{_forward.69} parent=0 // pred_fallthru
    _
  %v23 = vld [vmem:[#allocation2] sm:$0xff]
  %v24 = vld [vmem:[#allocation2 + $0x8] sm:$0xff]
  %v25 = vld [vmem:[#allocation2 + $0x10] sm:$0xff]
  %v26 = vld [vmem:[#allocation2 + $0x18] sm:$0xff]
  %v27 = vld [vmem:[%s0] sm:$0xf]
  %v28 = vld [vmem:[%s0 + $0x4] sm:$0xf]
  %v29 = vld [vmem:[%s0 + $0x8] sm:$0xf]
  %v30 = vld [vmem:[%s0 + $0xc] sm:$0xf]
  %v31 = vld [vmem:[%s1] sm:$0xf]
  %v32 = vld [vmem:[%s1 + $0x4] sm:$0xf]
  %v33 = vld [vmem:[%s1 + $0x8] sm:$0xf]
  %v34 = vld [vmem:[%s1 + $0xc] sm:$0xf]
  %v35 = vld [vmem:[%s1 + $0x10] sm:$0xf]
  %v36 = vld [vmem:[%s1 + $0x14] sm:$0xf]
  %v37 = vld [vmem:[%s1 + $0x18] sm:$0xf]
  %v38 = vld [vmem:[%s1 + $0x1c] sm:$0xf]
  %v39 = vld [vmem:[%s1 + $0x20] sm:$0xf]
  %v40 = vld [vmem:[%s1 + $0x24] sm:$0xf]
  %v41 = vld [vmem:[%s1 + $0x28] sm:$0xf]
  %v42 = vld [vmem:[%s1 + $0x2c] sm:$0xf]
  %v43 = vld [vmem:[%s1 + $0x30] sm:$0xf]
  %v44 = vld [vmem:[%s1 + $0x34] sm:$0xf]
  %v45 = vld [vmem:[%s1 + $0x38] sm:$0xf]
  %v46 = vld [vmem:[%s1 + $0x3c] sm:$0xf]
  %v51 = vunpack.c.l.b16 %v27
  %v52 = vunpack.c.l.b16 %v28
  %v53 = vunpack.c.l.b16 %v29
  %v54 = vunpack.c.l.b16 %v30
  %v55 = vpack.c.b16 %v52, %v51
  %v56 = vpack.c.b16 %v54, %v53
  %v75 = vunpack.c.l.b16 %v31
  %v76 = vunpack.c.l.b16 %v32
  %v77 = vunpack.c.l.b16 %v33
  %v78 = vunpack.c.l.b16 %v34
  %v79 = vunpack.c.l.b16 %v35
  %v80 = vunpack.c.l.b16 %v36
  %v81 = vunpack.c.l.b16 %v37
  %v82 = vunpack.c.l.b16 %v38
  %v83 = vunpack.c.l.b16 %v39
  %v84 = vunpack.c.l.b16 %v40
  %v85 = vunpack.c.l.b16 %v41
  %v86 = vunpack.c.l.b16 %v42
  %v87 = vunpack.c.l.b16 %v43
  %v88 = vunpack.c.l.b16 %v44
  %v89 = vunpack.c.l.b16 %v45
  %v90 = vunpack.c.l.b16 %v46
  %v91 = vpack.c.b16 %v76, %v75
  %v92 = vpack.c.b16 %v78, %v77
  %v93 = vpack.c.b16 %v80, %v79
  %v94 = vpack.c.b16 %v82, %v81
  %v95 = vpack.c.b16 %v84, %v83
  %v96 = vpack.c.b16 %v86, %v85
  %v97 = vpack.c.b16 %v88, %v87
  %v98 = vpack.c.b16 %v90, %v89
  %107 = vmatprep.subr.bf16.mxu0 0
  %108 = vmatpush1.bf16.msra.mxu0 %v98
  %109 = vmatprep.subr.bf16.mxu0 0
  %110 = vmatpush1.bf16.msra.mxu0 %v97
  %111 = vmatprep.subr.bf16.mxu0 0
  %112 = vmatpush1.bf16.msra.mxu0 %v96
  %113 = vmatprep.subr.bf16.mxu0 0
  %114 = vmatpush1.bf16.msra.mxu0 %v95
  %115 = vmatprep.subr.bf16.mxu0 0
  %116 = vmatpush1.bf16.msra.mxu0 %v94
  %117 = vmatprep.subr.bf16.mxu0 0
  %118 = vmatpush1.bf16.msra.mxu0 %v93
  %119 = vmatprep.subr.bf16.mxu0 0
  %120 = vmatpush1.bf16.msra.mxu0 %v92
  %121 = vmatprep.subr.bf16.mxu0 0
  %122 = vmatpush1.bf16.msra.mxu0 %v91
  %123 = vmatprep.subr.bf16.mxu0 0
  %124 = vmatpush2.bf16.msra.mxu0 0
  %125 = vmatprep.subr.bf16.mxu0 0
  %126 = vmatpush2.bf16.msra.mxu0 0
  %127 = vmatprep.subr.bf16.mxu0 0
  %128 = vmatpush2.bf16.msra.mxu0 0
  %129 = vmatprep.subr.bf16.mxu0 0
  %130 = vmatpush2.bf16.msra.mxu0 0
  %131 = vmatprep.subr.bf16.mxu0 0
  %132 = vmatpush2.bf16.msra.mxu0 0
  %133 = vmatprep.subr.bf16.mxu0 0
  %134 = vmatpush2.bf16.msra.mxu0 0
  %135 = vmatprep.subr.bf16.mxu0 0
  %136 = vmatpush2.bf16.msra.mxu0 0
  %137 = vmatprep.subr.bf16.mxu0 0
  %138 = vmatpush2.bf16.msra.mxu0 0
  %139 = vmatprep.mubr.bf16.mxu0 0
  %140 = vmatmul.mubr.bf16.gmra.mxu0 %v55
  %v141 = vpop.f32.mrf.mxu0
  %v142 = vadd.f32 0.0, %v141
  %v143 = vpop.f32.mrf.mxu0
  %v144 = vpop.f32.mrf.mxu0
  %v145 = vadd.f32 0.0, %v144
  %v146 = vpop.f32.mrf.mxu0
  %147 = vmatprep.mubr.bf16.mxu0 0
  %148 = vmatmul.mubr.bf16.gmra.mxu0 %v56
  %v149 = vpop.f32.mrf.mxu0
  %v150 = vadd.f32 0.0, %v149
  %v151 = vpop.f32.mrf.mxu0
  %v152 = vpop.f32.mrf.mxu0
  %v153 = vadd.f32 0.0, %v152
  %v154 = vpop.f32.mrf.mxu0
  %155 = vdwg.mxu0
  %v156 = vadd.f32 %v23, %v142
  %v157 = vadd.f32 %v24, %v145
  %v158 = vadd.f32 %v25, %v150
  %v159 = vadd.f32 %v26, %v153
  %160 = vst [vmem:[#allocation2] sm:$0xff] %v156
  %161 = vst [vmem:[#allocation2 + $0x8] sm:$0xff] %v157
  %162 = vst [vmem:[#allocation2 + $0x10] sm:$0xff] %v158
  %163 = vst [vmem:[#allocation2 + $0x18] sm:$0xff] %v159
  // Predicated region
  $region18: #{_forward.69} parent=0 // pred_check
    %p164 = pneg %p15
  $region19: #{_forward.69} parent=0 // pred_check_branch
    %166 = sbr.rel (%p164) target = $region21
  $region20: #{_forward.69} parent=0 // pred_region
    %v167 = vld [vmem:[#allocation2] sm:$0xff]
    %v168 = vld [vmem:[#allocation2 + $0x8] sm:$0xff]
    %v169 = vld [vmem:[#allocation2 + $0x10] sm:$0xff]
    %v170 = vld [vmem:[#allocation2 + $0x18] sm:$0xff]
    %v171 = vld [vmem:[%s2] sm:$0x1]
    %v173 = vlaneseq
    %v174 = vshrl.u32 %v173, 7
    %v175 = vsub.s32 0, %v174
    %v176 = vrot.slane %v171, %v175
    %v178 = vadd.f32 %v167, %v176
    %v179 = vadd.f32 %v168, %v176
    %v180 = vadd.f32 %v169, %v176
    %v181 = vadd.f32 %v170, %v176
    %v182 = vmax.f32 %v178, 0.0
    %v183 = vmax.f32 %v179, 0.0
    %v184 = vmax.f32 %v180, 0.0
    %v185 = vmax.f32 %v181, 0.0
    %186 = vst [vmem:[%s3] sm:$0xff] %v182
    %187 = vst [vmem:[%s3 + $0x8] sm:$0xff] %v183
    %188 = vst [vmem:[%s3 + $0x10] sm:$0xff] %v184
    %189 = vst [vmem:[%s3 + $0x18] sm:$0xff] %v185
  $region21: #{_forward.69} parent=0 // pred_fallthru
    _
  // Predicated region
  $region22: #{_forward.69} parent=0 // pred_check
    _
  $region23: #{_forward.69} parent=0 // pred_check_branch
    %191 = sbr.rel (0) target = $region25
  $region24: #{_forward.69} parent=0 // pred_region
    _
  $region25: #{_forward.69} parent=0 // pred_fallthru
    _
  // Predicated region
  $region26: #{_forward.69} parent=0 // pred_check
    _
  $region27: #{_forward.69} parent=0 // pred_check_branch
    %193 = sbr.rel (0) target = $region29
  $region28: #{_forward.69} parent=0 // pred_region
    _
  $region29: #{_forward.69} parent=0 // pred_fallthru
    _

// kernel: _forward.87
$region0: #{_forward.87}
  #allocation0 [shape = 'u32[]', space=smem, size = 0x4, offset = 0x4, fixed_abs, tag = 'smem constant byte address 0x4 - core index']
  #allocation1 [shape = 'u32[144,128]{1,0:T(1,128)}', space=vmem, size = 0x12000, scoped, tag = 'internal scratch']
  #allocation2 [shape = 'f32[32,128]{1,0:T(8,128)}', space=vmem, size = 0x4000, scoped, tag = 'scratch operand']
  %s0 = inlined_call_operand.vmem [shape: bf16[32,128], index: 0, kind: input, shape index: {}]
  %s1 = inlined_call_operand.vmem [shape: bf16[128,128], index: 1, kind: input, shape index: {}]
  %s2 = inlined_call_operand.vmem [shape: f32[1,128], index: 2, kind: input, shape index: {}]
  %s3 = inlined_call_operand.vmem [shape: f32[32,128], index: 3, kind: input, shape index: {}]
  %s4 = inlined_call_operand.vmem [shape: f32[32,128], index: 4, kind: input, shape index: {}]
  %s5 = inlined_call_operand.vmem [shape: f32[32,128], index: 5, kind: output, shape index: {}]
  %s6 = sld [smem:[#allocation0]]
  $region38: #{_forward.87} parent=0
    _
  %s8 = ssub.s32 1, %s6
  %s9 = scalar_select 0, %s8, %s6
  // Predicated region
  $region2: #{_forward.87} parent=0 // pred_check
    _
  $region3: #{_forward.87} parent=0 // pred_check_branch
    %11 = sbr.rel (0) target = $region5
  $region4: #{_forward.87} parent=0 // pred_region
    _
  $region5: #{_forward.87} parent=0 // pred_fallthru
    _
  // Predicated region
  $region6: #{_forward.87} parent=0 // pred_check
    _
  $region7: #{_forward.87} parent=0 // pred_check_branch
    %13 = sbr.rel (0) target = $region9
  $region8: #{_forward.87} parent=0 // pred_region
    _
  $region9: #{_forward.87} parent=0 // pred_fallthru
    _
  // Predicated region
  $region10: #{_forward.87} parent=0 // pred_check
    _
  $region11: #{_forward.87} parent=0 // pred_check_branch
    %15 = sbr.rel (0) target = $region13
  $region12: #{_forward.87} parent=0 // pred_region
    _
  $region13: #{_forward.87} parent=0 // pred_fallthru
    _
  // Predicated region
  $region14: #{_forward.87} parent=0 // pred_check
    _
  $region15: #{_forward.87} parent=0 // pred_check_branch
    %17 = sbr.rel (0) target = $region17
  $region16: #{_forward.87} parent=0 // pred_region
    _
  $region17: #{_forward.87} parent=0 // pred_fallthru
    _
  // Predicated region
  $region18: #{_forward.87} parent=0 // pred_check
    _
  $region19: #{_forward.87} parent=0 // pred_check_branch
    %19 = sbr.rel (0) target = $region21
  $region20: #{_forward.87} parent=0 // pred_region
    _
  $region21: #{_forward.87} parent=0 // pred_fallthru
    _
  %p21 = scmp.eq.s32.totalorder 0, 0
  // Predicated region
  $region22: #{_forward.87} parent=0 // pred_check
    %p22 = pneg %p21
  $region23: #{_forward.87} parent=0 // pred_check_branch
    %24 = sbr.rel (%p22) target = $region25
  $region24: #{_forward.87} parent=0 // pred_region
    %25 = vst [vmem:[#allocation2] sm:$0xff] 0.0
    %26 = vst [vmem:[#allocation2 + $0x8] sm:$0xff] 0.0
    %27 = vst [vmem:[#allocation2 + $0x10] sm:$0xff] 0.0
    %28 = vst [vmem:[#allocation2 + $0x18] sm:$0xff] 0.0
  $region25: #{_forward.87} parent=0 // pred_fallthru
    _
  %v29 = vld [vmem:[#allocation2] sm:$0xff]
  %v30 = vld [vmem:[#allocation2 + $0x8] sm:$0xff]
  %v31 = vld [vmem:[#allocation2 + $0x10] sm:$0xff]
  %v32 = vld [vmem:[#allocation2 + $0x18] sm:$0xff]
  %v33 = vld [vmem:[%s0] sm:$0xf]
  %v34 = vld [vmem:[%s0 + $0x4] sm:$0xf]
  %v35 = vld [vmem:[%s0 + $0x8] sm:$0xf]
  %v36 = vld [vmem:[%s0 + $0xc] sm:$0xf]
  %v37 = vld [vmem:[%s1] sm:$0xf]
  %v38 = vld [vmem:[%s1 + $0x4] sm:$0xf]
  %v39 = vld [vmem:[%s1 + $0x8] sm:$0xf]
  %v40 = vld [vmem:[%s1 + $0xc] sm:$0xf]
  %v41 = vld [vmem:[%s1 + $0x10] sm:$0xf]
  %v42 = vld [vmem:[%s1 + $0x14] sm:$0xf]
  %v43 = vld [vmem:[%s1 + $0x18] sm:$0xf]
  %v44 = vld [vmem:[%s1 + $0x1c] sm:$0xf]
  %v45 = vld [vmem:[%s1 + $0x20] sm:$0xf]
  %v46 = vld [vmem:[%s1 + $0x24] sm:$0xf]
  %v47 = vld [vmem:[%s1 + $0x28] sm:$0xf]
  %v48 = vld [vmem:[%s1 + $0x2c] sm:$0xf]
  %v49 = vld [vmem:[%s1 + $0x30] sm:$0xf]
  %v50 = vld [vmem:[%s1 + $0x34] sm:$0xf]
  %v51 = vld [vmem:[%s1 + $0x38] sm:$0xf]
  %v52 = vld [vmem:[%s1 + $0x3c] sm:$0xf]
  %v57 = vunpack.c.l.b16 %v33
  %v58 = vunpack.c.l.b16 %v34
  %v59 = vunpack.c.l.b16 %v35
  %v60 = vunpack.c.l.b16 %v36
  %v61 = vpack.c.b16 %v58, %v57
  %v62 = vpack.c.b16 %v60, %v59
  %v81 = vunpack.c.l.b16 %v37
  %v82 = vunpack.c.l.b16 %v38
  %v83 = vunpack.c.l.b16 %v39
  %v84 = vunpack.c.l.b16 %v40
  %v85 = vunpack.c.l.b16 %v41
  %v86 = vunpack.c.l.b16 %v42
  %v87 = vunpack.c.l.b16 %v43
  %v88 = vunpack.c.l.b16 %v44
  %v89 = vunpack.c.l.b16 %v45
  %v90 = vunpack.c.l.b16 %v46
  %v91 = vunpack.c.l.b16 %v47
  %v92 = vunpack.c.l.b16 %v48
  %v93 = vunpack.c.l.b16 %v49
  %v94 = vunpack.c.l.b16 %v50
  %v95 = vunpack.c.l.b16 %v51
  %v96 = vunpack.c.l.b16 %v52
  %v97 = vpack.c.b16 %v82, %v81
  %v98 = vpack.c.b16 %v84, %v83
  %v99 = vpack.c.b16 %v86, %v85
  %v100 = vpack.c.b16 %v88, %v87
  %v101 = vpack.c.b16 %v90, %v89
  %v102 = vpack.c.b16 %v92, %v91
  %v103 = vpack.c.b16 %v94, %v93
  %v104 = vpack.c.b16 %v96, %v95
  %113 = vmatprep.subr.bf16.mxu0 0
  %114 = vmatpush1.bf16.msra.mxu0 %v104
  %115 = vmatprep.subr.bf16.mxu0 0
  %116 = vmatpush1.bf16.msra.mxu0 %v103
  %117 = vmatprep.subr.bf16.mxu0 0
  %118 = vmatpush1.bf16.msra.mxu0 %v102
  %119 = vmatprep.subr.bf16.mxu0 0
  %120 = vmatpush1.bf16.msra.mxu0 %v101
  %121 = vmatprep.subr.bf16.mxu0 0
  %122 = vmatpush1.bf16.msra.mxu0 %v100
  %123 = vmatprep.subr.bf16.mxu0 0
  %124 = vmatpush1.bf16.msra.mxu0 %v99
  %125 = vmatprep.subr.bf16.mxu0 0
  %126 = vmatpush1.bf16.msra.mxu0 %v98
  %127 = vmatprep.subr.bf16.mxu0 0
  %128 = vmatpush1.bf16.msra.mxu0 %v97
  %129 = vmatprep.subr.bf16.mxu0 0
  %130 = vmatpush2.bf16.msra.mxu0 0
  %131 = vmatprep.subr.bf16.mxu0 0
  %132 = vmatpush2.bf16.msra.mxu0 0
  %133 = vmatprep.subr.bf16.mxu0 0
  %134 = vmatpush2.bf16.msra.mxu0 0
  %135 = vmatprep.subr.bf16.mxu0 0
  %136 = vmatpush2.bf16.msra.mxu0 0
  %137 = vmatprep.subr.bf16.mxu0 0
  %138 = vmatpush2.bf16.msra.mxu0 0
  %139 = vmatprep.subr.bf16.mxu0 0
  %140 = vmatpush2.bf16.msra.mxu0 0
  %141 = vmatprep.subr.bf16.mxu0 0
  %142 = vmatpush2.bf16.msra.mxu0 0
  %143 = vmatprep.subr.bf16.mxu0 0
  %144 = vmatpush2.bf16.msra.mxu0 0
  %145 = vmatprep.mubr.bf16.mxu0 0
  %146 = vmatmul.mubr.bf16.gmra.mxu0 %v61
  %v147 = vpop.f32.mrf.mxu0
  %v148 = vadd.f32 0.0, %v147
  %v149 = vpop.f32.mrf.mxu0
  %v150 = vpop.f32.mrf.mxu0
  %v151 = vadd.f32 0.0, %v150
  %v152 = vpop.f32.mrf.mxu0
  %153 = vmatprep.mubr.bf16.mxu0 0
  %154 = vmatmul.mubr.bf16.gmra.mxu0 %v62
  %v155 = vpop.f32.mrf.mxu0
  %v156 = vadd.f32 0.0, %v155
  %v157 = vpop.f32.mrf.mxu0
  %v158 = vpop.f32.mrf.mxu0
  %v159 = vadd.f32 0.0, %v158
  %v160 = vpop.f32.mrf.mxu0
  %161 = vdwg.mxu0
  %v162 = vadd.f32 %v29, %v148
  %v163 = vadd.f32 %v30, %v151
  %v164 = vadd.f32 %v31, %v156
  %v165 = vadd.f32 %v32, %v159
  %166 = vst [vmem:[#allocation2] sm:$0xff] %v162
  %167 = vst [vmem:[#allocation2 + $0x8] sm:$0xff] %v163
  %168 = vst [vmem:[#allocation2 + $0x10] sm:$0xff] %v164
  %169 = vst [vmem:[#allocation2 + $0x18] sm:$0xff] %v165
  // Predicated region
  $region26: #{_forward.87} parent=0 // pred_check
    %p170 = pneg %p21
  $region27: #{_forward.87} parent=0 // pred_check_branch
    %172 = sbr.rel (%p170) target = $region29
  $region28: #{_forward.87} parent=0 // pred_region
    %v173 = vld [vmem:[#allocation2] sm:$0xff]
    %v174 = vld [vmem:[#allocation2 + $0x8] sm:$0xff]
    %v175 = vld [vmem:[#allocation2 + $0x10] sm:$0xff]
    %v176 = vld [vmem:[#allocation2 + $0x18] sm:$0xff]
    %v177 = vld [vmem:[%s2] sm:$0x1]
    %v179 = vlaneseq
    %v180 = vshrl.u32 %v179, 7
    %v181 = vsub.s32 0, %v180
    %v182 = vrot.slane %v177, %v181
    %v184 = vadd.f32 %v173, %v182
    %v185 = vadd.f32 %v174, %v182
    %v186 = vadd.f32 %v175, %v182
    %v187 = vadd.f32 %v176, %v182
    %v188 = vld [vmem:[%s3] sm:$0xff]
    %v189 = vld [vmem:[%s3 + $0x8] sm:$0xff]
    %v190 = vld [vmem:[%s3 + $0x10] sm:$0xff]
    %v191 = vld [vmem:[%s3 + $0x18] sm:$0xff]
    %v192 = vxor.u32 %v184, 2147483648
    %v193 = vxor.u32 %v185, 2147483648
    %v194 = vxor.u32 %v186, 2147483648
    %v195 = vxor.u32 %v187, 2147483648
    %v196 = vmul.f32 %v192, 1.442695
    %v197 = vpow.pop %v196
    %v198 = vmul.f32 %v193, 1.442695
    %v199 = vpow.pop %v198
    %v200 = vmul.f32 %v194, 1.442695
    %v201 = vpow.pop %v200
    %v202 = vmul.f32 %v195, 1.442695
    %v203 = vpow.pop %v202
    %v204 = vadd.f32 %v197, 1.0
    %v205 = vadd.f32 %v199, 1.0
    %v206 = vadd.f32 %v201, 1.0
    %v207 = vadd.f32 %v203, 1.0
    %v208 = vrcp.pop %v204
    %v209 = vmul.f32 1.0, %v208
    %v210 = vrcp.pop %v205
    %v211 = vmul.f32 1.0, %v210
    %v212 = vrcp.pop %v206
    %v213 = vmul.f32 1.0, %v212
    %v214 = vrcp.pop %v207
    %v215 = vmul.f32 1.0, %v214
    %v216 = vmul.f32 %v188, %v209
    %v217 = vmul.f32 %v189, %v211
    %v218 = vmul.f32 %v190, %v213
    %v219 = vmul.f32 %v191, %v215
    %v220 = vld [vmem:[%s4] sm:$0xff]
    %v221 = vld [vmem:[%s4 + $0x8] sm:$0xff]
    %v222 = vld [vmem:[%s4 + $0x10] sm:$0xff]
    %v223 = vld [vmem:[%s4 + $0x18] sm:$0xff]
    %v224 = vadd.f32 %v216, %v220
    %v225 = vadd.f32 %v217, %v221
    %v226 = vadd.f32 %v218, %v222
    %v227 = vadd.f32 %v219, %v223
    %228 = vst [vmem:[%s5] sm:$0xff] %v224
    %229 = vst [vmem:[%s5 + $0x8] sm:$0xff] %v225
    %230 = vst [vmem:[%s5 + $0x10] sm:$0xff] %v226
    %231 = vst [vmem:[%s5 + $0x18] sm:$0xff] %v227
  $region29: #{_forward.87} parent=0 // pred_fallthru
    _
  // Predicated region
  $region30: #{_forward.87} parent=0 // pred_check
    _
  $region31: #{_forward.87} parent=0 // pred_check_branch
    %233 = sbr.rel (0) target = $region33
  $region32: #{_forward.87} parent=0 // pred_region
    _
  $region33: #{_forward.87} parent=0 // pred_fallthru
    _
  // Predicated region
  $region34: #{_forward.87} parent=0 // pred_check
    _
  $region35: #{_forward.87} parent=0 // pred_check_branch
    %235 = sbr.rel (0) target = $region37
  $region36: #{_forward.87} parent=0 // pred_region
    _
  $region37: #{_forward.87} parent=0 // pred_fallthru
    _

// kernel: _forward.71
$region0: #{_forward.71}
  #allocation0 [shape = 'u32[]', space=smem, size = 0x4, offset = 0x4, fixed_abs, tag = 'smem constant byte address 0x4 - core index']
  #allocation1 [shape = 'u32[144,128]{1,0:T(1,128)}', space=vmem, size = 0x12000, scoped, tag = 'internal scratch']
  #allocation2 [shape = 'f32[32,128]{1,0:T(8,128)}', space=vmem, size = 0x4000, scoped, tag = 'scratch operand']
  %s0 = inlined_call_operand.vmem [shape: bf16[32,128], index: 0, kind: input, shape index: {}]
  %s1 = inlined_call_operand.vmem [shape: bf16[128,128], index: 1, kind: input, shape index: {}]
  %s2 = inlined_call_operand.vmem [shape: f32[1,128], index: 2, kind: input, shape index: {}]
  %s3 = inlined_call_operand.vmem [shape: f32[32,128], index: 3, kind: input, shape index: {}]
  %s4 = inlined_call_operand.vmem [shape: f32[32,128], index: 4, kind: output, shape index: {}]
  %s5 = sld [smem:[#allocation0]]
  $region34: #{_forward.71} parent=0
    _
  %s7 = ssub.s32 1, %s5
  %s8 = scalar_select 0, %s7, %s5
  // Predicated region
  $region2: #{_forward.71} parent=0 // pred_check
    _
  $region3: #{_forward.71} parent=0 // pred_check_branch
    %10 = sbr.rel (0) target = $region5
  $region4: #{_forward.71} parent=0 // pred_region
    _
  $region5: #{_forward.71} parent=0 // pred_fallthru
    _
  // Predicated region
  $region6: #{_forward.71} parent=0 // pred_check
    _
  $region7: #{_forward.71} parent=0 // pred_check_branch
    %12 = sbr.rel (0) target = $region9
  $region8: #{_forward.71} parent=0 // pred_region
    _
  $region9: #{_forward.71} parent=0 // pred_fallthru
    _
  // Predicated region
  $region10: #{_forward.71} parent=0 // pred_check
    _
  $region11: #{_forward.71} parent=0 // pred_check_branch
    %14 = sbr.rel (0) target = $region13
  $region12: #{_forward.71} parent=0 // pred_region
    _
  $region13: #{_forward.71} parent=0 // pred_fallthru
    _
  // Predicated region
  $region14: #{_forward.71} parent=0 // pred_check
    _
  $region15: #{_forward.71} parent=0 // pred_check_branch
    %16 = sbr.rel (0) target = $region17
  $region16: #{_forward.71} parent=0 // pred_region
    _
  $region17: #{_forward.71} parent=0 // pred_fallthru
    _
  %p18 = scmp.eq.s32.totalorder 0, 0
  // Predicated region
  $region18: #{_forward.71} parent=0 // pred_check
    %p19 = pneg %p18
  $region19: #{_forward.71} parent=0 // pred_check_branch
    %21 = sbr.rel (%p19) target = $region21
  $region20: #{_forward.71} parent=0 // pred_region
    %22 = vst [vmem:[#allocation2] sm:$0xff] 0.0
    %23 = vst [vmem:[#allocation2 + $0x8] sm:$0xff] 0.0
    %24 = vst [vmem:[#allocation2 + $0x10] sm:$0xff] 0.0
    %25 = vst [vmem:[#allocation2 + $0x18] sm:$0xff] 0.0
  $region21: #{_forward.71} parent=0 // pred_fallthru
    _
  %v26 = vld [vmem:[#allocation2] sm:$0xff]
  %v27 = vld [vmem:[#allocation2 + $0x8] sm:$0xff]
  %v28 = vld [vmem:[#allocation2 + $0x10] sm:$0xff]
  %v29 = vld [vmem:[#allocation2 + $0x18] sm:$0xff]
  %v30 = vld [vmem:[%s0] sm:$0xf]
  %v31 = vld [vmem:[%s0 + $0x4] sm:$0xf]
  %v32 = vld [vmem:[%s0 + $0x8] sm:$0xf]
  %v33 = vld [vmem:[%s0 + $0xc] sm:$0xf]
  %v34 = vld [vmem:[%s1] sm:$0xf]
  %v35 = vld [vmem:[%s1 + $0x4] sm:$0xf]
  %v36 = vld [vmem:[%s1 + $0x8] sm:$0xf]
  %v37 = vld [vmem:[%s1 + $0xc] sm:$0xf]
  %v38 = vld [vmem:[%s1 + $0x10] sm:$0xf]
  %v39 = vld [vmem:[%s1 + $0x14] sm:$0xf]
  %v40 = vld [vmem:[%s1 + $0x18] sm:$0xf]
  %v41 = vld [vmem:[%s1 + $0x1c] sm:$0xf]
  %v42 = vld [vmem:[%s1 + $0x20] sm:$0xf]
  %v43 = vld [vmem:[%s1 + $0x24] sm:$0xf]
  %v44 = vld [vmem:[%s1 + $0x28] sm:$0xf]
  %v45 = vld [vmem:[%s1 + $0x2c] sm:$0xf]
  %v46 = vld [vmem:[%s1 + $0x30] sm:$0xf]
  %v47 = vld [vmem:[%s1 + $0x34] sm:$0xf]
  %v48 = vld [vmem:[%s1 + $0x38] sm:$0xf]
  %v49 = vld [vmem:[%s1 + $0x3c] sm:$0xf]
  %v54 = vunpack.c.l.b16 %v30
  %v55 = vunpack.c.l.b16 %v31
  %v56 = vunpack.c.l.b16 %v32
  %v57 = vunpack.c.l.b16 %v33
  %v58 = vpack.c.b16 %v55, %v54
  %v59 = vpack.c.b16 %v57, %v56
  %v78 = vunpack.c.l.b16 %v34
  %v79 = vunpack.c.l.b16 %v35
  %v80 = vunpack.c.l.b16 %v36
  %v81 = vunpack.c.l.b16 %v37
  %v82 = vunpack.c.l.b16 %v38
  %v83 = vunpack.c.l.b16 %v39
  %v84 = vunpack.c.l.b16 %v40
  %v85 = vunpack.c.l.b16 %v41
  %v86 = vunpack.c.l.b16 %v42
  %v87 = vunpack.c.l.b16 %v43
  %v88 = vunpack.c.l.b16 %v44
  %v89 = vunpack.c.l.b16 %v45
  %v90 = vunpack.c.l.b16 %v46
  %v91 = vunpack.c.l.b16 %v47
  %v92 = vunpack.c.l.b16 %v48
  %v93 = vunpack.c.l.b16 %v49
  %v94 = vpack.c.b16 %v79, %v78
  %v95 = vpack.c.b16 %v81, %v80
  %v96 = vpack.c.b16 %v83, %v82
  %v97 = vpack.c.b16 %v85, %v84
  %v98 = vpack.c.b16 %v87, %v86
  %v99 = vpack.c.b16 %v89, %v88
  %v100 = vpack.c.b16 %v91, %v90
  %v101 = vpack.c.b16 %v93, %v92
  %110 = vmatprep.subr.bf16.mxu0 0
  %111 = vmatpush1.bf16.msra.mxu0 %v101
  %112 = vmatprep.subr.bf16.mxu0 0
  %113 = vmatpush1.bf16.msra.mxu0 %v100
  %114 = vmatprep.subr.bf16.mxu0 0
  %115 = vmatpush1.bf16.msra.mxu0 %v99
  %116 = vmatprep.subr.bf16.mxu0 0
  %117 = vmatpush1.bf16.msra.mxu0 %v98
  %118 = vmatprep.subr.bf16.mxu0 0
  %119 = vmatpush1.bf16.msra.mxu0 %v97
  %120 = vmatprep.subr.bf16.mxu0 0
  %121 = vmatpush1.bf16.msra.mxu0 %v96
  %122 = vmatprep.subr.bf16.mxu0 0
  %123 = vmatpush1.bf16.msra.mxu0 %v95
  %124 = vmatprep.subr.bf16.mxu0 0
  %125 = vmatpush1.bf16.msra.mxu0 %v94
  %126 = vmatprep.subr.bf16.mxu0 0
  %127 = vmatpush2.bf16.msra.mxu0 0
  %128 = vmatprep.subr.bf16.mxu0 0
  %129 = vmatpush2.bf16.msra.mxu0 0
  %130 = vmatprep.subr.bf16.mxu0 0
  %131 = vmatpush2.bf16.msra.mxu0 0
  %132 = vmatprep.subr.bf16.mxu0 0
  %133 = vmatpush2.bf16.msra.mxu0 0
  %134 = vmatprep.subr.bf16.mxu0 0
  %135 = vmatpush2.bf16.msra.mxu0 0
  %136 = vmatprep.subr.bf16.mxu0 0
  %137 = vmatpush2.bf16.msra.mxu0 0
  %138 = vmatprep.subr.bf16.mxu0 0
  %139 = vmatpush2.bf16.msra.mxu0 0
  %140 = vmatprep.subr.bf16.mxu0 0
  %141 = vmatpush2.bf16.msra.mxu0 0
  %142 = vmatprep.mubr.bf16.mxu0 0
  %143 = vmatmul.mubr.bf16.gmra.mxu0 %v58
  %v144 = vpop.f32.mrf.mxu0
  %v145 = vadd.f32 0.0, %v144
  %v146 = vpop.f32.mrf.mxu0
  %v147 = vpop.f32.mrf.mxu0
  %v148 = vadd.f32 0.0, %v147
  %v149 = vpop.f32.mrf.mxu0
  %150 = vmatprep.mubr.bf16.mxu0 0
  %151 = vmatmul.mubr.bf16.gmra.mxu0 %v59
  %v152 = vpop.f32.mrf.mxu0
  %v153 = vadd.f32 0.0, %v152
  %v154 = vpop.f32.mrf.mxu0
  %v155 = vpop.f32.mrf.mxu0
  %v156 = vadd.f32 0.0, %v155
  %v157 = vpop.f32.mrf.mxu0
  %158 = vdwg.mxu0
  %v159 = vadd.f32 %v26, %v145
  %v160 = vadd.f32 %v27, %v148
  %v161 = vadd.f32 %v28, %v153
  %v162 = vadd.f32 %v29, %v156
  %163 = vst [vmem:[#allocation2] sm:$0xff] %v159
  %164 = vst [vmem:[#allocation2 + $0x8] sm:$0xff] %v160
  %165 = vst [vmem:[#allocation2 + $0x10] sm:$0xff] %v161
  %166 = vst [vmem:[#allocation2 + $0x18] sm:$0xff] %v162
  // Predicated region
  $region22: #{_forward.71} parent=0 // pred_check
    %p167 = pneg %p18
  $region23: #{_forward.71} parent=0 // pred_check_branch
    %169 = sbr.rel (%p167) target = $region25
  $region24: #{_forward.71} parent=0 // pred_region
    %v170 = vld [vmem:[#allocation2] sm:$0xff]
    %v171 = vld [vmem:[#allocation2 + $0x8] sm:$0xff]
    %v172 = vld [vmem:[#allocation2 + $0x10] sm:$0xff]
    %v173 = vld [vmem:[#allocation2 + $0x18] sm:$0xff]
    %v174 = vld [vmem:[%s2] sm:$0x1]
    %v176 = vlaneseq
    %v177 = vshrl.u32 %v176, 7
    %v178 = vsub.s32 0, %v177
    %v179 = vrot.slane %v174, %v178
    %v181 = vadd.f32 %v170, %v179
    %v182 = vadd.f32 %v171, %v179
    %v183 = vadd.f32 %v172, %v179
    %v184 = vadd.f32 %v173, %v179
    %v185 = vld [vmem:[%s3] sm:$0xff]
    %v186 = vld [vmem:[%s3 + $0x8] sm:$0xff]
    %v187 = vld [vmem:[%s3 + $0x10] sm:$0xff]
    %v188 = vld [vmem:[%s3 + $0x18] sm:$0xff]
    %v189 = vadd.f32 %v181, %v185
    %v190 = vadd.f32 %v182, %v186
    %v191 = vadd.f32 %v183, %v187
    %v192 = vadd.f32 %v184, %v188
    %v193 = vmax.f32 %v189, 0.0
    %v194 = vmax.f32 %v190, 0.0
    %v195 = vmax.f32 %v191, 0.0
    %v196 = vmax.f32 %v192, 0.0
    %197 = vst [vmem:[%s4] sm:$0xff] %v193
    %198 = vst [vmem:[%s4 + $0x8] sm:$0xff] %v194
    %199 = vst [vmem:[%s4 + $0x10] sm:$0xff] %v195
    %200 = vst [vmem:[%s4 + $0x18] sm:$0xff] %v196
  $region25: #{_forward.71} parent=0 // pred_fallthru
    _
  // Predicated region
  $region26: #{_forward.71} parent=0 // pred_check
    _
  $region27: #{_forward.71} parent=0 // pred_check_branch
    %202 = sbr.rel (0) target = $region29
  $region28: #{_forward.71} parent=0 // pred_region
    _
  $region29: #{_forward.71} parent=0 // pred_fallthru
    _
  // Predicated region
  $region30: #{_forward.71} parent=0 // pred_check
    _
  $region31: #{_forward.71} parent=0 // pred_check_branch
    %204 = sbr.rel (0) target = $region33
  $region32: #{_forward.71} parent=0 // pred_region
    _
  $region33: #{_forward.71} parent=0 // pred_fallthru
    _

// kernel: _forward.89
$region0: #{_forward.89}
  #allocation0 [shape = 'u32[]', space=smem, size = 0x4, offset = 0x4, fixed_abs, tag = 'smem constant byte address 0x4 - core index']
  #allocation1 [shape = 'u32[144,128]{1,0:T(1,128)}', space=vmem, size = 0x12000, scoped, tag = 'internal scratch']
  #allocation2 [shape = 'f32[32,128]{1,0:T(8,128)}', space=vmem, size = 0x4000, scoped, tag = 'scratch operand']
  %s0 = inlined_call_operand.vmem [shape: bf16[32,128], index: 0, kind: input, shape index: {}]
  %s1 = inlined_call_operand.vmem [shape: bf16[128,128], index: 1, kind: input, shape index: {}]
  %s2 = inlined_call_operand.vmem [shape: f32[1,128], index: 2, kind: input, shape index: {}]
  %s3 = inlined_call_operand.vmem [shape: f32[32,128], index: 3, kind: input, shape index: {}]
  %s4 = inlined_call_operand.vmem [shape: f32[32,128], index: 4, kind: output, shape index: {}]
  %s5 = sld [smem:[#allocation0]]
  $region34: #{_forward.89} parent=0
    _
  %s7 = ssub.s32 1, %s5
  %s8 = scalar_select 0, %s7, %s5
  // Predicated region
  $region2: #{_forward.89} parent=0 // pred_check
    _
  $region3: #{_forward.89} parent=0 // pred_check_branch
    %10 = sbr.rel (0) target = $region5
  $region4: #{_forward.89} parent=0 // pred_region
    _
  $region5: #{_forward.89} parent=0 // pred_fallthru
    _
  // Predicated region
  $region6: #{_forward.89} parent=0 // pred_check
    _
  $region7: #{_forward.89} parent=0 // pred_check_branch
    %12 = sbr.rel (0) target = $region9
  $region8: #{_forward.89} parent=0 // pred_region
    _
  $region9: #{_forward.89} parent=0 // pred_fallthru
    _
  // Predicated region
  $region10: #{_forward.89} parent=0 // pred_check
    _
  $region11: #{_forward.89} parent=0 // pred_check_branch
    %14 = sbr.rel (0) target = $region13
  $region12: #{_forward.89} parent=0 // pred_region
    _
  $region13: #{_forward.89} parent=0 // pred_fallthru
    _
  // Predicated region
  $region14: #{_forward.89} parent=0 // pred_check
    _
  $region15: #{_forward.89} parent=0 // pred_check_branch
    %16 = sbr.rel (0) target = $region17
  $region16: #{_forward.89} parent=0 // pred_region
    _
  $region17: #{_forward.89} parent=0 // pred_fallthru
    _
  %p18 = scmp.eq.s32.totalorder 0, 0
  // Predicated region
  $region18: #{_forward.89} parent=0 // pred_check
    %p19 = pneg %p18
  $region19: #{_forward.89} parent=0 // pred_check_branch
    %21 = sbr.rel (%p19) target = $region21
  $region20: #{_forward.89} parent=0 // pred_region
    %22 = vst [vmem:[#allocation2] sm:$0xff] 0.0
    %23 = vst [vmem:[#allocation2 + $0x8] sm:$0xff] 0.0
    %24 = vst [vmem:[#allocation2 + $0x10] sm:$0xff] 0.0
    %25 = vst [vmem:[#allocation2 + $0x18] sm:$0xff] 0.0
  $region21: #{_forward.89} parent=0 // pred_fallthru
    _
  %v26 = vld [vmem:[#allocation2] sm:$0xff]
  %v27 = vld [vmem:[#allocation2 + $0x8] sm:$0xff]
  %v28 = vld [vmem:[#allocation2 + $0x10] sm:$0xff]
  %v29 = vld [vmem:[#allocation2 + $0x18] sm:$0xff]
  %v30 = vld [vmem:[%s0] sm:$0xf]
  %v31 = vld [vmem:[%s0 + $0x4] sm:$0xf]
  %v32 = vld [vmem:[%s0 + $0x8] sm:$0xf]
  %v33 = vld [vmem:[%s0 + $0xc] sm:$0xf]
  %v34 = vld [vmem:[%s1] sm:$0xf]
  %v35 = vld [vmem:[%s1 + $0x4] sm:$0xf]
  %v36 = vld [vmem:[%s1 + $0x8] sm:$0xf]
  %v37 = vld [vmem:[%s1 + $0xc] sm:$0xf]
  %v38 = vld [vmem:[%s1 + $0x10] sm:$0xf]
  %v39 = vld [vmem:[%s1 + $0x14] sm:$0xf]
  %v40 = vld [vmem:[%s1 + $0x18] sm:$0xf]
  %v41 = vld [vmem:[%s1 + $0x1c] sm:$0xf]
  %v42 = vld [vmem:[%s1 + $0x20] sm:$0xf]
  %v43 = vld [vmem:[%s1 + $0x24] sm:$0xf]
  %v44 = vld [vmem:[%s1 + $0x28] sm:$0xf]
  %v45 = vld [vmem:[%s1 + $0x2c] sm:$0xf]
  %v46 = vld [vmem:[%s1 + $0x30] sm:$0xf]
  %v47 = vld [vmem:[%s1 + $0x34] sm:$0xf]
  %v48 = vld [vmem:[%s1 + $0x38] sm:$0xf]
  %v49 = vld [vmem:[%s1 + $0x3c] sm:$0xf]
  %v54 = vunpack.c.l.b16 %v30
  %v55 = vunpack.c.l.b16 %v31
  %v56 = vunpack.c.l.b16 %v32
  %v57 = vunpack.c.l.b16 %v33
  %v58 = vpack.c.b16 %v55, %v54
  %v59 = vpack.c.b16 %v57, %v56
  %v78 = vunpack.c.l.b16 %v34
  %v79 = vunpack.c.l.b16 %v35
  %v80 = vunpack.c.l.b16 %v36
  %v81 = vunpack.c.l.b16 %v37
  %v82 = vunpack.c.l.b16 %v38
  %v83 = vunpack.c.l.b16 %v39
  %v84 = vunpack.c.l.b16 %v40
  %v85 = vunpack.c.l.b16 %v41
  %v86 = vunpack.c.l.b16 %v42
  %v87 = vunpack.c.l.b16 %v43
  %v88 = vunpack.c.l.b16 %v44
  %v89 = vunpack.c.l.b16 %v45
  %v90 = vunpack.c.l.b16 %v46
  %v91 = vunpack.c.l.b16 %v47
  %v92 = vunpack.c.l.b16 %v48
  %v93 = vunpack.c.l.b16 %v49
  %v94 = vpack.c.b16 %v79, %v78
  %v95 = vpack.c.b16 %v81, %v80
  %v96 = vpack.c.b16 %v83, %v82
  %v97 = vpack.c.b16 %v85, %v84
  %v98 = vpack.c.b16 %v87, %v86
  %v99 = vpack.c.b16 %v89, %v88
  %v100 = vpack.c.b16 %v91, %v90
  %v101 = vpack.c.b16 %v93, %v92
  %110 = vmatprep.subr.bf16.mxu0 0
  %111 = vmatpush1.bf16.msra.mxu0 %v101
  %112 = vmatprep.subr.bf16.mxu0 0
  %113 = vmatpush1.bf16.msra.mxu0 %v100
  %114 = vmatprep.subr.bf16.mxu0 0
  %115 = vmatpush1.bf16.msra.mxu0 %v99
  %116 = vmatprep.subr.bf16.mxu0 0
  %117 = vmatpush1.bf16.msra.mxu0 %v98
  %118 = vmatprep.subr.bf16.mxu0 0
  %119 = vmatpush1.bf16.msra.mxu0 %v97
  %120 = vmatprep.subr.bf16.mxu0 0
  %121 = vmatpush1.bf16.msra.mxu0 %v96
  %122 = vmatprep.subr.bf16.mxu0 0
  %123 = vmatpush1.bf16.msra.mxu0 %v95
  %124 = vmatprep.subr.bf16.mxu0 0
  %125 = vmatpush1.bf16.msra.mxu0 %v94
  %126 = vmatprep.subr.bf16.mxu0 0
  %127 = vmatpush2.bf16.msra.mxu0 0
  %128 = vmatprep.subr.bf16.mxu0 0
  %129 = vmatpush2.bf16.msra.mxu0 0
  %130 = vmatprep.subr.bf16.mxu0 0
  %131 = vmatpush2.bf16.msra.mxu0 0
  %132 = vmatprep.subr.bf16.mxu0 0
  %133 = vmatpush2.bf16.msra.mxu0 0
  %134 = vmatprep.subr.bf16.mxu0 0
  %135 = vmatpush2.bf16.msra.mxu0 0
  %136 = vmatprep.subr.bf16.mxu0 0
  %137 = vmatpush2.bf16.msra.mxu0 0
  %138 = vmatprep.subr.bf16.mxu0 0
  %139 = vmatpush2.bf16.msra.mxu0 0
  %140 = vmatprep.subr.bf16.mxu0 0
  %141 = vmatpush2.bf16.msra.mxu0 0
  %142 = vmatprep.mubr.bf16.mxu0 0
  %143 = vmatmul.mubr.bf16.gmra.mxu0 %v58
  %v144 = vpop.f32.mrf.mxu0
  %v145 = vadd.f32 0.0, %v144
  %v146 = vpop.f32.mrf.mxu0
  %v147 = vpop.f32.mrf.mxu0
  %v148 = vadd.f32 0.0, %v147
  %v149 = vpop.f32.mrf.mxu0
  %150 = vmatprep.mubr.bf16.mxu0 0
  %151 = vmatmul.mubr.bf16.gmra.mxu0 %v59
  %v152 = vpop.f32.mrf.mxu0
  %v153 = vadd.f32 0.0, %v152
  %v154 = vpop.f32.mrf.mxu0
  %v155 = vpop.f32.mrf.mxu0
  %v156 = vadd.f32 0.0, %v155
  %v157 = vpop.f32.mrf.mxu0
  %158 = vdwg.mxu0
  %v159 = vadd.f32 %v26, %v145
  %v160 = vadd.f32 %v27, %v148
  %v161 = vadd.f32 %v28, %v153
  %v162 = vadd.f32 %v29, %v156
  %163 = vst [vmem:[#allocation2] sm:$0xff] %v159
  %164 = vst [vmem:[#allocation2 + $0x8] sm:$0xff] %v160
  %165 = vst [vmem:[#allocation2 + $0x10] sm:$0xff] %v161
  %166 = vst [vmem:[#allocation2 + $0x18] sm:$0xff] %v162
  // Predicated region
  $region22: #{_forward.89} parent=0 // pred_check
    %p167 = pneg %p18
  $region23: #{_forward.89} parent=0 // pred_check_branch
    %169 = sbr.rel (%p167) target = $region25
  $region24: #{_forward.89} parent=0 // pred_region
    %v170 = vld [vmem:[#allocation2] sm:$0xff]
    %v171 = vld [vmem:[#allocation2 + $0x8] sm:$0xff]
    %v172 = vld [vmem:[#allocation2 + $0x10] sm:$0xff]
    %v173 = vld [vmem:[#allocation2 + $0x18] sm:$0xff]
    %v174 = vld [vmem:[%s2] sm:$0x1]
    %v176 = vlaneseq
    %v177 = vshrl.u32 %v176, 7
    %v178 = vsub.s32 0, %v177
    %v179 = vrot.slane %v174, %v178
    %v181 = vadd.f32 %v170, %v179
    %v182 = vadd.f32 %v171, %v179
    %v183 = vadd.f32 %v172, %v179
    %v184 = vadd.f32 %v173, %v179
    %vm185 = vcmp.gt.f32.partialorder %v181, 0.0
    %vm186 = vcmp.gt.f32.partialorder %v182, 0.0
    %vm187 = vcmp.gt.f32.partialorder %v183, 0.0
    %vm188 = vcmp.gt.f32.partialorder %v184, 0.0
    %v189 = vmul.f32 %v181, 0.01
    %v190 = vmul.f32 %v182, 0.01
    %v191 = vmul.f32 %v183, 0.01
    %v192 = vmul.f32 %v184, 0.01
    %v193 = vsel %vm185, %v181, %v189
    %v194 = vsel %vm186, %v182, %v190
    %v195 = vsel %vm187, %v183, %v191
    %v196 = vsel %vm188, %v184, %v192
    %v197 = vld [vmem:[%s3] sm:$0xff]
    %v198 = vld [vmem:[%s3 + $0x8] sm:$0xff]
    %v199 = vld [vmem:[%s3 + $0x10] sm:$0xff]
    %v200 = vld [vmem:[%s3 + $0x18] sm:$0xff]
    %v201 = vadd.f32 %v193, %v197
    %v202 = vadd.f32 %v194, %v198
    %v203 = vadd.f32 %v195, %v199
    %v204 = vadd.f32 %v196, %v200
    %205 = vst [vmem:[%s4] sm:$0xff] %v201
    %206 = vst [vmem:[%s4 + $0x8] sm:$0xff] %v202
    %207 = vst [vmem:[%s4 + $0x10] sm:$0xff] %v203
    %208 = vst [vmem:[%s4 + $0x18] sm:$0xff] %v204
  $region25: #{_forward.89} parent=0 // pred_fallthru
    _
  // Predicated region
  $region26: #{_forward.89} parent=0 // pred_check
    _
  $region27: #{_forward.89} parent=0 // pred_check_branch
    %210 = sbr.rel (0) target = $region29
  $region28: #{_forward.89} parent=0 // pred_region
    _
  $region29: #{_forward.89} parent=0 // pred_fallthru
    _
  // Predicated region
  $region30: #{_forward.89} parent=0 // pred_check
    _
  $region31: #{_forward.89} parent=0 // pred_check_branch
    %212 = sbr.rel (0) target = $region33
  $region32: #{_forward.89} parent=0 // pred_region
    _
  $region33: #{_forward.89} parent=0 // pred_fallthru
    _

// kernel: _forward.114
$region0: #{_forward.114}
  #allocation0 [shape = 'u32[]', space=smem, size = 0x4, offset = 0x4, fixed_abs, tag = 'smem constant byte address 0x4 - core index']
  #allocation1 [shape = 'u32[144,128]{1,0:T(1,128)}', space=vmem, size = 0x12000, scoped, tag = 'internal scratch']
  %s0 = inlined_call_operand.vmem [shape: f32[128,128], index: 0, kind: input, shape index: {}]
  %s1 = inlined_call_operand.vmem [shape: f32[128,128], index: 1, kind: input, shape index: {}]
  %s2 = inlined_call_operand.vmem [shape: f32[1,128], index: 2, kind: input, shape index: {}]
  %s3 = inlined_call_operand.vmem [shape: f32[128,128], index: 3, kind: input, shape index: {}]
  %s4 = inlined_call_operand.vmem [shape: f32[128,128], index: 4, kind: output, shape index: {}]
  %s5 = sld [smem:[#allocation0]]
  $region26: #{_forward.114} parent=0
    _
  %s7 = ssub.s32 1, %s5
  %s8 = scalar_select 0, %s7, %s5
  // Predicated region
  $region2: #{_forward.114} parent=0 // pred_check
    _
  $region3: #{_forward.114} parent=0 // pred_check_branch
    %10 = sbr.rel (0) target = $region5
  $region4: #{_forward.114} parent=0 // pred_region
    _
  $region5: #{_forward.114} parent=0 // pred_fallthru
    _
  // Predicated region
  $region6: #{_forward.114} parent=0 // pred_check
    _
  $region7: #{_forward.114} parent=0 // pred_check_branch
    %12 = sbr.rel (0) target = $region9
  $region8: #{_forward.114} parent=0 // pred_region
    _
  $region9: #{_forward.114} parent=0 // pred_fallthru
    _
  // Predicated region
  $region10: #{_forward.114} parent=0 // pred_check
    _
  $region11: #{_forward.114} parent=0 // pred_check_branch
    %14 = sbr.rel (0) target = $region13
  $region12: #{_forward.114} parent=0 // pred_region
    _
  $region13: #{_forward.114} parent=0 // pred_fallthru
    _
  // Predicated region
  $region14: #{_forward.114} parent=0 // pred_check
    _
  $region15: #{_forward.114} parent=0 // pred_check_branch
    %16 = sbr.rel (0) target = $region17
  $region16: #{_forward.114} parent=0 // pred_region
    _
  $region17: #{_forward.114} parent=0 // pred_fallthru
    _
  %v17 = vld [vmem:[%s0] sm:$0xff]
  %v18 = vld [vmem:[%s0 + $0x8] sm:$0xff]
  %v19 = vld [vmem:[%s0 + $0x10] sm:$0xff]
  %v20 = vld [vmem:[%s0 + $0x18] sm:$0xff]
  %v21 = vld [vmem:[%s0 + $0x20] sm:$0xff]
  %v22 = vld [vmem:[%s0 + $0x28] sm:$0xff]
  %v23 = vld [vmem:[%s0 + $0x30] sm:$0xff]
  %v24 = vld [vmem:[%s0 + $0x38] sm:$0xff]
  %v25 = vld [vmem:[%s0 + $0x40] sm:$0xff]
  %v26 = vld [vmem:[%s0 + $0x48] sm:$0xff]
  %v27 = vld [vmem:[%s0 + $0x50] sm:$0xff]
  %v28 = vld [vmem:[%s0 + $0x58] sm:$0xff]
  %v29 = vld [vmem:[%s0 + $0x60] sm:$0xff]
  %v30 = vld [vmem:[%s0 + $0x68] sm:$0xff]
  %v31 = vld [vmem:[%s0 + $0x70] sm:$0xff]
  %v32 = vld [vmem:[%s0 + $0x78] sm:$0xff]
  %v33 = vmul.f32 %v17, %v17
  %v34 = vmul.f32 %v18, %v18
  %v35 = vmul.f32 %v19, %v19
  %v36 = vmul.f32 %v20, %v20
  %v37 = vmul.f32 %v21, %v21
  %v38 = vmul.f32 %v22, %v22
  %v39 = vmul.f32 %v23, %v23
  %v40 = vmul.f32 %v24, %v24
  %v41 = vmul.f32 %v25, %v25
  %v42 = vmul.f32 %v26, %v26
  %v43 = vmul.f32 %v27, %v27
  %v44 = vmul.f32 %v28, %v28
  %v45 = vmul.f32 %v29, %v29
  %v46 = vmul.f32 %v30, %v30
  %v47 = vmul.f32 %v31, %v31
  %v48 = vmul.f32 %v32, %v32
  %v49 = vld [vmem:[%s1] sm:$0xff]
  %v50 = vld [vmem:[%s1 + $0x8] sm:$0xff]
  %v51 = vld [vmem:[%s1 + $0x10] sm:$0xff]
  %v52 = vld [vmem:[%s1 + $0x18] sm:$0xff]
  %v53 = vld [vmem:[%s1 + $0x20] sm:$0xff]
  %v54 = vld [vmem:[%s1 + $0x28] sm:$0xff]
  %v55 = vld [vmem:[%s1 + $0x30] sm:$0xff]
  %v56 = vld [vmem:[%s1 + $0x38] sm:$0xff]
  %v57 = vld [vmem:[%s1 + $0x40] sm:$0xff]
  %v58 = vld [vmem:[%s1 + $0x48] sm:$0xff]
  %v59 = vld [vmem:[%s1 + $0x50] sm:$0xff]
  %v60 = vld [vmem:[%s1 + $0x58] sm:$0xff]
  %v61 = vld [vmem:[%s1 + $0x60] sm:$0xff]
  %v62 = vld [vmem:[%s1 + $0x68] sm:$0xff]
  %v63 = vld [vmem:[%s1 + $0x70] sm:$0xff]
  %v64 = vld [vmem:[%s1 + $0x78] sm:$0xff]
  %v65 = vld [vmem:[%s2] sm:$0x1]
  %v67 = vlaneseq
  %v68 = vshrl.u32 %v67, 7
  %v69 = vsub.s32 0, %v68
  %v70 = vrot.slane %v65, %v69
  %72 = vmatprep.subr.mxu0 0.0
  %73 = vmatpush1.msra.mxu0 %v64
  %74 = vmatprep.subr.mxu0 0.0
  %75 = vmatpush1.msra.mxu0 %v63
  %76 = vmatprep.subr.mxu0 0.0
  %77 = vmatpush1.msra.mxu0 %v62
  %78 = vmatprep.subr.mxu0 0.0
  %79 = vmatpush1.msra.mxu0 %v61
  %80 = vmatprep.subr.mxu0 0.0
  %81 = vmatpush1.msra.mxu0 %v60
  %82 = vmatprep.subr.mxu0 0.0
  %83 = vmatpush1.msra.mxu0 %v59
  %84 = vmatprep.subr.mxu0 0.0
  %85 = vmatpush1.msra.mxu0 %v58
  %86 = vmatprep.subr.mxu0 0.0
  %87 = vmatpush1.msra.mxu0 %v57
  %88 = vmatprep.subr.mxu0 0.0
  %89 = vmatpush1.msra.mxu0 %v56
  %90 = vmatprep.subr.mxu0 0.0
  %91 = vmatpush1.msra.mxu0 %v55
  %92 = vmatprep.subr.mxu0 0.0
  %93 = vmatpush1.msra.mxu0 %v54
  %94 = vmatprep.subr.mxu0 0.0
  %95 = vmatpush1.msra.mxu0 %v53
  %96 = vmatprep.subr.mxu0 0.0
  %97 = vmatpush1.msra.mxu0 %v52
  %98 = vmatprep.subr.mxu0 0.0
  %99 = vmatpush1.msra.mxu0 %v51
  %100 = vmatprep.subr.mxu0 0.0
  %101 = vmatpush1.msra.mxu0 %v50
  %102 = vmatprep.subr.mxu0 0.0
  %103 = vmatpush1.msra.mxu0 %v49
  %104 = vmatprep.subr.mxu0 0.0
  %105 = vmatpush2.msra.mxu0 0.0
  %106 = vmatprep.subr.mxu0 0.0
  %107 = vmatpush2.msra.mxu0 0.0
  %108 = vmatprep.subr.mxu0 0.0
  %109 = vmatpush2.msra.mxu0 0.0
  %110 = vmatprep.subr.mxu0 0.0
  %111 = vmatpush2.msra.mxu0 0.0
  %112 = vmatprep.subr.mxu0 0.0
  %113 = vmatpush2.msra.mxu0 0.0
  %114 = vmatprep.subr.mxu0 0.0
  %115 = vmatpush2.msra.mxu0 0.0
  %116 = vmatprep.subr.mxu0 0.0
  %117 = vmatpush2.msra.mxu0 0.0
  %118 = vmatprep.subr.mxu0 0.0
  %119 = vmatpush2.msra.mxu0 0.0
  %120 = vmatprep.subr.mxu0 0.0
  %121 = vmatpush2.msra.mxu0 0.0
  %122 = vmatprep.subr.mxu0 0.0
  %123 = vmatpush2.msra.mxu0 0.0
  %124 = vmatprep.subr.mxu0 0.0
  %125 = vmatpush2.msra.mxu0 0.0
  %126 = vmatprep.subr.mxu0 0.0
  %127 = vmatpush2.msra.mxu0 0.0
  %128 = vmatprep.subr.mxu0 0.0
  %129 = vmatpush2.msra.mxu0 0.0
  %130 = vmatprep.subr.mxu0 0.0
  %131 = vmatpush2.msra.mxu0 0.0
  %132 = vmatprep.subr.mxu0 0.0
  %133 = vmatpush2.msra.mxu0 0.0
  %134 = vmatprep.subr.mxu0 0.0
  %135 = vmatpush2.msra.mxu0 0.0
  %136 = vmatprep.mubr.f32.mxu0 0.0
  %137 = vmatmul.mubr.f32.gmra.mxu0 %v33
  %v138 = vpop.f32.mrf.mxu0
  %v139 = vadd.f32 %v70, %v138
  %v140 = vpop.f32.mrf.mxu0
  %141 = vmatprep.mubr.f32.mxu0 0.0
  %142 = vmatmul.mubr.f32.gmra.mxu0 %v34
  %v143 = vpop.f32.mrf.mxu0
  %v144 = vadd.f32 %v70, %v143
  %v145 = vpop.f32.mrf.mxu0
  %146 = vmatprep.mubr.f32.mxu0 0.0
  %147 = vmatmul.mubr.f32.gmra.mxu0 %v35
  %v148 = vpop.f32.mrf.mxu0
  %v149 = vadd.f32 %v70, %v148
  %v150 = vpop.f32.mrf.mxu0
  %151 = vmatprep.mubr.f32.mxu0 0.0
  %152 = vmatmul.mubr.f32.gmra.mxu0 %v36
  %v153 = vpop.f32.mrf.mxu0
  %v154 = vadd.f32 %v70, %v153
  %v155 = vpop.f32.mrf.mxu0
  %156 = vmatprep.mubr.f32.mxu0 0.0
  %157 = vmatmul.mubr.f32.gmra.mxu0 %v37
  %v158 = vpop.f32.mrf.mxu0
  %v159 = vadd.f32 %v70, %v158
  %v160 = vpop.f32.mrf.mxu0
  %161 = vmatprep.mubr.f32.mxu0 0.0
  %162 = vmatmul.mubr.f32.gmra.mxu0 %v38
  %v163 = vpop.f32.mrf.mxu0
  %v164 = vadd.f32 %v70, %v163
  %v165 = vpop.f32.mrf.mxu0
  %166 = vmatprep.mubr.f32.mxu0 0.0
  %167 = vmatmul.mubr.f32.gmra.mxu0 %v39
  %v168 = vpop.f32.mrf.mxu0
  %v169 = vadd.f32 %v70, %v168
  %v170 = vpop.f32.mrf.mxu0
  %171 = vmatprep.mubr.f32.mxu0 0.0
  %172 = vmatmul.mubr.f32.gmra.mxu0 %v40
  %v173 = vpop.f32.mrf.mxu0
  %v174 = vadd.f32 %v70, %v173
  %v175 = vpop.f32.mrf.mxu0
  %176 = vmatprep.mubr.f32.mxu0 0.0
  %177 = vmatmul.mubr.f32.gmra.mxu0 %v41
  %v178 = vpop.f32.mrf.mxu0
  %v179 = vadd.f32 %v70, %v178
  %v180 = vpop.f32.mrf.mxu0
  %181 = vmatprep.mubr.f32.mxu0 0.0
  %182 = vmatmul.mubr.f32.gmra.mxu0 %v42
  %v183 = vpop.f32.mrf.mxu0
  %v184 = vadd.f32 %v70, %v183
  %v185 = vpop.f32.mrf.mxu0
  %186 = vmatprep.mubr.f32.mxu0 0.0
  %187 = vmatmul.mubr.f32.gmra.mxu0 %v43
  %v188 = vpop.f32.mrf.mxu0
  %v189 = vadd.f32 %v70, %v188
  %v190 = vpop.f32.mrf.mxu0
  %191 = vmatprep.mubr.f32.mxu0 0.0
  %192 = vmatmul.mubr.f32.gmra.mxu0 %v44
  %v193 = vpop.f32.mrf.mxu0
  %v194 = vadd.f32 %v70, %v193
  %v195 = vpop.f32.mrf.mxu0
  %196 = vmatprep.mubr.f32.mxu0 0.0
  %197 = vmatmul.mubr.f32.gmra.mxu0 %v45
  %v198 = vpop.f32.mrf.mxu0
  %v199 = vadd.f32 %v70, %v198
  %v200 = vpop.f32.mrf.mxu0
  %201 = vmatprep.mubr.f32.mxu0 0.0
  %202 = vmatmul.mubr.f32.gmra.mxu0 %v46
  %v203 = vpop.f32.mrf.mxu0
  %v204 = vadd.f32 %v70, %v203
  %v205 = vpop.f32.mrf.mxu0
  %206 = vmatprep.mubr.f32.mxu0 0.0
  %207 = vmatmul.mubr.f32.gmra.mxu0 %v47
  %v208 = vpop.f32.mrf.mxu0
  %v209 = vadd.f32 %v70, %v208
  %v210 = vpop.f32.mrf.mxu0
  %211 = vmatprep.mubr.f32.mxu0 0.0
  %212 = vmatmul.mubr.f32.gmra.mxu0 %v48
  %v213 = vpop.f32.mrf.mxu0
  %v214 = vadd.f32 %v70, %v213
  %v215 = vpop.f32.mrf.mxu0
  %216 = vdwg.mxu0
  %v217 = vrsqrt.pop %v139
  %v218 = vmul.f32 %v139, %v217
  %vm219 = vcmp.eq.f32.partialorder %v139, inf
  %v220 = vsel %vm219, %v139, %v218
  %vm221 = vcmp.eq.f32.partialorder %v139, 0.0
  %v222 = vand.u32 %v139, 2147483648
  %v223 = vsel %vm221, %v222, %v220
  %v224 = vrsqrt.pop %v144
  %v225 = vmul.f32 %v144, %v224
  %vm226 = vcmp.eq.f32.partialorder %v144, inf
  %v227 = vsel %vm226, %v144, %v225
  %vm228 = vcmp.eq.f32.partialorder %v144, 0.0
  %v229 = vand.u32 %v144, 2147483648
  %v230 = vsel %vm228, %v229, %v227
  %v231 = vrsqrt.pop %v149
  %v232 = vmul.f32 %v149, %v231
  %vm233 = vcmp.eq.f32.partialorder %v149, inf
  %v234 = vsel %vm233, %v149, %v232
  %vm235 = vcmp.eq.f32.partialorder %v149, 0.0
  %v236 = vand.u32 %v149, 2147483648
  %v237 = vsel %vm235, %v236, %v234
  %v238 = vrsqrt.pop %v154
  %v239 = vmul.f32 %v154, %v238
  %vm240 = vcmp.eq.f32.partialorder %v154, inf
  %v241 = vsel %vm240, %v154, %v239
  %vm242 = vcmp.eq.f32.partialorder %v154, 0.0
  %v243 = vand.u32 %v154, 2147483648
  %v244 = vsel %vm242, %v243, %v241
  %v245 = vrsqrt.pop %v159
  %v246 = vmul.f32 %v159, %v245
  %vm247 = vcmp.eq.f32.partialorder %v159, inf
  %v248 = vsel %vm247, %v159, %v246
  %vm249 = vcmp.eq.f32.partialorder %v159, 0.0
  %v250 = vand.u32 %v159, 2147483648
  %v251 = vsel %vm249, %v250, %v248
  %v252 = vrsqrt.pop %v164
  %v253 = vmul.f32 %v164, %v252
  %vm254 = vcmp.eq.f32.partialorder %v164, inf
  %v255 = vsel %vm254, %v164, %v253
  %vm256 = vcmp.eq.f32.partialorder %v164, 0.0
  %v257 = vand.u32 %v164, 2147483648
  %v258 = vsel %vm256, %v257, %v255
  %v259 = vrsqrt.pop %v169
  %v260 = vmul.f32 %v169, %v259
  %vm261 = vcmp.eq.f32.partialorder %v169, inf
  %v262 = vsel %vm261, %v169, %v260
  %vm263 = vcmp.eq.f32.partialorder %v169, 0.0
  %v264 = vand.u32 %v169, 2147483648
  %v265 = vsel %vm263, %v264, %v262
  %v266 = vrsqrt.pop %v174
  %v267 = vmul.f32 %v174, %v266
  %vm268 = vcmp.eq.f32.partialorder %v174, inf
  %v269 = vsel %vm268, %v174, %v267
  %vm270 = vcmp.eq.f32.partialorder %v174, 0.0
  %v271 = vand.u32 %v174, 2147483648
  %v272 = vsel %vm270, %v271, %v269
  %v273 = vrsqrt.pop %v179
  %v274 = vmul.f32 %v179, %v273
  %vm275 = vcmp.eq.f32.partialorder %v179, inf
  %v276 = vsel %vm275, %v179, %v274
  %vm277 = vcmp.eq.f32.partialorder %v179, 0.0
  %v278 = vand.u32 %v179, 2147483648
  %v279 = vsel %vm277, %v278, %v276
  %v280 = vrsqrt.pop %v184
  %v281 = vmul.f32 %v184, %v280
  %vm282 = vcmp.eq.f32.partialorder %v184, inf
  %v283 = vsel %vm282, %v184, %v281
  %vm284 = vcmp.eq.f32.partialorder %v184, 0.0
  %v285 = vand.u32 %v184, 2147483648
  %v286 = vsel %vm284, %v285, %v283
  %v287 = vrsqrt.pop %v189
  %v288 = vmul.f32 %v189, %v287
  %vm289 = vcmp.eq.f32.partialorder %v189, inf
  %v290 = vsel %vm289, %v189, %v288
  %vm291 = vcmp.eq.f32.partialorder %v189, 0.0
  %v292 = vand.u32 %v189, 2147483648
  %v293 = vsel %vm291, %v292, %v290
  %v294 = vrsqrt.pop %v194
  %v295 = vmul.f32 %v194, %v294
  %vm296 = vcmp.eq.f32.partialorder %v194, inf
  %v297 = vsel %vm296, %v194, %v295
  %vm298 = vcmp.eq.f32.partialorder %v194, 0.0
  %v299 = vand.u32 %v194, 2147483648
  %v300 = vsel %vm298, %v299, %v297
  %v301 = vrsqrt.pop %v199
  %v302 = vmul.f32 %v199, %v301
  %vm303 = vcmp.eq.f32.partialorder %v199, inf
  %v304 = vsel %vm303, %v199, %v302
  %vm305 = vcmp.eq.f32.partialorder %v199, 0.0
  %v306 = vand.u32 %v199, 2147483648
  %v307 = vsel %vm305, %v306, %v304
  %v308 = vrsqrt.pop %v204
  %v309 = vmul.f32 %v204, %v308
  %vm310 = vcmp.eq.f32.partialorder %v204, inf
  %v311 = vsel %vm310, %v204, %v309
  %vm312 = vcmp.eq.f32.partialorder %v204, 0.0
  %v313 = vand.u32 %v204, 2147483648
  %v314 = vsel %vm312, %v313, %v311
  %v315 = vrsqrt.pop %v209
  %v316 = vmul.f32 %v209, %v315
  %vm317 = vcmp.eq.f32.partialorder %v209, inf
  %v318 = vsel %vm317, %v209, %v316
  %vm319 = vcmp.eq.f32.partialorder %v209, 0.0
  %v320 = vand.u32 %v209, 2147483648
  %v321 = vsel %vm319, %v320, %v318
  %v322 = vrsqrt.pop %v214
  %v323 = vmul.f32 %v214, %v322
  %vm324 = vcmp.eq.f32.partialorder %v214, inf
  %v325 = vsel %vm324, %v214, %v323
  %vm326 = vcmp.eq.f32.partialorder %v214, 0.0
  %v327 = vand.u32 %v214, 2147483648
  %v328 = vsel %vm326, %v327, %v325
  %v329 = vmul.f32 %v17, %v223
  %v330 = vmul.f32 %v18, %v230
  %v331 = vmul.f32 %v19, %v237
  %v332 = vmul.f32 %v20, %v244
  %v333 = vmul.f32 %v21, %v251
  %v334 = vmul.f32 %v22, %v258
  %v335 = vmul.f32 %v23, %v265
  %v336 = vmul.f32 %v24, %v272
  %v337 = vmul.f32 %v25, %v279
  %v338 = vmul.f32 %v26, %v286
  %v339 = vmul.f32 %v27, %v293
  %v340 = vmul.f32 %v28, %v300
  %v341 = vmul.f32 %v29, %v307
  %v342 = vmul.f32 %v30, %v314
  %v343 = vmul.f32 %v31, %v321
  %v344 = vmul.f32 %v32, %v328
  %v345 = vld [vmem:[%s3] sm:$0xff]
  %v346 = vld [vmem:[%s3 + $0x8] sm:$0xff]
  %v347 = vld [vmem:[%s3 + $0x10] sm:$0xff]
  %v348 = vld [vmem:[%s3 + $0x18] sm:$0xff]
  %v349 = vld [vmem:[%s3 + $0x20] sm:$0xff]
  %v350 = vld [vmem:[%s3 + $0x28] sm:$0xff]
  %v351 = vld [vmem:[%s3 + $0x30] sm:$0xff]
  %v352 = vld [vmem:[%s3 + $0x38] sm:$0xff]
  %v353 = vld [vmem:[%s3 + $0x40] sm:$0xff]
  %v354 = vld [vmem:[%s3 + $0x48] sm:$0xff]
  %v355 = vld [vmem:[%s3 + $0x50] sm:$0xff]
  %v356 = vld [vmem:[%s3 + $0x58] sm:$0xff]
  %v357 = vld [vmem:[%s3 + $0x60] sm:$0xff]
  %v358 = vld [vmem:[%s3 + $0x68] sm:$0xff]
  %v359 = vld [vmem:[%s3 + $0x70] sm:$0xff]
  %v360 = vld [vmem:[%s3 + $0x78] sm:$0xff]
  %v361 = vadd.f32 %v329, %v345
  %v362 = vadd.f32 %v330, %v346
  %v363 = vadd.f32 %v331, %v347
  %v364 = vadd.f32 %v332, %v348
  %v365 = vadd.f32 %v333, %v349
  %v366 = vadd.f32 %v334, %v350
  %v367 = vadd.f32 %v335, %v351
  %v368 = vadd.f32 %v336, %v352
  %v369 = vadd.f32 %v337, %v353
  %v370 = vadd.f32 %v338, %v354
  %v371 = vadd.f32 %v339, %v355
  %v372 = vadd.f32 %v340, %v356
  %v373 = vadd.f32 %v341, %v357
  %v374 = vadd.f32 %v342, %v358
  %v375 = vadd.f32 %v343, %v359
  %v376 = vadd.f32 %v344, %v360
  %377 = vst [vmem:[%s4] sm:$0xff] %v361
  %378 = vst [vmem:[%s4 + $0x8] sm:$0xff] %v362
  %379 = vst [vmem:[%s4 + $0x10] sm:$0xff] %v363
  %380 = vst [vmem:[%s4 + $0x18] sm:$0xff] %v364
  %381 = vst [vmem:[%s4 + $0x20] sm:$0xff] %v365
  %382 = vst [vmem:[%s4 + $0x28] sm:$0xff] %v366
  %383 = vst [vmem:[%s4 + $0x30] sm:$0xff] %v367
  %384 = vst [vmem:[%s4 + $0x38] sm:$0xff] %v368
  %385 = vst [vmem:[%s4 + $0x40] sm:$0xff] %v369
  %386 = vst [vmem:[%s4 + $0x48] sm:$0xff] %v370
  %387 = vst [vmem:[%s4 + $0x50] sm:$0xff] %v371
  %388 = vst [vmem:[%s4 + $0x58] sm:$0xff] %v372
  %389 = vst [vmem:[%s4 + $0x60] sm:$0xff] %v373
  %390 = vst [vmem:[%s4 + $0x68] sm:$0xff] %v374
  %391 = vst [vmem:[%s4 + $0x70] sm:$0xff] %v375
  %392 = vst [vmem:[%s4 + $0x78] sm:$0xff] %v376
  // Predicated region
  $region18: #{_forward.114} parent=0 // pred_check
    _
  $region19: #{_forward.114} parent=0 // pred_check_branch
    %394 = sbr.rel (0) target = $region21
  $region20: #{_forward.114} parent=0 // pred_region
    _
  $region21: #{_forward.114} parent=0 // pred_fallthru
    _
  // Predicated region
  $region22: #{_forward.114} parent=0 // pred_check
    _
  $region23: #{_forward.114} parent=0 // pred_check_branch
    %396 = sbr.rel (0) target = $region25
  $region24: #{_forward.114} parent=0 // pred_region
    _
  $region25: #{_forward.114} parent=0 // pred_fallthru
    _

</llo_original>
